<compile_context>
chip_gen: v5e
topology: v5e:2x2
jax: 0.10.0
libtpu: 0.0.40
codegen_flags: <defaults>
</compile_context>

<pallas_src>
import functools

import jax
import jax.numpy as jnp
from jax.experimental import pallas as pl
from jax.experimental.pallas import tpu as pltpu

INPUT_DIM = 256   # stand-in for data_processing.get_number_of_movies()
DIM1 = 512
DIM2 = 16


def _round_up(x, m):
    return ((x + m - 1) // m) * m


def vae_kernel(x_ref, eps_ref,
               w1_ref, b1_ref,
               wh_ref, bh_ref,       # fused [W21 | W22]: (DIM1, 2*DIM2), (1, 2*DIM2)
               w3_ref, b3_ref,
               w4_ref, b4_ref,
               recon_ref, mulv_ref):
    bf16 = jnp.bfloat16

    # ---- encode: h1 = relu(x @ W1 + b1)  (bf16 operands, f32 accumulate) ----
    h1 = jnp.dot(x_ref[...], w1_ref[...],
                 preferred_element_type=jnp.float32) + b1_ref[...]
    h1 = jnp.maximum(h1, 0.0)

    # fused head: [mu | logvar] = h1 @ [W21 | W22] + [b21 | b22]
    mulv = jnp.dot(h1.astype(bf16), wh_ref[...],
                   preferred_element_type=jnp.float32) + bh_ref[...]
    mu = mulv[:, :DIM2]
    logvar = mulv[:, DIM2:]

    # ---- re_parameterize: z = mu + eps * exp(0.5 * logvar) ------------------
    std = jnp.exp(0.5 * logvar)
    z = mu + eps_ref[...] * std

    # ---- decode: sigmoid(relu(z @ W3 + b3) @ W4 + b4) -----------------------
    h3 = jnp.dot(z.astype(bf16), w3_ref[...],
                 preferred_element_type=jnp.float32) + b3_ref[...]
    h3 = jnp.maximum(h3, 0.0)
    logits = jnp.dot(h3.astype(bf16), w4_ref[...],
                     preferred_element_type=jnp.float32) + b4_ref[...]

    recon_ref[...] = jax.nn.sigmoid(logits)
    mulv_ref[...] = mulv            # lane-packed mu||logvar, split in wrapper


@functools.partial(jax.jit, static_argnames=("block_b",))
def vae_forward(x, eps, params, block_b=256):
    B = x.shape[0]
    w1, b1, w21, b21, w22, b22, w3, b3, w4, b4 = params

    # Batch tile: multiple of 8, capped at block_b, aiming for >= 2 grid steps
    # so both v7x TensorCores get work via the "parallel" grid axis.
    bb = min(block_b, max(8, _round_up(-(-B // 2), 8)))
    padded_B = _round_up(B, bb)
    if padded_B != B:
        pad = padded_B - B
        x = jnp.pad(x, ((0, pad), (0, 0)))
        eps = jnp.pad(eps, ((0, pad), (0, 0)))

    # bf16 matmul operands; biases stay f32 (added to the f32 accumulator).
    bf16 = jnp.bfloat16
    x_bf = x.astype(bf16)
    w1_bf = w1.astype(bf16)
    wh_bf = jnp.concatenate([w21, w22], axis=1).astype(bf16)   # (DIM1, 2*DIM2)
    bh = jnp.concatenate([b21, b22], axis=1)                   # (1, 2*DIM2)
    w3_bf = w3.astype(bf16)
    w4_bf = w4.astype(bf16)

    full = lambda shape: pl.BlockSpec(shape, lambda i: (0,) * len(shape))
    batched = lambda f: pl.BlockSpec((bb, f), lambda i: (i, 0))

    out_shapes = (
        jax.ShapeDtypeStruct((padded_B, INPUT_DIM), jnp.float32),   # recon
        jax.ShapeDtypeStruct((padded_B, 2 * DIM2), jnp.float32),    # mu || logvar
    )

    recon, mulv = pl.pallas_call(
        vae_kernel,
        out_shape=out_shapes,
        grid_spec=pltpu.PrefetchScalarGridSpec(
            num_scalar_prefetch=0,
            grid=(padded_B // bb,),
            in_specs=[
                batched(INPUT_DIM),              # x
                batched(DIM2),                   # eps
                full(w1_bf.shape), full(b1.shape),
                full(wh_bf.shape), full(bh.shape),
                full(w3_bf.shape), full(b3.shape),
                full(w4_bf.shape), full(b4.shape),
            ],
            out_specs=[
                batched(INPUT_DIM),              # recon
                batched(2 * DIM2),               # mu || logvar
            ],
        ),
        compiler_params=pltpu.CompilerParams(
            dimension_semantics=("parallel",)),
    )(x_bf, eps, w1_bf, b1, wh_bf, bh, w3_bf, b3, w4_bf, b4)

    recon = recon[:B]
    mu = mulv[:B, :DIM2]
    logvar = mulv[:B, DIM2:]
    return recon, mu, logvar


def init_linear(key, fan_in, fan_out):
    """PyTorch nn.Linear default init: U(-1/sqrt(fan_in), 1/sqrt(fan_in)).
    Weight is pre-transposed to (fan_in, fan_out); bias is (1, fan_out)."""
    kw, kb = jax.random.split(key)
    bound = 1.0 / jnp.sqrt(fan_in)
    w = jax.random.uniform(kw, (fan_in, fan_out), jnp.float32, -bound, bound)
    b = jax.random.uniform(kb, (1, fan_out), jnp.float32, -bound, bound)
    return w, b


def reference_forward(x, eps, params):
    """Precision-matched reference: bf16 matmul operands, f32 accumulation,
    f32 elementwise — same numerics class as the kernel."""
    w1, b1, w21, b21, w22, b22, w3, b3, w4, b4 = params
    bf16 = jnp.bfloat16
    mm = lambda a, w: jnp.dot(a.astype(bf16), w.astype(bf16),
                              preferred_element_type=jnp.float32)
    h1 = jnp.maximum(mm(x, w1) + b1, 0.0)
    mu = mm(h1, w21) + b21
    logvar = mm(h1, w22) + b22
    z = mu + eps * jnp.exp(0.5 * logvar)
    h3 = jnp.maximum(mm(z, w3) + b3, 0.0)
    recon = jax.nn.sigmoid(mm(h3, w4) + b4)
    return recon, mu, logvar


if __name__ == "__main__":
    key = jax.random.PRNGKey(0)
    keys = jax.random.split(key, 7)

    params = (
        *init_linear(keys[0], INPUT_DIM, DIM1),   # fc1
        *init_linear(keys[1], DIM1, DIM2),        # fc21
        *init_linear(keys[2], DIM1, DIM2),        # fc22
        *init_linear(keys[3], DIM2, DIM1),        # fc3
        *init_linear(keys[4], DIM1, INPUT_DIM),   # fc4
    )

    # Non-tile-multiple batch exercises the padding path and a 2-step grid.
    B = 200
    x = jax.random.uniform(keys[5], (B, INPUT_DIM), jnp.float32)   # user ratings rows
    # TODO(synk): eps (torch.randn_like) is sampled outside the kernel and passed in.
    eps = jax.random.normal(keys[6], (B, DIM2), jnp.float32)

    recon, mu, logvar = vae_forward(x, eps, params)
    jax.block_until_ready((recon, mu, logvar))

    r_ref, mu_ref, lv_ref = reference_forward(x, eps, params)
    assert recon.shape == (B, INPUT_DIM)
    assert mu.shape == (B, DIM2) and logvar.shape == (B, DIM2)
    # bf16-operand matmuls: compare against the precision-matched reference
    # with tolerances that absorb accumulation-order differences.
    assert jnp.allclose(recon, r_ref, rtol=1e-2, atol=1e-2)
    assert jnp.allclose(mu, mu_ref, rtol=1e-2, atol=1e-2)
    assert jnp.allclose(logvar, lv_ref, rtol=1e-2, atol=1e-2)

    print("KERNEL_OK")
</pallas_src>

<mosaic_0001>
module attributes {stable_mosaic.version = 11 : i64} {
  func.func @vae_kernel(%arg0: i32, %arg1: memref<104x256xbf16, #tpu.memory_space<vmem>>, %arg2: memref<104x16xf32, #tpu.memory_space<vmem>>, %arg3: memref<256x512xbf16, #tpu.memory_space<vmem>>, %arg4: memref<1x512xf32, #tpu.memory_space<vmem>>, %arg5: memref<512x32xbf16, #tpu.memory_space<vmem>>, %arg6: memref<1x32xf32, #tpu.memory_space<vmem>>, %arg7: memref<16x512xbf16, #tpu.memory_space<vmem>>, %arg8: memref<1x512xf32, #tpu.memory_space<vmem>>, %arg9: memref<512x256xbf16, #tpu.memory_space<vmem>>, %arg10: memref<1x256xf32, #tpu.memory_space<vmem>>, %arg11: memref<104x256xf32, #tpu.memory_space<vmem>>, %arg12: memref<104x32xf32, #tpu.memory_space<vmem>>) attributes {dimension_semantics = [#tpu.dimension_semantics<parallel>], iteration_bounds = array<i64: 2>, scalar_prefetch = 0 : i64, scratch_operands = 0 : i64, tpu.core_type = #tpu.core_type<tc>, window_params = [{transform_indices = @transform_0, window_bounds = array<i64: 104, 256>}, {transform_indices = @transform_1, window_bounds = array<i64: 104, 16>}, {pipeline_mode = #tpu.pipeline_mode<synchronous>, transform_indices = @transform_2, window_bounds = array<i64: 256, 512>}, {pipeline_mode = #tpu.pipeline_mode<synchronous>, transform_indices = @transform_3, window_bounds = array<i64: 1, 512>}, {pipeline_mode = #tpu.pipeline_mode<synchronous>, transform_indices = @transform_4, window_bounds = array<i64: 512, 32>}, {pipeline_mode = #tpu.pipeline_mode<synchronous>, transform_indices = @transform_5, window_bounds = array<i64: 1, 32>}, {pipeline_mode = #tpu.pipeline_mode<synchronous>, transform_indices = @transform_6, window_bounds = array<i64: 16, 512>}, {pipeline_mode = #tpu.pipeline_mode<synchronous>, transform_indices = @transform_7, window_bounds = array<i64: 1, 512>}, {pipeline_mode = #tpu.pipeline_mode<synchronous>, transform_indices = @transform_8, window_bounds = array<i64: 512, 256>}, {pipeline_mode = #tpu.pipeline_mode<synchronous>, transform_indices = @transform_9, window_bounds = array<i64: 1, 256>}, {transform_indices = @transform_10, window_bounds = array<i64: 104, 256>}, {transform_indices = @transform_11, window_bounds = array<i64: 104, 32>}]} {
    %c0 = arith.constant 0 : index
    %c0_0 = arith.constant 0 : index
    %0 = vector.load %arg1[%c0, %c0_0] : memref<104x256xbf16, #tpu.memory_space<vmem>>, vector<104x256xbf16>
    %c0_1 = arith.constant 0 : index
    %c0_2 = arith.constant 0 : index
    %1 = vector.load %arg3[%c0_1, %c0_2] : memref<256x512xbf16, #tpu.memory_space<vmem>>, vector<256x512xbf16>
    %cst = arith.constant dense<0.000000e+00> : vector<104x512xf32>
    %2 = tpu.matmul %0, %1, %cst {dimension_numbers = #tpu.dot_dimension_numbers<[1], [0], [0], [1], [0, 0, 1, 1], [], []>} : vector<104x256xbf16>, vector<256x512xbf16>, vector<104x512xf32> -> vector<104x512xf32>
    %c0_3 = arith.constant 0 : index
    %c0_4 = arith.constant 0 : index
    %3 = vector.load %arg4[%c0_3, %c0_4] : memref<1x512xf32, #tpu.memory_space<vmem>>, vector<1x512xf32>
    %4 = vector.broadcast %3 : vector<1x512xf32> to vector<104x512xf32>
    %5 = arith.addf %2, %4 : vector<104x512xf32>
    %cst_5 = arith.constant 0.000000e+00 : f32
    %6 = vector.broadcast %cst_5 : f32 to vector<104x512xf32>
    %7 = arith.maximumf %5, %6 : vector<104x512xf32>
    %8 = arith.truncf %7 : vector<104x512xf32> to vector<104x512xbf16>
    %c0_6 = arith.constant 0 : index
    %c0_7 = arith.constant 0 : index
    %9 = vector.load %arg5[%c0_6, %c0_7] : memref<512x32xbf16, #tpu.memory_space<vmem>>, vector<512x32xbf16>
    %cst_8 = arith.constant dense<0.000000e+00> : vector<104x32xf32>
    %10 = tpu.matmul %8, %9, %cst_8 {dimension_numbers = #tpu.dot_dimension_numbers<[1], [0], [0], [1], [0, 0, 1, 1], [], []>} : vector<104x512xbf16>, vector<512x32xbf16>, vector<104x32xf32> -> vector<104x32xf32>
    %c0_9 = arith.constant 0 : index
    %c0_10 = arith.constant 0 : index
    %11 = vector.load %arg6[%c0_9, %c0_10] : memref<1x32xf32, #tpu.memory_space<vmem>>, vector<1x32xf32>
    %12 = vector.broadcast %11 : vector<1x32xf32> to vector<104x32xf32>
    %13 = arith.addf %10, %12 : vector<104x32xf32>
    %14 = vector.extract_strided_slice %13 {offsets = [0, 0], sizes = [104, 16], strides = [1, 1]} : vector<104x32xf32> to vector<104x16xf32>
    %15 = vector.extract_strided_slice %13 {offsets = [0, 16], sizes = [104, 16], strides = [1, 1]} : vector<104x32xf32> to vector<104x16xf32>
    %cst_11 = arith.constant 5.000000e-01 : f32
    %16 = vector.broadcast %cst_11 : f32 to vector<104x16xf32>
    %17 = arith.mulf %16, %15 : vector<104x16xf32>
    %18 = math.exp %17 : vector<104x16xf32>
    %c0_12 = arith.constant 0 : index
    %c0_13 = arith.constant 0 : index
    %19 = vector.load %arg2[%c0_12, %c0_13] : memref<104x16xf32, #tpu.memory_space<vmem>>, vector<104x16xf32>
    %20 = arith.mulf %19, %18 : vector<104x16xf32>
    %21 = arith.addf %14, %20 : vector<104x16xf32>
    %22 = arith.truncf %21 : vector<104x16xf32> to vector<104x16xbf16>
    %c0_14 = arith.constant 0 : index
    %c0_15 = arith.constant 0 : index
    %23 = vector.load %arg7[%c0_14, %c0_15] : memref<16x512xbf16, #tpu.memory_space<vmem>>, vector<16x512xbf16>
    %cst_16 = arith.constant dense<0.000000e+00> : vector<104x512xf32>
    %24 = tpu.matmul %22, %23, %cst_16 {dimension_numbers = #tpu.dot_dimension_numbers<[1], [0], [0], [1], [0, 0, 1, 1], [], []>} : vector<104x16xbf16>, vector<16x512xbf16>, vector<104x512xf32> -> vector<104x512xf32>
    %c0_17 = arith.constant 0 : index
    %c0_18 = arith.constant 0 : index
    %25 = vector.load %arg8[%c0_17, %c0_18] : memref<1x512xf32, #tpu.memory_space<vmem>>, vector<1x512xf32>
    %26 = vector.broadcast %25 : vector<1x512xf32> to vector<104x512xf32>
    %27 = arith.addf %24, %26 : vector<104x512xf32>
    %cst_19 = arith.constant 0.000000e+00 : f32
    %28 = vector.broadcast %cst_19 : f32 to vector<104x512xf32>
    %29 = arith.maximumf %27, %28 : vector<104x512xf32>
    %30 = arith.truncf %29 : vector<104x512xf32> to vector<104x512xbf16>
    %c0_20 = arith.constant 0 : index
    %c0_21 = arith.constant 0 : index
    %31 = vector.load %arg9[%c0_20, %c0_21] : memref<512x256xbf16, #tpu.memory_space<vmem>>, vector<512x256xbf16>
    %cst_22 = arith.constant dense<0.000000e+00> : vector<104x256xf32>
    %32 = tpu.matmul %30, %31, %cst_22 {dimension_numbers = #tpu.dot_dimension_numbers<[1], [0], [0], [1], [0, 0, 1, 1], [], []>} : vector<104x512xbf16>, vector<512x256xbf16>, vector<104x256xf32> -> vector<104x256xf32>
    %c0_23 = arith.constant 0 : index
    %c0_24 = arith.constant 0 : index
    %33 = vector.load %arg10[%c0_23, %c0_24] : memref<1x256xf32, #tpu.memory_space<vmem>>, vector<1x256xf32>
    %34 = vector.broadcast %33 : vector<1x256xf32> to vector<104x256xf32>
    %35 = arith.addf %32, %34 : vector<104x256xf32>
    %36 = arith.negf %35 : vector<104x256xf32>
    %37 = math.exp %36 : vector<104x256xf32>
    %cst_25 = arith.constant 1.000000e+00 : f32
    %38 = vector.broadcast %cst_25 : f32 to vector<104x256xf32>
    %39 = arith.addf %38, %37 : vector<104x256xf32>
    %40 = arith.divf %38, %39 : vector<104x256xf32>
    %c0_26 = arith.constant 0 : index
    %c0_27 = arith.constant 0 : index
    %41 = vector.load %arg11[%c0_26, %c0_27] : memref<104x256xf32, #tpu.memory_space<vmem>>, vector<104x256xf32>
    tpu.vector_store %arg11[%c0_26, %c0_27], %40 {strides = array<i32>} : memref<104x256xf32, #tpu.memory_space<vmem>>, vector<104x256xf32>,
    %c0_28 = arith.constant 0 : index
    %c0_29 = arith.constant 0 : index
    %42 = vector.load %arg12[%c0_28, %c0_29] : memref<104x32xf32, #tpu.memory_space<vmem>>, vector<104x32xf32>
    tpu.vector_store %arg12[%c0_28, %c0_29], %13 {strides = array<i32>} : memref<104x32xf32, #tpu.memory_space<vmem>>, vector<104x32xf32>,
    return
  }
  func.func @transform_0(%arg0: i32) -> (i32, i32) {
    %c0_i32 = arith.constant 0 : i32
    %c0_i32_0 = arith.constant 0 : i32
    return %arg0, %c0_i32 : i32, i32
  }
  func.func @transform_1(%arg0: i32) -> (i32, i32) {
    %c0_i32 = arith.constant 0 : i32
    %c0_i32_0 = arith.constant 0 : i32
    return %arg0, %c0_i32 : i32, i32
  }
  func.func @transform_2(%arg0: i32) -> (i32, i32) {
    %c0_i32 = arith.constant 0 : i32
    %c0_i32_0 = arith.constant 0 : i32
    %c0_i32_1 = arith.constant 0 : i32
    return %c0_i32, %c0_i32_0 : i32, i32
  }
  func.func @transform_3(%arg0: i32) -> (i32, i32) {
    %c0_i32 = arith.constant 0 : i32
    %c0_i32_0 = arith.constant 0 : i32
    %c0_i32_1 = arith.constant 0 : i32
    return %c0_i32, %c0_i32_0 : i32, i32
  }
  func.func @transform_4(%arg0: i32) -> (i32, i32) {
    %c0_i32 = arith.constant 0 : i32
    %c0_i32_0 = arith.constant 0 : i32
    %c0_i32_1 = arith.constant 0 : i32
    return %c0_i32, %c0_i32_0 : i32, i32
  }
  func.func @transform_5(%arg0: i32) -> (i32, i32) {
    %c0_i32 = arith.constant 0 : i32
    %c0_i32_0 = arith.constant 0 : i32
    %c0_i32_1 = arith.constant 0 : i32
    return %c0_i32, %c0_i32_0 : i32, i32
  }
  func.func @transform_6(%arg0: i32) -> (i32, i32) {
    %c0_i32 = arith.constant 0 : i32
    %c0_i32_0 = arith.constant 0 : i32
    %c0_i32_1 = arith.constant 0 : i32
    return %c0_i32, %c0_i32_0 : i32, i32
  }
  func.func @transform_7(%arg0: i32) -> (i32, i32) {
    %c0_i32 = arith.constant 0 : i32
    %c0_i32_0 = arith.constant 0 : i32
    %c0_i32_1 = arith.constant 0 : i32
    return %c0_i32, %c0_i32_0 : i32, i32
  }
  func.func @transform_8(%arg0: i32) -> (i32, i32) {
    %c0_i32 = arith.constant 0 : i32
    %c0_i32_0 = arith.constant 0 : i32
    %c0_i32_1 = arith.constant 0 : i32
    return %c0_i32, %c0_i32_0 : i32, i32
  }
  func.func @transform_9(%arg0: i32) -> (i32, i32) {
    %c0_i32 = arith.constant 0 : i32
    %c0_i32_0 = arith.constant 0 : i32
    %c0_i32_1 = arith.constant 0 : i32
    return %c0_i32, %c0_i32_0 : i32, i32
  }
  func.func @transform_10(%arg0: i32) -> (i32, i32) {
    %c0_i32 = arith.constant 0 : i32
    %c0_i32_0 = arith.constant 0 : i32
    return %arg0, %c0_i32 : i32, i32
  }
  func.func @transform_11(%arg0: i32) -> (i32, i32) {
    %c0_i32 = arith.constant 0 : i32
    %c0_i32_0 = arith.constant 0 : i32
    return %arg0, %c0_i32 : i32, i32
  }
}

</mosaic_0001>

<llo_original>
// kernel: vae_forward.1
$region0: #{vae_forward.1}
  #allocation0 [shape = 'u32[]', space=smem, size = 0x4, offset = 0x4, fixed_abs, tag = 'smem constant byte address 0x4 - core index']
  #allocation1 [shape = 'u32[72,128]{1,0:T(1,128)}', space=vmem, size = 0x9000, scoped, tag = 'internal scratch']
  %s0 = inlined_call_operand.vmem [shape: bf16[208,256], index: 0, kind: input, shape index: {}]
  %s1 = inlined_call_operand.vmem [shape: f32[208,16], index: 1, kind: input, shape index: {}]
  %s2 = inlined_call_operand.vmem [shape: bf16[256,512], index: 2, kind: input, shape index: {}]
  %s3 = inlined_call_operand.vmem [shape: f32[1,512], index: 3, kind: input, shape index: {}]
  %s4 = inlined_call_operand.vmem [shape: bf16[512,32], index: 4, kind: input, shape index: {}]
  %s5 = inlined_call_operand.vmem [shape: f32[1,32], index: 5, kind: input, shape index: {}]
  %s6 = inlined_call_operand.vmem [shape: bf16[16,512], index: 6, kind: input, shape index: {}]
  %s7 = inlined_call_operand.vmem [shape: f32[1,512], index: 7, kind: input, shape index: {}]
  %s8 = inlined_call_operand.vmem [shape: bf16[512,256], index: 8, kind: input, shape index: {}]
  %s9 = inlined_call_operand.vmem [shape: f32[1,256], index: 9, kind: input, shape index: {}]
  %s10 = inlined_call_operand.vmem [shape: f32[208,256], index: 10, kind: output, shape index: {0}]
  %s11 = inlined_call_operand.vmem [shape: f32[208,32], index: 11, kind: output, shape index: {1}]
  %12 = xla_tuple %s10, %s11
  %s13 = sld [smem:[#allocation0]]
  $region81: #{vae_forward.1} parent=0
    _
  %s15 = ssub.s32 1, %s13
  %s16 = scalar_select 0, %s15, %s13
  loop: start=0, step=1, limit=4
  $region2: #{vae_forward.1} parent=0 // loop_pre_header
    _
  $region3: #{vae_forward.1} parent=0 // loop_header
    %s18 = sphi 0, %s22
    %p19 = scmp.ge.s32.totalorder %s18, 4
    %s28 = sphi 0, %s30
    %s31 = sphi 0, %s28
    %s32 = sphi 0, %s31
    %s48 = sphi 0, %s32
    %s54 = sphi 0, %s56
    %s57 = sphi 0, %s54
    %s58 = sphi 0, %s57
    %s74 = sphi 0, %s58
    %s78 = sphi 0, %s78
    %s80 = sphi 0, %s78
    %s81 = sphi 0, %s80
    %s95 = sphi 0, %s81
    %s99 = sphi 0, %s99
    %s101 = sphi 0, %s99
    %s102 = sphi 0, %s101
    %s116 = sphi 0, %s102
    %s120 = sphi 0, %s120
    %s122 = sphi 0, %s120
    %s123 = sphi 0, %s122
    %s137 = sphi 0, %s123
    %s141 = sphi 0, %s141
    %s143 = sphi 0, %s141
    %s144 = sphi 0, %s143
    %s158 = sphi 0, %s144
    %s162 = sphi 0, %s162
    %s164 = sphi 0, %s162
    %s165 = sphi 0, %s164
    %s179 = sphi 0, %s165
    %s183 = sphi 0, %s183
    %s185 = sphi 0, %s183
    %s186 = sphi 0, %s185
    %s200 = sphi 0, %s186
    %s204 = sphi 0, %s204
    %s206 = sphi 0, %s204
    %s207 = sphi 0, %s206
    %s221 = sphi 0, %s207
    %s225 = sphi 0, %s225
    %s227 = sphi 0, %s225
    %s228 = sphi 0, %s227
    %s242 = sphi 0, %s228
    %s248 = sphi 0, %s250
    %s251 = sphi 0, %s248
    %s252 = sphi 0, %s251
    %s268 = sphi 0, %s252
    %s274 = sphi 0, %s276
    %s277 = sphi 0, %s274
    %s278 = sphi 0, %s277
    %s294 = sphi 0, %s278
  $region4: #{vae_forward.1} parent=0 // loop_header_branch
    %21 = sbr.rel (%p19) target = $region8
  $region5: #{vae_forward.1} parent=0 // loop_body
    %s23 = ssub.s32 %s18, 1
    %s24 = ssub.s32 %s18, 2
    %s25 = sadd.s32 %s18, 1
    %s26 = ssub.s32 %s18, %s25
    %p27 = scmp.eq.s32.totalorder %s26, 0
    %s29 = sadd.s32 %s28, 1
    %s30 = scalar_select %p27, %s28, %s29
    %p33 = pneg %p27
    %p34 = scmp.eq.s32.totalorder %s18, 1
    %p35 = por %p33, %p34
    %p36 = scmp.ne.s32.totalorder %s28, %s31
    %p37 = scmp.eq.s32.totalorder %s18, 0
    %p38 = por %p36, %p37
    %p39 = scmp.ne.s32.totalorder %s28, %s31
    %p40 = scmp.eq.s32.totalorder %s23, 1
    %p41 = por %p39, %p40
    %p42 = scmp.ne.s32.totalorder %s31, %s32
    %p43 = scmp.eq.s32.totalorder %s23, 0
    %p44 = por %p42, %p43
    %p45 = scmp.ne.s32.totalorder %s31, %s32
    %p46 = scmp.eq.s32.totalorder %s24, 1
    %p47 = por %p45, %p46
    %p49 = scmp.ne.s32.totalorder %s32, %s48
    %p50 = scmp.eq.s32.totalorder %s24, 0
    %p51 = por %p49, %p50
    %s52 = ssub.s32 %s18, %s25
    %p53 = scmp.eq.s32.totalorder %s52, 0
    %s55 = sadd.s32 %s54, 1
    %s56 = scalar_select %p53, %s54, %s55
    %p59 = pneg %p53
    %p60 = scmp.eq.s32.totalorder %s18, 1
    %p61 = por %p59, %p60
    %p62 = scmp.ne.s32.totalorder %s54, %s57
    %p63 = scmp.eq.s32.totalorder %s18, 0
    %p64 = por %p62, %p63
    %p65 = scmp.ne.s32.totalorder %s54, %s57
    %p66 = scmp.eq.s32.totalorder %s23, 1
    %p67 = por %p65, %p66
    %p68 = scmp.ne.s32.totalorder %s57, %s58
    %p69 = scmp.eq.s32.totalorder %s23, 0
    %p70 = por %p68, %p69
    %p71 = scmp.ne.s32.totalorder %s57, %s58
    %p72 = scmp.eq.s32.totalorder %s24, 1
    %p73 = por %p71, %p72
    %p75 = scmp.ne.s32.totalorder %s58, %s74
    %p76 = scmp.eq.s32.totalorder %s24, 0
    %p77 = por %p75, %p76
    %s79 = sadd.s32 %s78, 1
    %p82 = scmp.eq.s32.totalorder %s18, 1
    %p83 = scmp.ne.s32.totalorder %s78, %s80
    %p84 = scmp.eq.s32.totalorder %s18, 0
    %p85 = por %p83, %p84
    %p86 = scmp.ne.s32.totalorder %s78, %s80
    %p87 = scmp.eq.s32.totalorder %s23, 1
    %p88 = por %p86, %p87
    %p89 = scmp.ne.s32.totalorder %s80, %s81
    %p90 = scmp.eq.s32.totalorder %s23, 0
    %p91 = por %p89, %p90
    %p92 = scmp.ne.s32.totalorder %s80, %s81
    %p93 = scmp.eq.s32.totalorder %s24, 1
    %p94 = por %p92, %p93
    %p96 = scmp.ne.s32.totalorder %s81, %s95
    %p97 = scmp.eq.s32.totalorder %s24, 0
    %p98 = por %p96, %p97
    %s100 = sadd.s32 %s99, 1
    %p103 = scmp.eq.s32.totalorder %s18, 1
    %p104 = scmp.ne.s32.totalorder %s99, %s101
    %p105 = scmp.eq.s32.totalorder %s18, 0
    %p106 = por %p104, %p105
    %p107 = scmp.ne.s32.totalorder %s99, %s101
    %p108 = scmp.eq.s32.totalorder %s23, 1
    %p109 = por %p107, %p108
    %p110 = scmp.ne.s32.totalorder %s101, %s102
    %p111 = scmp.eq.s32.totalorder %s23, 0
    %p112 = por %p110, %p111
    %p113 = scmp.ne.s32.totalorder %s101, %s102
    %p114 = scmp.eq.s32.totalorder %s24, 1
    %p115 = por %p113, %p114
    %p117 = scmp.ne.s32.totalorder %s102, %s116
    %p118 = scmp.eq.s32.totalorder %s24, 0
    %p119 = por %p117, %p118
    %s121 = sadd.s32 %s120, 1
    %p124 = scmp.eq.s32.totalorder %s18, 1
    %p125 = scmp.ne.s32.totalorder %s120, %s122
    %p126 = scmp.eq.s32.totalorder %s18, 0
    %p127 = por %p125, %p126
    %p128 = scmp.ne.s32.totalorder %s120, %s122
    %p129 = scmp.eq.s32.totalorder %s23, 1
    %p130 = por %p128, %p129
    %p131 = scmp.ne.s32.totalorder %s122, %s123
    %p132 = scmp.eq.s32.totalorder %s23, 0
    %p133 = por %p131, %p132
    %p134 = scmp.ne.s32.totalorder %s122, %s123
    %p135 = scmp.eq.s32.totalorder %s24, 1
    %p136 = por %p134, %p135
    %p138 = scmp.ne.s32.totalorder %s123, %s137
    %p139 = scmp.eq.s32.totalorder %s24, 0
    %p140 = por %p138, %p139
    %s142 = sadd.s32 %s141, 1
    %p145 = scmp.eq.s32.totalorder %s18, 1
    %p146 = scmp.ne.s32.totalorder %s141, %s143
    %p147 = scmp.eq.s32.totalorder %s18, 0
    %p148 = por %p146, %p147
    %p149 = scmp.ne.s32.totalorder %s141, %s143
    %p150 = scmp.eq.s32.totalorder %s23, 1
    %p151 = por %p149, %p150
    %p152 = scmp.ne.s32.totalorder %s143, %s144
    %p153 = scmp.eq.s32.totalorder %s23, 0
    %p154 = por %p152, %p153
    %p155 = scmp.ne.s32.totalorder %s143, %s144
    %p156 = scmp.eq.s32.totalorder %s24, 1
    %p157 = por %p155, %p156
    %p159 = scmp.ne.s32.totalorder %s144, %s158
    %p160 = scmp.eq.s32.totalorder %s24, 0
    %p161 = por %p159, %p160
    %s163 = sadd.s32 %s162, 1
    %p166 = scmp.eq.s32.totalorder %s18, 1
    %p167 = scmp.ne.s32.totalorder %s162, %s164
    %p168 = scmp.eq.s32.totalorder %s18, 0
    %p169 = por %p167, %p168
    %p170 = scmp.ne.s32.totalorder %s162, %s164
    %p171 = scmp.eq.s32.totalorder %s23, 1
    %p172 = por %p170, %p171
    %p173 = scmp.ne.s32.totalorder %s164, %s165
    %p174 = scmp.eq.s32.totalorder %s23, 0
    %p175 = por %p173, %p174
    %p176 = scmp.ne.s32.totalorder %s164, %s165
    %p177 = scmp.eq.s32.totalorder %s24, 1
    %p178 = por %p176, %p177
    %p180 = scmp.ne.s32.totalorder %s165, %s179
    %p181 = scmp.eq.s32.totalorder %s24, 0
    %p182 = por %p180, %p181
    %s184 = sadd.s32 %s183, 1
    %p187 = scmp.eq.s32.totalorder %s18, 1
    %p188 = scmp.ne.s32.totalorder %s183, %s185
    %p189 = scmp.eq.s32.totalorder %s18, 0
    %p190 = por %p188, %p189
    %p191 = scmp.ne.s32.totalorder %s183, %s185
    %p192 = scmp.eq.s32.totalorder %s23, 1
    %p193 = por %p191, %p192
    %p194 = scmp.ne.s32.totalorder %s185, %s186
    %p195 = scmp.eq.s32.totalorder %s23, 0
    %p196 = por %p194, %p195
    %p197 = scmp.ne.s32.totalorder %s185, %s186
    %p198 = scmp.eq.s32.totalorder %s24, 1
    %p199 = por %p197, %p198
    %p201 = scmp.ne.s32.totalorder %s186, %s200
    %p202 = scmp.eq.s32.totalorder %s24, 0
    %p203 = por %p201, %p202
    %s205 = sadd.s32 %s204, 1
    %p208 = scmp.eq.s32.totalorder %s18, 1
    %p209 = scmp.ne.s32.totalorder %s204, %s206
    %p210 = scmp.eq.s32.totalorder %s18, 0
    %p211 = por %p209, %p210
    %p212 = scmp.ne.s32.totalorder %s204, %s206
    %p213 = scmp.eq.s32.totalorder %s23, 1
    %p214 = por %p212, %p213
    %p215 = scmp.ne.s32.totalorder %s206, %s207
    %p216 = scmp.eq.s32.totalorder %s23, 0
    %p217 = por %p215, %p216
    %p218 = scmp.ne.s32.totalorder %s206, %s207
    %p219 = scmp.eq.s32.totalorder %s24, 1
    %p220 = por %p218, %p219
    %p222 = scmp.ne.s32.totalorder %s207, %s221
    %p223 = scmp.eq.s32.totalorder %s24, 0
    %p224 = por %p222, %p223
    %s226 = sadd.s32 %s225, 1
    %p229 = scmp.eq.s32.totalorder %s18, 1
    %p230 = scmp.ne.s32.totalorder %s225, %s227
    %p231 = scmp.eq.s32.totalorder %s18, 0
    %p232 = por %p230, %p231
    %p233 = scmp.ne.s32.totalorder %s225, %s227
    %p234 = scmp.eq.s32.totalorder %s23, 1
    %p235 = por %p233, %p234
    %p236 = scmp.ne.s32.totalorder %s227, %s228
    %p237 = scmp.eq.s32.totalorder %s23, 0
    %p238 = por %p236, %p237
    %p239 = scmp.ne.s32.totalorder %s227, %s228
    %p240 = scmp.eq.s32.totalorder %s24, 1
    %p241 = por %p239, %p240
    %p243 = scmp.ne.s32.totalorder %s228, %s242
    %p244 = scmp.eq.s32.totalorder %s24, 0
    %p245 = por %p243, %p244
    %s246 = ssub.s32 %s18, %s25
    %p247 = scmp.eq.s32.totalorder %s246, 0
    %s249 = sadd.s32 %s248, 1
    %s250 = scalar_select %p247, %s248, %s249
    %p253 = pneg %p247
    %p254 = scmp.eq.s32.totalorder %s18, 1
    %p255 = por %p253, %p254
    %p256 = scmp.ne.s32.totalorder %s248, %s251
    %p257 = scmp.eq.s32.totalorder %s18, 0
    %p258 = por %p256, %p257
    %p259 = scmp.ne.s32.totalorder %s248, %s251
    %p260 = scmp.eq.s32.totalorder %s23, 1
    %p261 = por %p259, %p260
    %p262 = scmp.ne.s32.totalorder %s251, %s252
    %p263 = scmp.eq.s32.totalorder %s23, 0
    %p264 = por %p262, %p263
    %p265 = scmp.ne.s32.totalorder %s251, %s252
    %p266 = scmp.eq.s32.totalorder %s24, 1
    %p267 = por %p265, %p266
    %p269 = scmp.ne.s32.totalorder %s252, %s268
    %p270 = scmp.eq.s32.totalorder %s24, 0
    %p271 = por %p269, %p270
    %s272 = ssub.s32 %s18, %s25
    %p273 = scmp.eq.s32.totalorder %s272, 0
    %s275 = sadd.s32 %s274, 1
    %s276 = scalar_select %p273, %s274, %s275
    %p279 = pneg %p273
    %p280 = scmp.eq.s32.totalorder %s18, 1
    %p281 = por %p279, %p280
    %p282 = scmp.ne.s32.totalorder %s274, %s277
    %p283 = scmp.eq.s32.totalorder %s18, 0
    %p284 = por %p282, %p283
    %p285 = scmp.ne.s32.totalorder %s274, %s277
    %p286 = scmp.eq.s32.totalorder %s23, 1
    %p287 = por %p285, %p286
    %p288 = scmp.ne.s32.totalorder %s277, %s278
    %p289 = scmp.eq.s32.totalorder %s23, 0
    %p290 = por %p288, %p289
    %p291 = scmp.ne.s32.totalorder %s277, %s278
    %p292 = scmp.eq.s32.totalorder %s24, 1
    %p293 = por %p291, %p292
    %p295 = scmp.ne.s32.totalorder %s278, %s294
    %p296 = scmp.eq.s32.totalorder %s24, 0
    %p297 = por %p295, %p296
    %p298 = scmp.le.s32.totalorder 1, %s18
    %p299 = scmp.lt.s32.totalorder %s18, 3
    %p300 = pnand %p298, %p299
    %p301 = pneg %p300
    // Predicated region
    $region9: #{vae_forward.1} parent=5 // pred_check
      _
    $region10: #{vae_forward.1} parent=5 // pred_check_branch
      %303 = sbr.rel (%p300) target = $region12
    $region11: #{vae_forward.1} parent=5 // pred_region
      %s304 = ssub.s32 %s18, 1
      // Predicated region
      $region13: #{vae_forward.1} parent=11 // pred_check
        %p305 = pneg %p91
      $region14: #{vae_forward.1} parent=11 // pred_check_branch
        %307 = sbr.rel (%p305) target = $region16
      $region15: #{vae_forward.1} parent=11 // pred_region
        _
      $region16: #{vae_forward.1} parent=11 // pred_fallthru
        _
      // Predicated region
      $region17: #{vae_forward.1} parent=11 // pred_check
        %p308 = pneg %p112
      $region18: #{vae_forward.1} parent=11 // pred_check_branch
        %310 = sbr.rel (%p308) target = $region20
      $region19: #{vae_forward.1} parent=11 // pred_region
        _
      $region20: #{vae_forward.1} parent=11 // pred_fallthru
        _
      // Predicated region
      $region21: #{vae_forward.1} parent=11 // pred_check
        %p311 = pneg %p133
      $region22: #{vae_forward.1} parent=11 // pred_check_branch
        %313 = sbr.rel (%p311) target = $region24
      $region23: #{vae_forward.1} parent=11 // pred_region
        _
      $region24: #{vae_forward.1} parent=11 // pred_fallthru
        _
      // Predicated region
      $region25: #{vae_forward.1} parent=11 // pred_check
        %p314 = pneg %p154
      $region26: #{vae_forward.1} parent=11 // pred_check_branch
        %316 = sbr.rel (%p314) target = $region28
      $region27: #{vae_forward.1} parent=11 // pred_region
        _
      $region28: #{vae_forward.1} parent=11 // pred_fallthru
        _
      // Predicated region
      $region29: #{vae_forward.1} parent=11 // pred_check
        %p317 = pneg %p175
      $region30: #{vae_forward.1} parent=11 // pred_check_branch
        %319 = sbr.rel (%p317) target = $region32
      $region31: #{vae_forward.1} parent=11 // pred_region
        _
      $region32: #{vae_forward.1} parent=11 // pred_fallthru
        _
      // Predicated region
      $region33: #{vae_forward.1} parent=11 // pred_check
        %p320 = pneg %p196
      $region34: #{vae_forward.1} parent=11 // pred_check_branch
        %322 = sbr.rel (%p320) target = $region36
      $region35: #{vae_forward.1} parent=11 // pred_region
        _
      $region36: #{vae_forward.1} parent=11 // pred_fallthru
        _
      // Predicated region
      $region37: #{vae_forward.1} parent=11 // pred_check
        %p323 = pneg %p217
      $region38: #{vae_forward.1} parent=11 // pred_check_branch
        %325 = sbr.rel (%p323) target = $region40
      $region39: #{vae_forward.1} parent=11 // pred_region
        _
      $region40: #{vae_forward.1} parent=11 // pred_fallthru
        _
      // Predicated region
      $region41: #{vae_forward.1} parent=11 // pred_check
        %p326 = pneg %p238
      $region42: #{vae_forward.1} parent=11 // pred_check_branch
        %328 = sbr.rel (%p326) target = $region44
      $region43: #{vae_forward.1} parent=11 // pred_region
        _
      $region44: #{vae_forward.1} parent=11 // pred_fallthru
        _
    $region12: #{vae_forward.1} parent=5 // pred_fallthru
      _
    %p329 = scmp.lt.s32.totalorder %s18, 2
    // Predicated region
    $region45: #{vae_forward.1} parent=5 // pred_check
      %p330 = pneg %p329
    $region46: #{vae_forward.1} parent=5 // pred_check_branch
      %332 = sbr.rel (%p330) target = $region48
    $region47: #{vae_forward.1} parent=5 // pred_region
      // Predicated region
      $region49: #{vae_forward.1} parent=47 // pred_check
        %p333 = pneg %p38
      $region50: #{vae_forward.1} parent=47 // pred_check_branch
        %335 = sbr.rel (%p333) target = $region52
      $region51: #{vae_forward.1} parent=47 // pred_region
        %s336 = smul.u32 13, %s18
        %p337 = scmp.lt.s32.totalorder %s336, 25
        %s338 = scalar_select %p337, %s336, 25
        %s339 = smul.addr %s338, 2
        %s340 = smul.addr %s339, 4
        %s341 = scalar_lea.vmem %s0, %s340
        %s342 = smul.u32 13, %s18
      $region52: #{vae_forward.1} parent=47 // pred_fallthru
        _
      // Predicated region
      $region53: #{vae_forward.1} parent=47 // pred_check
        %p343 = pneg %p64
      $region54: #{vae_forward.1} parent=47 // pred_check_branch
        %345 = sbr.rel (%p343) target = $region56
      $region55: #{vae_forward.1} parent=47 // pred_region
        %s346 = smul.u32 13, %s18
        %p347 = scmp.lt.s32.totalorder %s346, 25
        %s348 = scalar_select %p347, %s346, 25
        %s349 = smul.addr %s348, 8
        %s350 = scalar_lea.vmem %s1, %s349
        %s351 = smul.u32 13, %s18
      $region56: #{vae_forward.1} parent=47 // pred_fallthru
        _
    $region48: #{vae_forward.1} parent=5 // pred_fallthru
      _
    %p352 = scmp.le.s32.totalorder 1, %s18
    %p353 = scmp.lt.s32.totalorder %s18, 3
    %p354 = pnand %p352, %p353
    %p355 = pneg %p354
    // Predicated region
    $region57: #{vae_forward.1} parent=5 // pred_check
      _
    $region58: #{vae_forward.1} parent=5 // pred_check_branch
      %357 = sbr.rel (%p354) target = $region60
    $region59: #{vae_forward.1} parent=5 // pred_region
      %s358 = ssub.s32 %s18, 1
      %s359 = smul.u32 13, %s23
      %p360 = scmp.lt.s32.totalorder %s359, 25
      %s361 = scalar_select %p360, %s359, 25
      %s362 = smul.addr %s361, 2
      %s363 = smul.addr %s362, 4
      %s364 = scalar_lea.vmem %s0, %s363
      %p365 = pneg %p44
      %p366 = pneg %p41
      %s367 = smul.u32 13, %s23
      %p368 = scmp.lt.s32.totalorder %s367, 25
      %s369 = scalar_select %p368, %s367, 25
      %s370 = smul.addr %s369, 8
      %s371 = scalar_lea.vmem %s1, %s370
      %p372 = pneg %p70
      %p373 = pneg %p67
      %p374 = pneg %p91
      %p375 = pneg %p88
      %p376 = pneg %p112
      %p377 = pneg %p109
      %p378 = pneg %p133
      %p379 = pneg %p130
      %p380 = pneg %p154
      %p381 = pneg %p151
      %p382 = pneg %p175
      %p383 = pneg %p172
      %p384 = pneg %p196
      %p385 = pneg %p193
      %p386 = pneg %p217
      %p387 = pneg %p214
      %p388 = pneg %p238
      %p389 = pneg %p235
      %p390 = pneg %p264
      %p391 = pneg %p261
      %s392 = smul.u32 13, %s23
      %p393 = scmp.lt.s32.totalorder %s392, 25
      %s394 = scalar_select %p393, %s392, 25
      %s395 = smul.addr %s394, 2
      %s396 = smul.addr %s395, 8
      %s397 = scalar_lea.vmem %s10, %s396
      %p398 = pneg %p290
      %p399 = pneg %p287
      %s400 = smul.u32 13, %s23
      %p401 = scmp.lt.s32.totalorder %s400, 25
      %s402 = scalar_select %p401, %s400, 25
      %s403 = smul.addr %s402, 8
      %s404 = scalar_lea.vmem %s11, %s403
      %s405 = smul.u32 13, %s23
      %p406 = scmp.lt.s32.totalorder %s405, 25
      %s407 = scalar_select %p406, %s405, 25
      %s408 = smul.addr %s407, 2
      %s409 = smul.addr %s408, 4
      %s410 = scalar_lea.vmem %s0, %s409
      %s411 = smul.u32 13, %s23
      %s412 = smul.u32 13, %s23
      %p413 = scmp.lt.s32.totalorder %s412, 25
      %s414 = scalar_select %p413, %s412, 25
      %s415 = smul.addr %s414, 8
      %s416 = scalar_lea.vmem %s1, %s415
      %s417 = smul.u32 13, %s23
      %s418 = smul.u32 13, %s23
      %p419 = scmp.lt.s32.totalorder %s418, 25
      %s420 = scalar_select %p419, %s418, 25
      %s421 = smul.addr %s420, 2
      %s422 = smul.addr %s421, 8
      %s423 = scalar_lea.vmem %s10, %s422
      %s424 = smul.u32 13, %s23
      %s425 = smul.u32 13, %s23
      %p426 = scmp.lt.s32.totalorder %s425, 25
      %s427 = scalar_select %p426, %s425, 25
      %s428 = smul.addr %s427, 8
      %s429 = scalar_lea.vmem %s11, %s428
      %s430 = smul.u32 13, %s23
      %v432 = vld [vmem:[%s410] sm:$0xff]
      %v433 = vld [vmem:[%s410 + $0x8] sm:$0xff]
      %v434 = vld [vmem:[%s410 + $0x10] sm:$0xff]
      %v435 = vld [vmem:[%s410 + $0x18] sm:$0xff]
      %v436 = vld [vmem:[%s410 + $0x20] sm:$0xff]
      %v437 = vld [vmem:[%s410 + $0x28] sm:$0xff]
      %v438 = vld [vmem:[%s410 + $0x30] sm:$0xff]
      %v439 = vld [vmem:[%s410 + $0x38] sm:$0xff]
      %v440 = vld [vmem:[%s410 + $0x40] sm:$0xff]
      %v441 = vld [vmem:[%s410 + $0x48] sm:$0xff]
      %v442 = vld [vmem:[%s410 + $0x50] sm:$0xff]
      %v443 = vld [vmem:[%s410 + $0x58] sm:$0xff]
      %v444 = vld [vmem:[%s410 + $0x60] sm:$0xff]
      %v445 = vld [vmem:[%s2] sm:$0xff]
      %v446 = vld [vmem:[%s2 + $0x8] sm:$0xff]
      %v447 = vld [vmem:[%s2 + $0x10] sm:$0xff]
      %v448 = vld [vmem:[%s2 + $0x18] sm:$0xff]
      %v449 = vld [vmem:[%s2 + $0x20] sm:$0xff]
      %v450 = vld [vmem:[%s2 + $0x28] sm:$0xff]
      %v451 = vld [vmem:[%s2 + $0x30] sm:$0xff]
      %v452 = vld [vmem:[%s2 + $0x38] sm:$0xff]
      %v453 = vld [vmem:[%s2 + $0x40] sm:$0xff]
      %v454 = vld [vmem:[%s2 + $0x48] sm:$0xff]
      %v455 = vld [vmem:[%s2 + $0x50] sm:$0xff]
      %v456 = vld [vmem:[%s2 + $0x58] sm:$0xff]
      %v457 = vld [vmem:[%s2 + $0x60] sm:$0xff]
      %v458 = vld [vmem:[%s2 + $0x68] sm:$0xff]
      %v459 = vld [vmem:[%s2 + $0x70] sm:$0xff]
      %v460 = vld [vmem:[%s2 + $0x78] sm:$0xff]
      %v461 = vld [vmem:[%s2 + $0x80] sm:$0xff]
      %v462 = vld [vmem:[%s2 + $0x88] sm:$0xff]
      %v463 = vld [vmem:[%s2 + $0x90] sm:$0xff]
      %v464 = vld [vmem:[%s2 + $0x98] sm:$0xff]
      %v465 = vld [vmem:[%s2 + $0xa0] sm:$0xff]
      %v466 = vld [vmem:[%s2 + $0xa8] sm:$0xff]
      %v467 = vld [vmem:[%s2 + $0xb0] sm:$0xff]
      %v468 = vld [vmem:[%s2 + $0xb8] sm:$0xff]
      %v469 = vld [vmem:[%s2 + $0xc0] sm:$0xff]
      %v470 = vld [vmem:[%s2 + $0xc8] sm:$0xff]
      %v471 = vld [vmem:[%s2 + $0xd0] sm:$0xff]
      %v472 = vld [vmem:[%s2 + $0xd8] sm:$0xff]
      %v473 = vld [vmem:[%s2 + $0xe0] sm:$0xff]
      %v474 = vld [vmem:[%s2 + $0xe8] sm:$0xff]
      %v475 = vld [vmem:[%s2 + $0xf0] sm:$0xff]
      %v476 = vld [vmem:[%s2 + $0xf8] sm:$0xff]
      %v477 = vld [vmem:[%s2 + $0x100] sm:$0xff]
      %v478 = vld [vmem:[%s2 + $0x108] sm:$0xff]
      %v479 = vld [vmem:[%s2 + $0x110] sm:$0xff]
      %v480 = vld [vmem:[%s2 + $0x118] sm:$0xff]
      %v481 = vld [vmem:[%s2 + $0x120] sm:$0xff]
      %v482 = vld [vmem:[%s2 + $0x128] sm:$0xff]
      %v483 = vld [vmem:[%s2 + $0x130] sm:$0xff]
      %v484 = vld [vmem:[%s2 + $0x138] sm:$0xff]
      %v485 = vld [vmem:[%s2 + $0x140] sm:$0xff]
      %v486 = vld [vmem:[%s2 + $0x148] sm:$0xff]
      %v487 = vld [vmem:[%s2 + $0x150] sm:$0xff]
      %v488 = vld [vmem:[%s2 + $0x158] sm:$0xff]
      %v489 = vld [vmem:[%s2 + $0x160] sm:$0xff]
      %v490 = vld [vmem:[%s2 + $0x168] sm:$0xff]
      %v491 = vld [vmem:[%s2 + $0x170] sm:$0xff]
      %v492 = vld [vmem:[%s2 + $0x178] sm:$0xff]
      %v493 = vld [vmem:[%s2 + $0x180] sm:$0xff]
      %v494 = vld [vmem:[%s2 + $0x188] sm:$0xff]
      %v495 = vld [vmem:[%s2 + $0x190] sm:$0xff]
      %v496 = vld [vmem:[%s2 + $0x198] sm:$0xff]
      %v497 = vld [vmem:[%s2 + $0x1a0] sm:$0xff]
      %v498 = vld [vmem:[%s2 + $0x1a8] sm:$0xff]
      %v499 = vld [vmem:[%s2 + $0x1b0] sm:$0xff]
      %v500 = vld [vmem:[%s2 + $0x1b8] sm:$0xff]
      %v501 = vld [vmem:[%s2 + $0x1c0] sm:$0xff]
      %v502 = vld [vmem:[%s2 + $0x1c8] sm:$0xff]
      %v503 = vld [vmem:[%s2 + $0x1d0] sm:$0xff]
      %v504 = vld [vmem:[%s2 + $0x1d8] sm:$0xff]
      %v505 = vld [vmem:[%s2 + $0x1e0] sm:$0xff]
      %v506 = vld [vmem:[%s2 + $0x1e8] sm:$0xff]
      %v507 = vld [vmem:[%s2 + $0x1f0] sm:$0xff]
      %v508 = vld [vmem:[%s2 + $0x1f8] sm:$0xff]
      %v509 = vld [vmem:[%s3] sm:$0xf]
      %v511 = vperm.slane %v509, 0
      %v512 = vperm.slane %v509, 1
      %v513 = vperm.slane %v509, 2
      %v514 = vperm.slane %v509, 3
      %v532 = vunpack.c.l.b16 %v432
      %v533 = vunpack.c.h.b16 %v432
      %v534 = vunpack.c.l.b16 %v433
      %v535 = vunpack.c.h.b16 %v433
      %v536 = vunpack.c.l.b16 %v434
      %v537 = vunpack.c.h.b16 %v434
      %v538 = vunpack.c.l.b16 %v435
      %v539 = vunpack.c.h.b16 %v435
      %v540 = vunpack.c.l.b16 %v436
      %v541 = vunpack.c.h.b16 %v436
      %v542 = vunpack.c.l.b16 %v437
      %v543 = vunpack.c.h.b16 %v437
      %v544 = vunpack.c.l.b16 %v438
      %v545 = vunpack.c.h.b16 %v438
      %v546 = vunpack.c.l.b16 %v439
      %v547 = vunpack.c.h.b16 %v439
      %v548 = vunpack.c.l.b16 %v440
      %v549 = vunpack.c.h.b16 %v440
      %v550 = vunpack.c.l.b16 %v441
      %v551 = vunpack.c.h.b16 %v441
      %v552 = vunpack.c.l.b16 %v442
      %v553 = vunpack.c.h.b16 %v442
      %v554 = vunpack.c.l.b16 %v443
      %v555 = vunpack.c.h.b16 %v443
      %v556 = vunpack.c.l.b16 %v444
      %v557 = vunpack.c.h.b16 %v444
      %v558 = vpack.c.b16 %v534, %v532
      %v559 = vpack.c.b16 %v535, %v533
      %v560 = vpack.c.b16 %v538, %v536
      %v561 = vpack.c.b16 %v539, %v537
      %v562 = vpack.c.b16 %v542, %v540
      %v563 = vpack.c.b16 %v543, %v541
      %v564 = vpack.c.b16 %v546, %v544
      %v565 = vpack.c.b16 %v547, %v545
      %v566 = vpack.c.b16 %v550, %v548
      %v567 = vpack.c.b16 %v551, %v549
      %v568 = vpack.c.b16 %v554, %v552
      %v569 = vpack.c.b16 %v555, %v553
      %v570 = vpack.c.b16 %v556, %v556
      %v571 = vpack.c.b16 %v557, %v557
      %v650 = vunpack.c.l.b16 %v445
      %v651 = vunpack.c.h.b16 %v445
      %v652 = vunpack.c.l.b16 %v446
      %v653 = vunpack.c.h.b16 %v446
      %v654 = vunpack.c.l.b16 %v447
      %v655 = vunpack.c.h.b16 %v447
      %v656 = vunpack.c.l.b16 %v448
      %v657 = vunpack.c.h.b16 %v448
      %v658 = vunpack.c.l.b16 %v449
      %v659 = vunpack.c.h.b16 %v449
      %v660 = vunpack.c.l.b16 %v450
      %v661 = vunpack.c.h.b16 %v450
      %v662 = vunpack.c.l.b16 %v451
      %v663 = vunpack.c.h.b16 %v451
      %v664 = vunpack.c.l.b16 %v452
      %v665 = vunpack.c.h.b16 %v452
      %v666 = vunpack.c.l.b16 %v453
      %v667 = vunpack.c.h.b16 %v453
      %v668 = vunpack.c.l.b16 %v454
      %v669 = vunpack.c.h.b16 %v454
      %v670 = vunpack.c.l.b16 %v455
      %v671 = vunpack.c.h.b16 %v455
      %v672 = vunpack.c.l.b16 %v456
      %v673 = vunpack.c.h.b16 %v456
      %v674 = vunpack.c.l.b16 %v457
      %v675 = vunpack.c.h.b16 %v457
      %v676 = vunpack.c.l.b16 %v458
      %v677 = vunpack.c.h.b16 %v458
      %v678 = vunpack.c.l.b16 %v459
      %v679 = vunpack.c.h.b16 %v459
      %v680 = vunpack.c.l.b16 %v460
      %v681 = vunpack.c.h.b16 %v460
      %v682 = vunpack.c.l.b16 %v461
      %v683 = vunpack.c.h.b16 %v461
      %v684 = vunpack.c.l.b16 %v462
      %v685 = vunpack.c.h.b16 %v462
      %v686 = vunpack.c.l.b16 %v463
      %v687 = vunpack.c.h.b16 %v463
      %v688 = vunpack.c.l.b16 %v464
      %v689 = vunpack.c.h.b16 %v464
      %v690 = vunpack.c.l.b16 %v465
      %v691 = vunpack.c.h.b16 %v465
      %v692 = vunpack.c.l.b16 %v466
      %v693 = vunpack.c.h.b16 %v466
      %v694 = vunpack.c.l.b16 %v467
      %v695 = vunpack.c.h.b16 %v467
      %v696 = vunpack.c.l.b16 %v468
      %v697 = vunpack.c.h.b16 %v468
      %v698 = vunpack.c.l.b16 %v469
      %v699 = vunpack.c.h.b16 %v469
      %v700 = vunpack.c.l.b16 %v470
      %v701 = vunpack.c.h.b16 %v470
      %v702 = vunpack.c.l.b16 %v471
      %v703 = vunpack.c.h.b16 %v471
      %v704 = vunpack.c.l.b16 %v472
      %v705 = vunpack.c.h.b16 %v472
      %v706 = vunpack.c.l.b16 %v473
      %v707 = vunpack.c.h.b16 %v473
      %v708 = vunpack.c.l.b16 %v474
      %v709 = vunpack.c.h.b16 %v474
      %v710 = vunpack.c.l.b16 %v475
      %v711 = vunpack.c.h.b16 %v475
      %v712 = vunpack.c.l.b16 %v476
      %v713 = vunpack.c.h.b16 %v476
      %v714 = vunpack.c.l.b16 %v477
      %v715 = vunpack.c.h.b16 %v477
      %v716 = vunpack.c.l.b16 %v478
      %v717 = vunpack.c.h.b16 %v478
      %v718 = vunpack.c.l.b16 %v479
      %v719 = vunpack.c.h.b16 %v479
      %v720 = vunpack.c.l.b16 %v480
      %v721 = vunpack.c.h.b16 %v480
      %v722 = vunpack.c.l.b16 %v481
      %v723 = vunpack.c.h.b16 %v481
      %v724 = vunpack.c.l.b16 %v482
      %v725 = vunpack.c.h.b16 %v482
      %v726 = vunpack.c.l.b16 %v483
      %v727 = vunpack.c.h.b16 %v483
      %v728 = vunpack.c.l.b16 %v484
      %v729 = vunpack.c.h.b16 %v484
      %v730 = vunpack.c.l.b16 %v485
      %v731 = vunpack.c.h.b16 %v485
      %v732 = vunpack.c.l.b16 %v486
      %v733 = vunpack.c.h.b16 %v486
      %v734 = vunpack.c.l.b16 %v487
      %v735 = vunpack.c.h.b16 %v487
      %v736 = vunpack.c.l.b16 %v488
      %v737 = vunpack.c.h.b16 %v488
      %v738 = vunpack.c.l.b16 %v489
      %v739 = vunpack.c.h.b16 %v489
      %v740 = vunpack.c.l.b16 %v490
      %v741 = vunpack.c.h.b16 %v490
      %v742 = vunpack.c.l.b16 %v491
      %v743 = vunpack.c.h.b16 %v491
      %v744 = vunpack.c.l.b16 %v492
      %v745 = vunpack.c.h.b16 %v492
      %v746 = vunpack.c.l.b16 %v493
      %v747 = vunpack.c.h.b16 %v493
      %v748 = vunpack.c.l.b16 %v494
      %v749 = vunpack.c.h.b16 %v494
      %v750 = vunpack.c.l.b16 %v495
      %v751 = vunpack.c.h.b16 %v495
      %v752 = vunpack.c.l.b16 %v496
      %v753 = vunpack.c.h.b16 %v496
      %v754 = vunpack.c.l.b16 %v497
      %v755 = vunpack.c.h.b16 %v497
      %v756 = vunpack.c.l.b16 %v498
      %v757 = vunpack.c.h.b16 %v498
      %v758 = vunpack.c.l.b16 %v499
      %v759 = vunpack.c.h.b16 %v499
      %v760 = vunpack.c.l.b16 %v500
      %v761 = vunpack.c.h.b16 %v500
      %v762 = vunpack.c.l.b16 %v501
      %v763 = vunpack.c.h.b16 %v501
      %v764 = vunpack.c.l.b16 %v502
      %v765 = vunpack.c.h.b16 %v502
      %v766 = vunpack.c.l.b16 %v503
      %v767 = vunpack.c.h.b16 %v503
      %v768 = vunpack.c.l.b16 %v504
      %v769 = vunpack.c.h.b16 %v504
      %v770 = vunpack.c.l.b16 %v505
      %v771 = vunpack.c.h.b16 %v505
      %v772 = vunpack.c.l.b16 %v506
      %v773 = vunpack.c.h.b16 %v506
      %v774 = vunpack.c.l.b16 %v507
      %v775 = vunpack.c.h.b16 %v507
      %v776 = vunpack.c.l.b16 %v508
      %v777 = vunpack.c.h.b16 %v508
      %v778 = vpack.c.b16 %v654, %v650
      %v779 = vpack.c.b16 %v655, %v651
      %v780 = vpack.c.b16 %v656, %v652
      %v781 = vpack.c.b16 %v657, %v653
      %v782 = vpack.c.b16 %v662, %v658
      %v783 = vpack.c.b16 %v663, %v659
      %v784 = vpack.c.b16 %v664, %v660
      %v785 = vpack.c.b16 %v665, %v661
      %v786 = vpack.c.b16 %v670, %v666
      %v787 = vpack.c.b16 %v671, %v667
      %v788 = vpack.c.b16 %v672, %v668
      %v789 = vpack.c.b16 %v673, %v669
      %v790 = vpack.c.b16 %v678, %v674
      %v791 = vpack.c.b16 %v679, %v675
      %v792 = vpack.c.b16 %v680, %v676
      %v793 = vpack.c.b16 %v681, %v677
      %v794 = vpack.c.b16 %v686, %v682
      %v795 = vpack.c.b16 %v687, %v683
      %v796 = vpack.c.b16 %v688, %v684
      %v797 = vpack.c.b16 %v689, %v685
      %v798 = vpack.c.b16 %v694, %v690
      %v799 = vpack.c.b16 %v695, %v691
      %v800 = vpack.c.b16 %v696, %v692
      %v801 = vpack.c.b16 %v697, %v693
      %v802 = vpack.c.b16 %v702, %v698
      %v803 = vpack.c.b16 %v703, %v699
      %v804 = vpack.c.b16 %v704, %v700
      %v805 = vpack.c.b16 %v705, %v701
      %v806 = vpack.c.b16 %v710, %v706
      %v807 = vpack.c.b16 %v711, %v707
      %v808 = vpack.c.b16 %v712, %v708
      %v809 = vpack.c.b16 %v713, %v709
      %v810 = vpack.c.b16 %v718, %v714
      %v811 = vpack.c.b16 %v719, %v715
      %v812 = vpack.c.b16 %v720, %v716
      %v813 = vpack.c.b16 %v721, %v717
      %v814 = vpack.c.b16 %v726, %v722
      %v815 = vpack.c.b16 %v727, %v723
      %v816 = vpack.c.b16 %v728, %v724
      %v817 = vpack.c.b16 %v729, %v725
      %v818 = vpack.c.b16 %v734, %v730
      %v819 = vpack.c.b16 %v735, %v731
      %v820 = vpack.c.b16 %v736, %v732
      %v821 = vpack.c.b16 %v737, %v733
      %v822 = vpack.c.b16 %v742, %v738
      %v823 = vpack.c.b16 %v743, %v739
      %v824 = vpack.c.b16 %v744, %v740
      %v825 = vpack.c.b16 %v745, %v741
      %v826 = vpack.c.b16 %v750, %v746
      %v827 = vpack.c.b16 %v751, %v747
      %v828 = vpack.c.b16 %v752, %v748
      %v829 = vpack.c.b16 %v753, %v749
      %v830 = vpack.c.b16 %v758, %v754
      %v831 = vpack.c.b16 %v759, %v755
      %v832 = vpack.c.b16 %v760, %v756
      %v833 = vpack.c.b16 %v761, %v757
      %v834 = vpack.c.b16 %v766, %v762
      %v835 = vpack.c.b16 %v767, %v763
      %v836 = vpack.c.b16 %v768, %v764
      %v837 = vpack.c.b16 %v769, %v765
      %v838 = vpack.c.b16 %v774, %v770
      %v839 = vpack.c.b16 %v775, %v771
      %v840 = vpack.c.b16 %v776, %v772
      %v841 = vpack.c.b16 %v777, %v773
      %906 = vmatpush.bf16.msra.mxu0 %v806
      %907 = vmatpush.bf16.msra.mxu0 %v802
      %908 = vmatpush.bf16.msra.mxu0 %v798
      %909 = vmatpush.bf16.msra.mxu0 %v794
      %910 = vmatpush.bf16.msra.mxu0 %v790
      %911 = vmatpush.bf16.msra.mxu0 %v786
      %912 = vmatpush.bf16.msra.mxu0 %v782
      %913 = vmatpush.bf16.msra.mxu0 %v778
      %914 = vmatmul.bf16.gmra.mxu0 %v558
      %v915 = vpop.f32.mrf.mxu0
      %v916 = vadd.f32 %v511, %v915
      %v917 = vpop.f32.mrf.mxu0
      %v918 = vadd.f32 %v511, %v917
      %919 = vmatmul.bf16.gmra.mxu0 %v560
      %v920 = vpop.f32.mrf.mxu0
      %v921 = vadd.f32 %v511, %v920
      %v922 = vpop.f32.mrf.mxu0
      %v923 = vadd.f32 %v511, %v922
      %924 = vmatmul.bf16.gmra.mxu0 %v562
      %v925 = vpop.f32.mrf.mxu0
      %v926 = vadd.f32 %v511, %v925
      %v927 = vpop.f32.mrf.mxu0
      %v928 = vadd.f32 %v511, %v927
      %929 = vmatmul.bf16.gmra.mxu0 %v564
      %v930 = vpop.f32.mrf.mxu0
      %v931 = vadd.f32 %v511, %v930
      %v932 = vpop.f32.mrf.mxu0
      %v933 = vadd.f32 %v511, %v932
      %934 = vmatmul.bf16.gmra.mxu0 %v566
      %v935 = vpop.f32.mrf.mxu0
      %v936 = vadd.f32 %v511, %v935
      %v937 = vpop.f32.mrf.mxu0
      %v938 = vadd.f32 %v511, %v937
      %939 = vmatmul.bf16.gmra.mxu0 %v568
      %v940 = vpop.f32.mrf.mxu0
      %v941 = vadd.f32 %v511, %v940
      %v942 = vpop.f32.mrf.mxu0
      %v943 = vadd.f32 %v511, %v942
      %944 = vmatmul.bf16.gmra.mxu0 %v570
      %v945 = vpop.f32.mrf.mxu0
      %v946 = vadd.f32 %v511, %v945
      %v947 = vpop.f32.mrf.mxu0
      %948 = vdwg.mxu0
      %949 = vmatpush.bf16.msra.mxu0 %v838
      %950 = vmatpush.bf16.msra.mxu0 %v834
      %951 = vmatpush.bf16.msra.mxu0 %v830
      %952 = vmatpush.bf16.msra.mxu0 %v826
      %953 = vmatpush.bf16.msra.mxu0 %v822
      %954 = vmatpush.bf16.msra.mxu0 %v818
      %955 = vmatpush.bf16.msra.mxu0 %v814
      %956 = vmatpush.bf16.msra.mxu0 %v810
      %957 = vmatmul.bf16.gmra.mxu0 %v559
      %v958 = vpop.f32.mrf.mxu0
      %v959 = vadd.f32 %v916, %v958
      %v960 = vpop.f32.mrf.mxu0
      %v961 = vadd.f32 %v918, %v960
      %962 = vmatmul.bf16.gmra.mxu0 %v561
      %v963 = vpop.f32.mrf.mxu0
      %v964 = vadd.f32 %v921, %v963
      %v965 = vpop.f32.mrf.mxu0
      %v966 = vadd.f32 %v923, %v965
      %967 = vmatmul.bf16.gmra.mxu0 %v563
      %v968 = vpop.f32.mrf.mxu0
      %v969 = vadd.f32 %v926, %v968
      %v970 = vpop.f32.mrf.mxu0
      %v971 = vadd.f32 %v928, %v970
      %972 = vmatmul.bf16.gmra.mxu0 %v565
      %v973 = vpop.f32.mrf.mxu0
      %v974 = vadd.f32 %v931, %v973
      %v975 = vpop.f32.mrf.mxu0
      %v976 = vadd.f32 %v933, %v975
      %977 = vmatmul.bf16.gmra.mxu0 %v567
      %v978 = vpop.f32.mrf.mxu0
      %v979 = vadd.f32 %v936, %v978
      %v980 = vpop.f32.mrf.mxu0
      %v981 = vadd.f32 %v938, %v980
      %982 = vmatmul.bf16.gmra.mxu0 %v569
      %v983 = vpop.f32.mrf.mxu0
      %v984 = vadd.f32 %v941, %v983
      %v985 = vpop.f32.mrf.mxu0
      %v986 = vadd.f32 %v943, %v985
      %987 = vmatmul.bf16.gmra.mxu0 %v571
      %v988 = vpop.f32.mrf.mxu0
      %v989 = vadd.f32 %v946, %v988
      %v990 = vpop.f32.mrf.mxu0
      %991 = vdwg.mxu0
      %992 = vmatpush.bf16.msra.mxu0 %v807
      %993 = vmatpush.bf16.msra.mxu0 %v803
      %994 = vmatpush.bf16.msra.mxu0 %v799
      %995 = vmatpush.bf16.msra.mxu0 %v795
      %996 = vmatpush.bf16.msra.mxu0 %v791
      %997 = vmatpush.bf16.msra.mxu0 %v787
      %998 = vmatpush.bf16.msra.mxu0 %v783
      %999 = vmatpush.bf16.msra.mxu0 %v779
      %1000 = vmatmul.bf16.gmra.mxu0 %v558
      %v1001 = vpop.f32.mrf.mxu0
      %v1002 = vadd.f32 %v512, %v1001
      %v1003 = vpop.f32.mrf.mxu0
      %v1004 = vadd.f32 %v512, %v1003
      %1005 = vmatmul.bf16.gmra.mxu0 %v560
      %v1006 = vpop.f32.mrf.mxu0
      %v1007 = vadd.f32 %v512, %v1006
      %v1008 = vpop.f32.mrf.mxu0
      %v1009 = vadd.f32 %v512, %v1008
      %1010 = vmatmul.bf16.gmra.mxu0 %v562
      %v1011 = vpop.f32.mrf.mxu0
      %v1012 = vadd.f32 %v512, %v1011
      %v1013 = vpop.f32.mrf.mxu0
      %v1014 = vadd.f32 %v512, %v1013
      %1015 = vmatmul.bf16.gmra.mxu0 %v564
      %v1016 = vpop.f32.mrf.mxu0
      %v1017 = vadd.f32 %v512, %v1016
      %v1018 = vpop.f32.mrf.mxu0
      %v1019 = vadd.f32 %v512, %v1018
      %1020 = vmatmul.bf16.gmra.mxu0 %v566
      %v1021 = vpop.f32.mrf.mxu0
      %v1022 = vadd.f32 %v512, %v1021
      %v1023 = vpop.f32.mrf.mxu0
      %v1024 = vadd.f32 %v512, %v1023
      %1025 = vmatmul.bf16.gmra.mxu0 %v568
      %v1026 = vpop.f32.mrf.mxu0
      %v1027 = vadd.f32 %v512, %v1026
      %v1028 = vpop.f32.mrf.mxu0
      %v1029 = vadd.f32 %v512, %v1028
      %1030 = vmatmul.bf16.gmra.mxu0 %v570
      %v1031 = vpop.f32.mrf.mxu0
      %v1032 = vadd.f32 %v512, %v1031
      %v1033 = vpop.f32.mrf.mxu0
      %1034 = vdwg.mxu0
      %1035 = vmatpush.bf16.msra.mxu0 %v839
      %1036 = vmatpush.bf16.msra.mxu0 %v835
      %1037 = vmatpush.bf16.msra.mxu0 %v831
      %1038 = vmatpush.bf16.msra.mxu0 %v827
      %1039 = vmatpush.bf16.msra.mxu0 %v823
      %1040 = vmatpush.bf16.msra.mxu0 %v819
      %1041 = vmatpush.bf16.msra.mxu0 %v815
      %1042 = vmatpush.bf16.msra.mxu0 %v811
      %1043 = vmatmul.bf16.gmra.mxu0 %v559
      %v1044 = vpop.f32.mrf.mxu0
      %v1045 = vadd.f32 %v1002, %v1044
      %v1046 = vpop.f32.mrf.mxu0
      %v1047 = vadd.f32 %v1004, %v1046
      %1048 = vmatmul.bf16.gmra.mxu0 %v561
      %v1049 = vpop.f32.mrf.mxu0
      %v1050 = vadd.f32 %v1007, %v1049
      %v1051 = vpop.f32.mrf.mxu0
      %v1052 = vadd.f32 %v1009, %v1051
      %1053 = vmatmul.bf16.gmra.mxu0 %v563
      %v1054 = vpop.f32.mrf.mxu0
      %v1055 = vadd.f32 %v1012, %v1054
      %v1056 = vpop.f32.mrf.mxu0
      %v1057 = vadd.f32 %v1014, %v1056
      %1058 = vmatmul.bf16.gmra.mxu0 %v565
      %v1059 = vpop.f32.mrf.mxu0
      %v1060 = vadd.f32 %v1017, %v1059
      %v1061 = vpop.f32.mrf.mxu0
      %v1062 = vadd.f32 %v1019, %v1061
      %1063 = vmatmul.bf16.gmra.mxu0 %v567
      %v1064 = vpop.f32.mrf.mxu0
      %v1065 = vadd.f32 %v1022, %v1064
      %v1066 = vpop.f32.mrf.mxu0
      %v1067 = vadd.f32 %v1024, %v1066
      %1068 = vmatmul.bf16.gmra.mxu0 %v569
      %v1069 = vpop.f32.mrf.mxu0
      %v1070 = vadd.f32 %v1027, %v1069
      %v1071 = vpop.f32.mrf.mxu0
      %v1072 = vadd.f32 %v1029, %v1071
      %1073 = vmatmul.bf16.gmra.mxu0 %v571
      %v1074 = vpop.f32.mrf.mxu0
      %v1075 = vadd.f32 %v1032, %v1074
      %v1076 = vpop.f32.mrf.mxu0
      %1077 = vdwg.mxu0
      %1078 = vmatpush.bf16.msra.mxu0 %v808
      %1079 = vmatpush.bf16.msra.mxu0 %v804
      %1080 = vmatpush.bf16.msra.mxu0 %v800
      %1081 = vmatpush.bf16.msra.mxu0 %v796
      %1082 = vmatpush.bf16.msra.mxu0 %v792
      %1083 = vmatpush.bf16.msra.mxu0 %v788
      %1084 = vmatpush.bf16.msra.mxu0 %v784
      %1085 = vmatpush.bf16.msra.mxu0 %v780
      %1086 = vmatmul.bf16.gmra.mxu0 %v558
      %v1087 = vpop.f32.mrf.mxu0
      %v1088 = vadd.f32 %v513, %v1087
      %v1089 = vpop.f32.mrf.mxu0
      %v1090 = vadd.f32 %v513, %v1089
      %1091 = vmatmul.bf16.gmra.mxu0 %v560
      %v1092 = vpop.f32.mrf.mxu0
      %v1093 = vadd.f32 %v513, %v1092
      %v1094 = vpop.f32.mrf.mxu0
      %v1095 = vadd.f32 %v513, %v1094
      %1096 = vmatmul.bf16.gmra.mxu0 %v562
      %v1097 = vpop.f32.mrf.mxu0
      %v1098 = vadd.f32 %v513, %v1097
      %v1099 = vpop.f32.mrf.mxu0
      %v1100 = vadd.f32 %v513, %v1099
      %1101 = vmatmul.bf16.gmra.mxu0 %v564
      %v1102 = vpop.f32.mrf.mxu0
      %v1103 = vadd.f32 %v513, %v1102
      %v1104 = vpop.f32.mrf.mxu0
      %v1105 = vadd.f32 %v513, %v1104
      %1106 = vmatmul.bf16.gmra.mxu0 %v566
      %v1107 = vpop.f32.mrf.mxu0
      %v1108 = vadd.f32 %v513, %v1107
      %v1109 = vpop.f32.mrf.mxu0
      %v1110 = vadd.f32 %v513, %v1109
      %1111 = vmatmul.bf16.gmra.mxu0 %v568
      %v1112 = vpop.f32.mrf.mxu0
      %v1113 = vadd.f32 %v513, %v1112
      %v1114 = vpop.f32.mrf.mxu0
      %v1115 = vadd.f32 %v513, %v1114
      %1116 = vmatmul.bf16.gmra.mxu0 %v570
      %v1117 = vpop.f32.mrf.mxu0
      %v1118 = vadd.f32 %v513, %v1117
      %v1119 = vpop.f32.mrf.mxu0
      %1120 = vdwg.mxu0
      %1121 = vmatpush.bf16.msra.mxu0 %v840
      %1122 = vmatpush.bf16.msra.mxu0 %v836
      %1123 = vmatpush.bf16.msra.mxu0 %v832
      %1124 = vmatpush.bf16.msra.mxu0 %v828
      %1125 = vmatpush.bf16.msra.mxu0 %v824
      %1126 = vmatpush.bf16.msra.mxu0 %v820
      %1127 = vmatpush.bf16.msra.mxu0 %v816
      %1128 = vmatpush.bf16.msra.mxu0 %v812
      %1129 = vmatmul.bf16.gmra.mxu0 %v559
      %v1130 = vpop.f32.mrf.mxu0
      %v1131 = vadd.f32 %v1088, %v1130
      %v1132 = vpop.f32.mrf.mxu0
      %v1133 = vadd.f32 %v1090, %v1132
      %1134 = vmatmul.bf16.gmra.mxu0 %v561
      %v1135 = vpop.f32.mrf.mxu0
      %v1136 = vadd.f32 %v1093, %v1135
      %v1137 = vpop.f32.mrf.mxu0
      %v1138 = vadd.f32 %v1095, %v1137
      %1139 = vmatmul.bf16.gmra.mxu0 %v563
      %v1140 = vpop.f32.mrf.mxu0
      %v1141 = vadd.f32 %v1098, %v1140
      %v1142 = vpop.f32.mrf.mxu0
      %v1143 = vadd.f32 %v1100, %v1142
      %1144 = vmatmul.bf16.gmra.mxu0 %v565
      %v1145 = vpop.f32.mrf.mxu0
      %v1146 = vadd.f32 %v1103, %v1145
      %v1147 = vpop.f32.mrf.mxu0
      %v1148 = vadd.f32 %v1105, %v1147
      %1149 = vmatmul.bf16.gmra.mxu0 %v567
      %v1150 = vpop.f32.mrf.mxu0
      %v1151 = vadd.f32 %v1108, %v1150
      %v1152 = vpop.f32.mrf.mxu0
      %v1153 = vadd.f32 %v1110, %v1152
      %1154 = vmatmul.bf16.gmra.mxu0 %v569
      %v1155 = vpop.f32.mrf.mxu0
      %v1156 = vadd.f32 %v1113, %v1155
      %v1157 = vpop.f32.mrf.mxu0
      %v1158 = vadd.f32 %v1115, %v1157
      %1159 = vmatmul.bf16.gmra.mxu0 %v571
      %v1160 = vpop.f32.mrf.mxu0
      %v1161 = vadd.f32 %v1118, %v1160
      %v1162 = vpop.f32.mrf.mxu0
      %1163 = vdwg.mxu0
      %1164 = vmatpush.bf16.msra.mxu0 %v809
      %1165 = vmatpush.bf16.msra.mxu0 %v805
      %1166 = vmatpush.bf16.msra.mxu0 %v801
      %1167 = vmatpush.bf16.msra.mxu0 %v797
      %1168 = vmatpush.bf16.msra.mxu0 %v793
      %1169 = vmatpush.bf16.msra.mxu0 %v789
      %1170 = vmatpush.bf16.msra.mxu0 %v785
      %1171 = vmatpush.bf16.msra.mxu0 %v781
      %1172 = vmatmul.bf16.gmra.mxu0 %v558
      %v1173 = vpop.f32.mrf.mxu0
      %v1174 = vadd.f32 %v514, %v1173
      %v1175 = vpop.f32.mrf.mxu0
      %v1176 = vadd.f32 %v514, %v1175
      %1177 = vmatmul.bf16.gmra.mxu0 %v560
      %v1178 = vpop.f32.mrf.mxu0
      %v1179 = vadd.f32 %v514, %v1178
      %v1180 = vpop.f32.mrf.mxu0
      %v1181 = vadd.f32 %v514, %v1180
      %1182 = vmatmul.bf16.gmra.mxu0 %v562
      %v1183 = vpop.f32.mrf.mxu0
      %v1184 = vadd.f32 %v514, %v1183
      %v1185 = vpop.f32.mrf.mxu0
      %v1186 = vadd.f32 %v514, %v1185
      %1187 = vmatmul.bf16.gmra.mxu0 %v564
      %v1188 = vpop.f32.mrf.mxu0
      %v1189 = vadd.f32 %v514, %v1188
      %v1190 = vpop.f32.mrf.mxu0
      %v1191 = vadd.f32 %v514, %v1190
      %1192 = vmatmul.bf16.gmra.mxu0 %v566
      %v1193 = vpop.f32.mrf.mxu0
      %v1194 = vadd.f32 %v514, %v1193
      %v1195 = vpop.f32.mrf.mxu0
      %v1196 = vadd.f32 %v514, %v1195
      %1197 = vmatmul.bf16.gmra.mxu0 %v568
      %v1198 = vpop.f32.mrf.mxu0
      %v1199 = vadd.f32 %v514, %v1198
      %v1200 = vpop.f32.mrf.mxu0
      %v1201 = vadd.f32 %v514, %v1200
      %1202 = vmatmul.bf16.gmra.mxu0 %v570
      %v1203 = vpop.f32.mrf.mxu0
      %v1204 = vadd.f32 %v514, %v1203
      %v1205 = vpop.f32.mrf.mxu0
      %1206 = vdwg.mxu0
      %1207 = vmatpush.bf16.msra.mxu0 %v841
      %1208 = vmatpush.bf16.msra.mxu0 %v837
      %1209 = vmatpush.bf16.msra.mxu0 %v833
      %1210 = vmatpush.bf16.msra.mxu0 %v829
      %1211 = vmatpush.bf16.msra.mxu0 %v825
      %1212 = vmatpush.bf16.msra.mxu0 %v821
      %1213 = vmatpush.bf16.msra.mxu0 %v817
      %1214 = vmatpush.bf16.msra.mxu0 %v813
      %1215 = vmatmul.bf16.gmra.mxu0 %v559
      %v1216 = vpop.f32.mrf.mxu0
      %v1217 = vadd.f32 %v1174, %v1216
      %v1218 = vpop.f32.mrf.mxu0
      %v1219 = vadd.f32 %v1176, %v1218
      %1220 = vmatmul.bf16.gmra.mxu0 %v561
      %v1221 = vpop.f32.mrf.mxu0
      %v1222 = vadd.f32 %v1179, %v1221
      %v1223 = vpop.f32.mrf.mxu0
      %v1224 = vadd.f32 %v1181, %v1223
      %1225 = vmatmul.bf16.gmra.mxu0 %v563
      %v1226 = vpop.f32.mrf.mxu0
      %v1227 = vadd.f32 %v1184, %v1226
      %v1228 = vpop.f32.mrf.mxu0
      %v1229 = vadd.f32 %v1186, %v1228
      %1230 = vmatmul.bf16.gmra.mxu0 %v565
      %v1231 = vpop.f32.mrf.mxu0
      %v1232 = vadd.f32 %v1189, %v1231
      %v1233 = vpop.f32.mrf.mxu0
      %v1234 = vadd.f32 %v1191, %v1233
      %1235 = vmatmul.bf16.gmra.mxu0 %v567
      %v1236 = vpop.f32.mrf.mxu0
      %v1237 = vadd.f32 %v1194, %v1236
      %v1238 = vpop.f32.mrf.mxu0
      %v1239 = vadd.f32 %v1196, %v1238
      %1240 = vmatmul.bf16.gmra.mxu0 %v569
      %v1241 = vpop.f32.mrf.mxu0
      %v1242 = vadd.f32 %v1199, %v1241
      %v1243 = vpop.f32.mrf.mxu0
      %v1244 = vadd.f32 %v1201, %v1243
      %1245 = vmatmul.bf16.gmra.mxu0 %v571
      %v1246 = vpop.f32.mrf.mxu0
      %v1247 = vadd.f32 %v1204, %v1246
      %v1248 = vpop.f32.mrf.mxu0
      %1249 = vdwg.mxu0
      %v1250 = vmax.f32 %v959, 0.0
      %v1251 = vmax.f32 %v1045, 0.0
      %v1252 = vmax.f32 %v1131, 0.0
      %v1253 = vmax.f32 %v1217, 0.0
      %v1254 = vmax.f32 %v961, 0.0
      %v1255 = vmax.f32 %v1047, 0.0
      %v1256 = vmax.f32 %v1133, 0.0
      %v1257 = vmax.f32 %v1219, 0.0
      %v1258 = vmax.f32 %v964, 0.0
      %v1259 = vmax.f32 %v1050, 0.0
      %v1260 = vmax.f32 %v1136, 0.0
      %v1261 = vmax.f32 %v1222, 0.0
      %v1262 = vmax.f32 %v966, 0.0
      %v1263 = vmax.f32 %v1052, 0.0
      %v1264 = vmax.f32 %v1138, 0.0
      %v1265 = vmax.f32 %v1224, 0.0
      %v1266 = vmax.f32 %v969, 0.0
      %v1267 = vmax.f32 %v1055, 0.0
      %v1268 = vmax.f32 %v1141, 0.0
      %v1269 = vmax.f32 %v1227, 0.0
      %v1270 = vmax.f32 %v971, 0.0
      %v1271 = vmax.f32 %v1057, 0.0
      %v1272 = vmax.f32 %v1143, 0.0
      %v1273 = vmax.f32 %v1229, 0.0
      %v1274 = vmax.f32 %v974, 0.0
      %v1275 = vmax.f32 %v1060, 0.0
      %v1276 = vmax.f32 %v1146, 0.0
      %v1277 = vmax.f32 %v1232, 0.0
      %v1278 = vmax.f32 %v976, 0.0
      %v1279 = vmax.f32 %v1062, 0.0
      %v1280 = vmax.f32 %v1148, 0.0
      %v1281 = vmax.f32 %v1234, 0.0
      %v1282 = vmax.f32 %v979, 0.0
      %v1283 = vmax.f32 %v1065, 0.0
      %v1284 = vmax.f32 %v1151, 0.0
      %v1285 = vmax.f32 %v1237, 0.0
      %v1286 = vmax.f32 %v981, 0.0
      %v1287 = vmax.f32 %v1067, 0.0
      %v1288 = vmax.f32 %v1153, 0.0
      %v1289 = vmax.f32 %v1239, 0.0
      %v1290 = vmax.f32 %v984, 0.0
      %v1291 = vmax.f32 %v1070, 0.0
      %v1292 = vmax.f32 %v1156, 0.0
      %v1293 = vmax.f32 %v1242, 0.0
      %v1294 = vmax.f32 %v986, 0.0
      %v1295 = vmax.f32 %v1072, 0.0
      %v1296 = vmax.f32 %v1158, 0.0
      %v1297 = vmax.f32 %v1244, 0.0
      %v1298 = vmax.f32 %v989, 0.0
      %v1299 = vmax.f32 %v1075, 0.0
      %v1300 = vmax.f32 %v1161, 0.0
      %v1301 = vmax.f32 %v1247, 0.0
      %v1302 = vpack.c.bf16 %v1254, %v1250
      %v1303 = vpack.c.bf16 %v1255, %v1251
      %v1304 = vpack.c.bf16 %v1256, %v1252
      %v1305 = vpack.c.bf16 %v1257, %v1253
      %v1306 = vpack.c.bf16 %v1262, %v1258
      %v1307 = vpack.c.bf16 %v1263, %v1259
      %v1308 = vpack.c.bf16 %v1264, %v1260
      %v1309 = vpack.c.bf16 %v1265, %v1261
      %v1310 = vpack.c.bf16 %v1270, %v1266
      %v1311 = vpack.c.bf16 %v1271, %v1267
      %v1312 = vpack.c.bf16 %v1272, %v1268
      %v1313 = vpack.c.bf16 %v1273, %v1269
      %v1314 = vpack.c.bf16 %v1278, %v1274
      %v1315 = vpack.c.bf16 %v1279, %v1275
      %v1316 = vpack.c.bf16 %v1280, %v1276
      %v1317 = vpack.c.bf16 %v1281, %v1277
      %v1318 = vpack.c.bf16 %v1286, %v1282
      %v1319 = vpack.c.bf16 %v1287, %v1283
      %v1320 = vpack.c.bf16 %v1288, %v1284
      %v1321 = vpack.c.bf16 %v1289, %v1285
      %v1322 = vpack.c.bf16 %v1294, %v1290
      %v1323 = vpack.c.bf16 %v1295, %v1291
      %v1324 = vpack.c.bf16 %v1296, %v1292
      %v1325 = vpack.c.bf16 %v1297, %v1293
      %v1326 = vpack.c.bf16 %v1298, %v1298
      %v1327 = vpack.c.bf16 %v1299, %v1299
      %v1328 = vpack.c.bf16 %v1300, %v1300
      %v1329 = vpack.c.bf16 %v1301, %v1301
      %v1330 = vld [vmem:[%s4] sm:$0xf]
      %v1331 = vld [vmem:[%s4 + $0x4] sm:$0xf]
      %v1332 = vld [vmem:[%s4 + $0x8] sm:$0xf]
      %v1333 = vld [vmem:[%s4 + $0xc] sm:$0xf]
      %v1334 = vld [vmem:[%s4 + $0x10] sm:$0xf]
      %v1335 = vld [vmem:[%s4 + $0x14] sm:$0xf]
      %v1336 = vld [vmem:[%s4 + $0x18] sm:$0xf]
      %v1337 = vld [vmem:[%s4 + $0x1c] sm:$0xf]
      %v1338 = vld [vmem:[%s4 + $0x20] sm:$0xf]
      %v1339 = vld [vmem:[%s4 + $0x24] sm:$0xf]
      %v1340 = vld [vmem:[%s4 + $0x28] sm:$0xf]
      %v1341 = vld [vmem:[%s4 + $0x2c] sm:$0xf]
      %v1342 = vld [vmem:[%s4 + $0x30] sm:$0xf]
      %v1343 = vld [vmem:[%s4 + $0x34] sm:$0xf]
      %v1344 = vld [vmem:[%s4 + $0x38] sm:$0xf]
      %v1345 = vld [vmem:[%s4 + $0x3c] sm:$0xf]
      %v1346 = vld [vmem:[%s4 + $0x40] sm:$0xf]
      %v1347 = vld [vmem:[%s4 + $0x44] sm:$0xf]
      %v1348 = vld [vmem:[%s4 + $0x48] sm:$0xf]
      %v1349 = vld [vmem:[%s4 + $0x4c] sm:$0xf]
      %v1350 = vld [vmem:[%s4 + $0x50] sm:$0xf]
      %v1351 = vld [vmem:[%s4 + $0x54] sm:$0xf]
      %v1352 = vld [vmem:[%s4 + $0x58] sm:$0xf]
      %v1353 = vld [vmem:[%s4 + $0x5c] sm:$0xf]
      %v1354 = vld [vmem:[%s4 + $0x60] sm:$0xf]
      %v1355 = vld [vmem:[%s4 + $0x64] sm:$0xf]
      %v1356 = vld [vmem:[%s4 + $0x68] sm:$0xf]
      %v1357 = vld [vmem:[%s4 + $0x6c] sm:$0xf]
      %v1358 = vld [vmem:[%s4 + $0x70] sm:$0xf]
      %v1359 = vld [vmem:[%s4 + $0x74] sm:$0xf]
      %v1360 = vld [vmem:[%s4 + $0x78] sm:$0xf]
      %v1361 = vld [vmem:[%s4 + $0x7c] sm:$0xf]
      %v1362 = vld [vmem:[%s4 + $0x80] sm:$0xf]
      %v1363 = vld [vmem:[%s4 + $0x84] sm:$0xf]
      %v1364 = vld [vmem:[%s4 + $0x88] sm:$0xf]
      %v1365 = vld [vmem:[%s4 + $0x8c] sm:$0xf]
      %v1366 = vld [vmem:[%s4 + $0x90] sm:$0xf]
      %v1367 = vld [vmem:[%s4 + $0x94] sm:$0xf]
      %v1368 = vld [vmem:[%s4 + $0x98] sm:$0xf]
      %v1369 = vld [vmem:[%s4 + $0x9c] sm:$0xf]
      %v1370 = vld [vmem:[%s4 + $0xa0] sm:$0xf]
      %v1371 = vld [vmem:[%s4 + $0xa4] sm:$0xf]
      %v1372 = vld [vmem:[%s4 + $0xa8] sm:$0xf]
      %v1373 = vld [vmem:[%s4 + $0xac] sm:$0xf]
      %v1374 = vld [vmem:[%s4 + $0xb0] sm:$0xf]
      %v1375 = vld [vmem:[%s4 + $0xb4] sm:$0xf]
      %v1376 = vld [vmem:[%s4 + $0xb8] sm:$0xf]
      %v1377 = vld [vmem:[%s4 + $0xbc] sm:$0xf]
      %v1378 = vld [vmem:[%s4 + $0xc0] sm:$0xf]
      %v1379 = vld [vmem:[%s4 + $0xc4] sm:$0xf]
      %v1380 = vld [vmem:[%s4 + $0xc8] sm:$0xf]
      %v1381 = vld [vmem:[%s4 + $0xcc] sm:$0xf]
      %v1382 = vld [vmem:[%s4 + $0xd0] sm:$0xf]
      %v1383 = vld [vmem:[%s4 + $0xd4] sm:$0xf]
      %v1384 = vld [vmem:[%s4 + $0xd8] sm:$0xf]
      %v1385 = vld [vmem:[%s4 + $0xdc] sm:$0xf]
      %v1386 = vld [vmem:[%s4 + $0xe0] sm:$0xf]
      %v1387 = vld [vmem:[%s4 + $0xe4] sm:$0xf]
      %v1388 = vld [vmem:[%s4 + $0xe8] sm:$0xf]
      %v1389 = vld [vmem:[%s4 + $0xec] sm:$0xf]
      %v1390 = vld [vmem:[%s4 + $0xf0] sm:$0xf]
      %v1391 = vld [vmem:[%s4 + $0xf4] sm:$0xf]
      %v1392 = vld [vmem:[%s4 + $0xf8] sm:$0xf]
      %v1393 = vld [vmem:[%s4 + $0xfc] sm:$0xf]
      %v1394 = vld [vmem:[%s5] sm:$0x1]
      %v1396 = vperm.slane %v1394, 0
      %v1462 = vunpack.c.l.b16 %v1330
      %v1463 = vunpack.c.l.b16 %v1331
      %v1464 = vunpack.c.l.b16 %v1332
      %v1465 = vunpack.c.l.b16 %v1333
      %v1466 = vunpack.c.l.b16 %v1334
      %v1467 = vunpack.c.l.b16 %v1335
      %v1468 = vunpack.c.l.b16 %v1336
      %v1469 = vunpack.c.l.b16 %v1337
      %v1470 = vunpack.c.l.b16 %v1338
      %v1471 = vunpack.c.l.b16 %v1339
      %v1472 = vunpack.c.l.b16 %v1340
      %v1473 = vunpack.c.l.b16 %v1341
      %v1474 = vunpack.c.l.b16 %v1342
      %v1475 = vunpack.c.l.b16 %v1343
      %v1476 = vunpack.c.l.b16 %v1344
      %v1477 = vunpack.c.l.b16 %v1345
      %v1478 = vunpack.c.l.b16 %v1346
      %v1479 = vunpack.c.l.b16 %v1347
      %v1480 = vunpack.c.l.b16 %v1348
      %v1481 = vunpack.c.l.b16 %v1349
      %v1482 = vunpack.c.l.b16 %v1350
      %v1483 = vunpack.c.l.b16 %v1351
      %v1484 = vunpack.c.l.b16 %v1352
      %v1485 = vunpack.c.l.b16 %v1353
      %v1486 = vunpack.c.l.b16 %v1354
      %v1487 = vunpack.c.l.b16 %v1355
      %v1488 = vunpack.c.l.b16 %v1356
      %v1489 = vunpack.c.l.b16 %v1357
      %v1490 = vunpack.c.l.b16 %v1358
      %v1491 = vunpack.c.l.b16 %v1359
      %v1492 = vunpack.c.l.b16 %v1360
      %v1493 = vunpack.c.l.b16 %v1361
      %v1494 = vunpack.c.l.b16 %v1362
      %v1495 = vunpack.c.l.b16 %v1363
      %v1496 = vunpack.c.l.b16 %v1364
      %v1497 = vunpack.c.l.b16 %v1365
      %v1498 = vunpack.c.l.b16 %v1366
      %v1499 = vunpack.c.l.b16 %v1367
      %v1500 = vunpack.c.l.b16 %v1368
      %v1501 = vunpack.c.l.b16 %v1369
      %v1502 = vunpack.c.l.b16 %v1370
      %v1503 = vunpack.c.l.b16 %v1371
      %v1504 = vunpack.c.l.b16 %v1372
      %v1505 = vunpack.c.l.b16 %v1373
      %v1506 = vunpack.c.l.b16 %v1374
      %v1507 = vunpack.c.l.b16 %v1375
      %v1508 = vunpack.c.l.b16 %v1376
      %v1509 = vunpack.c.l.b16 %v1377
      %v1510 = vunpack.c.l.b16 %v1378
      %v1511 = vunpack.c.l.b16 %v1379
      %v1512 = vunpack.c.l.b16 %v1380
      %v1513 = vunpack.c.l.b16 %v1381
      %v1514 = vunpack.c.l.b16 %v1382
      %v1515 = vunpack.c.l.b16 %v1383
      %v1516 = vunpack.c.l.b16 %v1384
      %v1517 = vunpack.c.l.b16 %v1385
      %v1518 = vunpack.c.l.b16 %v1386
      %v1519 = vunpack.c.l.b16 %v1387
      %v1520 = vunpack.c.l.b16 %v1388
      %v1521 = vunpack.c.l.b16 %v1389
      %v1522 = vunpack.c.l.b16 %v1390
      %v1523 = vunpack.c.l.b16 %v1391
      %v1524 = vunpack.c.l.b16 %v1392
      %v1525 = vunpack.c.l.b16 %v1393
      %v1526 = vpack.c.b16 %v1463, %v1462
      %v1527 = vpack.c.b16 %v1465, %v1464
      %v1528 = vpack.c.b16 %v1467, %v1466
      %v1529 = vpack.c.b16 %v1469, %v1468
      %v1530 = vpack.c.b16 %v1471, %v1470
      %v1531 = vpack.c.b16 %v1473, %v1472
      %v1532 = vpack.c.b16 %v1475, %v1474
      %v1533 = vpack.c.b16 %v1477, %v1476
      %v1534 = vpack.c.b16 %v1479, %v1478
      %v1535 = vpack.c.b16 %v1481, %v1480
      %v1536 = vpack.c.b16 %v1483, %v1482
      %v1537 = vpack.c.b16 %v1485, %v1484
      %v1538 = vpack.c.b16 %v1487, %v1486
      %v1539 = vpack.c.b16 %v1489, %v1488
      %v1540 = vpack.c.b16 %v1491, %v1490
      %v1541 = vpack.c.b16 %v1493, %v1492
      %v1542 = vpack.c.b16 %v1495, %v1494
      %v1543 = vpack.c.b16 %v1497, %v1496
      %v1544 = vpack.c.b16 %v1499, %v1498
      %v1545 = vpack.c.b16 %v1501, %v1500
      %v1546 = vpack.c.b16 %v1503, %v1502
      %v1547 = vpack.c.b16 %v1505, %v1504
      %v1548 = vpack.c.b16 %v1507, %v1506
      %v1549 = vpack.c.b16 %v1509, %v1508
      %v1550 = vpack.c.b16 %v1511, %v1510
      %v1551 = vpack.c.b16 %v1513, %v1512
      %v1552 = vpack.c.b16 %v1515, %v1514
      %v1553 = vpack.c.b16 %v1517, %v1516
      %v1554 = vpack.c.b16 %v1519, %v1518
      %v1555 = vpack.c.b16 %v1521, %v1520
      %v1556 = vpack.c.b16 %v1523, %v1522
      %v1557 = vpack.c.b16 %v1525, %v1524
      %1590 = vmatpush.bf16.msra.mxu0 %v1533
      %1591 = vmatpush.bf16.msra.mxu0 %v1532
      %1592 = vmatpush.bf16.msra.mxu0 %v1531
      %1593 = vmatpush.bf16.msra.mxu0 %v1530
      %1594 = vmatpush.bf16.msra.mxu0 %v1529
      %1595 = vmatpush.bf16.msra.mxu0 %v1528
      %1596 = vmatpush.bf16.msra.mxu0 %v1527
      %1597 = vmatpush.bf16.msra.mxu0 %v1526
      %1598 = vmatmul.bf16.gmra.mxu0 %v1302
      %v1599 = vpop.f32.mrf.mxu0
      %v1600 = vadd.f32 %v1396, %v1599
      %v1601 = vpop.f32.mrf.mxu0
      %v1602 = vadd.f32 %v1396, %v1601
      %1603 = vmatmul.bf16.gmra.mxu0 %v1306
      %v1604 = vpop.f32.mrf.mxu0
      %v1605 = vadd.f32 %v1396, %v1604
      %v1606 = vpop.f32.mrf.mxu0
      %v1607 = vadd.f32 %v1396, %v1606
      %1608 = vmatmul.bf16.gmra.mxu0 %v1310
      %v1609 = vpop.f32.mrf.mxu0
      %v1610 = vadd.f32 %v1396, %v1609
      %v1611 = vpop.f32.mrf.mxu0
      %v1612 = vadd.f32 %v1396, %v1611
      %1613 = vmatmul.bf16.gmra.mxu0 %v1314
      %v1614 = vpop.f32.mrf.mxu0
      %v1615 = vadd.f32 %v1396, %v1614
      %v1616 = vpop.f32.mrf.mxu0
      %v1617 = vadd.f32 %v1396, %v1616
      %1618 = vmatmul.bf16.gmra.mxu0 %v1318
      %v1619 = vpop.f32.mrf.mxu0
      %v1620 = vadd.f32 %v1396, %v1619
      %v1621 = vpop.f32.mrf.mxu0
      %v1622 = vadd.f32 %v1396, %v1621
      %1623 = vmatmul.bf16.gmra.mxu0 %v1322
      %v1624 = vpop.f32.mrf.mxu0
      %v1625 = vadd.f32 %v1396, %v1624
      %v1626 = vpop.f32.mrf.mxu0
      %v1627 = vadd.f32 %v1396, %v1626
      %1628 = vmatmul.bf16.gmra.mxu0 %v1326
      %v1629 = vpop.f32.mrf.mxu0
      %v1630 = vadd.f32 %v1396, %v1629
      %v1631 = vpop.f32.mrf.mxu0
      %1632 = vdwg.mxu0
      %1633 = vmatpush.bf16.msra.mxu0 %v1541
      %1634 = vmatpush.bf16.msra.mxu0 %v1540
      %1635 = vmatpush.bf16.msra.mxu0 %v1539
      %1636 = vmatpush.bf16.msra.mxu0 %v1538
      %1637 = vmatpush.bf16.msra.mxu0 %v1537
      %1638 = vmatpush.bf16.msra.mxu0 %v1536
      %1639 = vmatpush.bf16.msra.mxu0 %v1535
      %1640 = vmatpush.bf16.msra.mxu0 %v1534
      %1641 = vmatmul.bf16.gmra.mxu0 %v1303
      %v1642 = vpop.f32.mrf.mxu0
      %v1643 = vadd.f32 %v1600, %v1642
      %v1644 = vpop.f32.mrf.mxu0
      %v1645 = vadd.f32 %v1602, %v1644
      %1646 = vmatmul.bf16.gmra.mxu0 %v1307
      %v1647 = vpop.f32.mrf.mxu0
      %v1648 = vadd.f32 %v1605, %v1647
      %v1649 = vpop.f32.mrf.mxu0
      %v1650 = vadd.f32 %v1607, %v1649
      %1651 = vmatmul.bf16.gmra.mxu0 %v1311
      %v1652 = vpop.f32.mrf.mxu0
      %v1653 = vadd.f32 %v1610, %v1652
      %v1654 = vpop.f32.mrf.mxu0
      %v1655 = vadd.f32 %v1612, %v1654
      %1656 = vmatmul.bf16.gmra.mxu0 %v1315
      %v1657 = vpop.f32.mrf.mxu0
      %v1658 = vadd.f32 %v1615, %v1657
      %v1659 = vpop.f32.mrf.mxu0
      %v1660 = vadd.f32 %v1617, %v1659
      %1661 = vmatmul.bf16.gmra.mxu0 %v1319
      %v1662 = vpop.f32.mrf.mxu0
      %v1663 = vadd.f32 %v1620, %v1662
      %v1664 = vpop.f32.mrf.mxu0
      %v1665 = vadd.f32 %v1622, %v1664
      %1666 = vmatmul.bf16.gmra.mxu0 %v1323
      %v1667 = vpop.f32.mrf.mxu0
      %v1668 = vadd.f32 %v1625, %v1667
      %v1669 = vpop.f32.mrf.mxu0
      %v1670 = vadd.f32 %v1627, %v1669
      %1671 = vmatmul.bf16.gmra.mxu0 %v1327
      %v1672 = vpop.f32.mrf.mxu0
      %v1673 = vadd.f32 %v1630, %v1672
      %v1674 = vpop.f32.mrf.mxu0
      %1675 = vdwg.mxu0
      %1676 = vmatpush.bf16.msra.mxu0 %v1549
      %1677 = vmatpush.bf16.msra.mxu0 %v1548
      %1678 = vmatpush.bf16.msra.mxu0 %v1547
      %1679 = vmatpush.bf16.msra.mxu0 %v1546
      %1680 = vmatpush.bf16.msra.mxu0 %v1545
      %1681 = vmatpush.bf16.msra.mxu0 %v1544
      %1682 = vmatpush.bf16.msra.mxu0 %v1543
      %1683 = vmatpush.bf16.msra.mxu0 %v1542
      %1684 = vmatmul.bf16.gmra.mxu0 %v1304
      %v1685 = vpop.f32.mrf.mxu0
      %v1686 = vadd.f32 %v1643, %v1685
      %v1687 = vpop.f32.mrf.mxu0
      %v1688 = vadd.f32 %v1645, %v1687
      %1689 = vmatmul.bf16.gmra.mxu0 %v1308
      %v1690 = vpop.f32.mrf.mxu0
      %v1691 = vadd.f32 %v1648, %v1690
      %v1692 = vpop.f32.mrf.mxu0
      %v1693 = vadd.f32 %v1650, %v1692
      %1694 = vmatmul.bf16.gmra.mxu0 %v1312
      %v1695 = vpop.f32.mrf.mxu0
      %v1696 = vadd.f32 %v1653, %v1695
      %v1697 = vpop.f32.mrf.mxu0
      %v1698 = vadd.f32 %v1655, %v1697
      %1699 = vmatmul.bf16.gmra.mxu0 %v1316
      %v1700 = vpop.f32.mrf.mxu0
      %v1701 = vadd.f32 %v1658, %v1700
      %v1702 = vpop.f32.mrf.mxu0
      %v1703 = vadd.f32 %v1660, %v1702
      %1704 = vmatmul.bf16.gmra.mxu0 %v1320
      %v1705 = vpop.f32.mrf.mxu0
      %v1706 = vadd.f32 %v1663, %v1705
      %v1707 = vpop.f32.mrf.mxu0
      %v1708 = vadd.f32 %v1665, %v1707
      %1709 = vmatmul.bf16.gmra.mxu0 %v1324
      %v1710 = vpop.f32.mrf.mxu0
      %v1711 = vadd.f32 %v1668, %v1710
      %v1712 = vpop.f32.mrf.mxu0
      %v1713 = vadd.f32 %v1670, %v1712
      %1714 = vmatmul.bf16.gmra.mxu0 %v1328
      %v1715 = vpop.f32.mrf.mxu0
      %v1716 = vadd.f32 %v1673, %v1715
      %v1717 = vpop.f32.mrf.mxu0
      %1718 = vdwg.mxu0
      %1719 = vmatpush.bf16.msra.mxu0 %v1557
      %1720 = vmatpush.bf16.msra.mxu0 %v1556
      %1721 = vmatpush.bf16.msra.mxu0 %v1555
      %1722 = vmatpush.bf16.msra.mxu0 %v1554
      %1723 = vmatpush.bf16.msra.mxu0 %v1553
      %1724 = vmatpush.bf16.msra.mxu0 %v1552
      %1725 = vmatpush.bf16.msra.mxu0 %v1551
      %1726 = vmatpush.bf16.msra.mxu0 %v1550
      %1727 = vmatmul.bf16.gmra.mxu0 %v1305
      %v1728 = vpop.f32.mrf.mxu0
      %v1729 = vadd.f32 %v1686, %v1728
      %v1730 = vpop.f32.mrf.mxu0
      %v1731 = vadd.f32 %v1688, %v1730
      %1732 = vmatmul.bf16.gmra.mxu0 %v1309
      %v1733 = vpop.f32.mrf.mxu0
      %v1734 = vadd.f32 %v1691, %v1733
      %v1735 = vpop.f32.mrf.mxu0
      %v1736 = vadd.f32 %v1693, %v1735
      %1737 = vmatmul.bf16.gmra.mxu0 %v1313
      %v1738 = vpop.f32.mrf.mxu0
      %v1739 = vadd.f32 %v1696, %v1738
      %v1740 = vpop.f32.mrf.mxu0
      %v1741 = vadd.f32 %v1698, %v1740
      %1742 = vmatmul.bf16.gmra.mxu0 %v1317
      %v1743 = vpop.f32.mrf.mxu0
      %v1744 = vadd.f32 %v1701, %v1743
      %v1745 = vpop.f32.mrf.mxu0
      %v1746 = vadd.f32 %v1703, %v1745
      %1747 = vmatmul.bf16.gmra.mxu0 %v1321
      %v1748 = vpop.f32.mrf.mxu0
      %v1749 = vadd.f32 %v1706, %v1748
      %v1750 = vpop.f32.mrf.mxu0
      %v1751 = vadd.f32 %v1708, %v1750
      %1752 = vmatmul.bf16.gmra.mxu0 %v1325
      %v1753 = vpop.f32.mrf.mxu0
      %v1754 = vadd.f32 %v1711, %v1753
      %v1755 = vpop.f32.mrf.mxu0
      %v1756 = vadd.f32 %v1713, %v1755
      %1757 = vmatmul.bf16.gmra.mxu0 %v1329
      %v1758 = vpop.f32.mrf.mxu0
      %v1759 = vadd.f32 %v1716, %v1758
      %v1760 = vpop.f32.mrf.mxu0
      %1761 = vdwg.mxu0
      %v1762 = vmul.f32 %v1729, 0.5
      %v1763 = vmul.f32 %v1731, 0.5
      %v1764 = vmul.f32 %v1734, 0.5
      %v1765 = vmul.f32 %v1736, 0.5
      %v1766 = vmul.f32 %v1739, 0.5
      %v1767 = vmul.f32 %v1741, 0.5
      %v1768 = vmul.f32 %v1744, 0.5
      %v1769 = vmul.f32 %v1746, 0.5
      %v1770 = vmul.f32 %v1749, 0.5
      %v1771 = vmul.f32 %v1751, 0.5
      %v1772 = vmul.f32 %v1754, 0.5
      %v1773 = vmul.f32 %v1756, 0.5
      %v1774 = vmul.f32 %v1759, 0.5
      %v1775 = vmul.f32 %v1762, 1.442695
      %v1776 = vpow.pop %v1775
      %v1777 = vmul.f32 %v1763, 1.442695
      %v1778 = vpow.pop %v1777
      %v1779 = vmul.f32 %v1764, 1.442695
      %v1780 = vpow.pop %v1779
      %v1781 = vmul.f32 %v1765, 1.442695
      %v1782 = vpow.pop %v1781
      %v1783 = vmul.f32 %v1766, 1.442695
      %v1784 = vpow.pop %v1783
      %v1785 = vmul.f32 %v1767, 1.442695
      %v1786 = vpow.pop %v1785
      %v1787 = vmul.f32 %v1768, 1.442695
      %v1788 = vpow.pop %v1787
      %v1789 = vmul.f32 %v1769, 1.442695
      %v1790 = vpow.pop %v1789
      %v1791 = vmul.f32 %v1770, 1.442695
      %v1792 = vpow.pop %v1791
      %v1793 = vmul.f32 %v1771, 1.442695
      %v1794 = vpow.pop %v1793
      %v1795 = vmul.f32 %v1772, 1.442695
      %v1796 = vpow.pop %v1795
      %v1797 = vmul.f32 %v1773, 1.442695
      %v1798 = vpow.pop %v1797
      %v1799 = vmul.f32 %v1774, 1.442695
      %v1800 = vpow.pop %v1799
      %v1801 = vld [vmem:[%s416] sm:$0xff]
      %v1802 = vld [vmem:[%s416 + $0x8] sm:$0xff]
      %v1803 = vld [vmem:[%s416 + $0x10] sm:$0xff]
      %v1804 = vld [vmem:[%s416 + $0x18] sm:$0xff]
      %v1805 = vld [vmem:[%s416 + $0x20] sm:$0xff]
      %v1806 = vld [vmem:[%s416 + $0x28] sm:$0xff]
      %v1807 = vld [vmem:[%s416 + $0x30] sm:$0xff]
      %v1808 = vld [vmem:[%s416 + $0x38] sm:$0xff]
      %v1809 = vld [vmem:[%s416 + $0x40] sm:$0xff]
      %v1810 = vld [vmem:[%s416 + $0x48] sm:$0xff]
      %v1811 = vld [vmem:[%s416 + $0x50] sm:$0xff]
      %v1812 = vld [vmem:[%s416 + $0x58] sm:$0xff]
      %v1813 = vld [vmem:[%s416 + $0x60] sm:$0xff]
      %1827 = vrot.lane.b32.xlu0 %v1776, 112
      %v1828 = vpop.permute.xlu0 %1827
      %1829 = vrot.lane.b32.xlu0 %v1778, 112
      %v1830 = vpop.permute.xlu0 %1829
      %1831 = vrot.lane.b32.xlu0 %v1780, 112
      %v1832 = vpop.permute.xlu0 %1831
      %1833 = vrot.lane.b32.xlu0 %v1782, 112
      %v1834 = vpop.permute.xlu0 %1833
      %1835 = vrot.lane.b32.xlu0 %v1784, 112
      %v1836 = vpop.permute.xlu0 %1835
      %1837 = vrot.lane.b32.xlu0 %v1786, 112
      %v1838 = vpop.permute.xlu0 %1837
      %1839 = vrot.lane.b32.xlu0 %v1788, 112
      %v1840 = vpop.permute.xlu0 %1839
      %1841 = vrot.lane.b32.xlu0 %v1790, 112
      %v1842 = vpop.permute.xlu0 %1841
      %1843 = vrot.lane.b32.xlu0 %v1792, 112
      %v1844 = vpop.permute.xlu0 %1843
      %1845 = vrot.lane.b32.xlu0 %v1794, 112
      %v1846 = vpop.permute.xlu0 %1845
      %1847 = vrot.lane.b32.xlu0 %v1796, 112
      %v1848 = vpop.permute.xlu0 %1847
      %1849 = vrot.lane.b32.xlu0 %v1798, 112
      %v1850 = vpop.permute.xlu0 %1849
      %1851 = vrot.lane.b32.xlu0 %v1800, 112
      %v1852 = vpop.permute.xlu0 %1851
      %v1866 = vmul.f32 %v1801, %v1828
      %v1867 = vmul.f32 %v1802, %v1830
      %v1868 = vmul.f32 %v1803, %v1832
      %v1869 = vmul.f32 %v1804, %v1834
      %v1870 = vmul.f32 %v1805, %v1836
      %v1871 = vmul.f32 %v1806, %v1838
      %v1872 = vmul.f32 %v1807, %v1840
      %v1873 = vmul.f32 %v1808, %v1842
      %v1874 = vmul.f32 %v1809, %v1844
      %v1875 = vmul.f32 %v1810, %v1846
      %v1876 = vmul.f32 %v1811, %v1848
      %v1877 = vmul.f32 %v1812, %v1850
      %v1878 = vmul.f32 %v1813, %v1852
      %v1879 = vadd.f32 %v1729, %v1866
      %v1880 = vadd.f32 %v1731, %v1867
      %v1881 = vadd.f32 %v1734, %v1868
      %v1882 = vadd.f32 %v1736, %v1869
      %v1883 = vadd.f32 %v1739, %v1870
      %v1884 = vadd.f32 %v1741, %v1871
      %v1885 = vadd.f32 %v1744, %v1872
      %v1886 = vadd.f32 %v1746, %v1873
      %v1887 = vadd.f32 %v1749, %v1874
      %v1888 = vadd.f32 %v1751, %v1875
      %v1889 = vadd.f32 %v1754, %v1876
      %v1890 = vadd.f32 %v1756, %v1877
      %v1891 = vadd.f32 %v1759, %v1878
      %v1892 = vpack.c.bf16 %v1880, %v1879
      %v1893 = vpack.c.bf16 %v1882, %v1881
      %v1894 = vpack.c.bf16 %v1884, %v1883
      %v1895 = vpack.c.bf16 %v1886, %v1885
      %v1896 = vpack.c.bf16 %v1888, %v1887
      %v1897 = vpack.c.bf16 %v1890, %v1889
      %v1898 = vpack.c.bf16 %v1891, %v1891
      %v1899 = vld [vmem:[%s6] sm:$0xff]
      %v1900 = vld [vmem:[%s6 + $0x8] sm:$0xff]
      %v1901 = vld [vmem:[%s6 + $0x10] sm:$0xff]
      %v1902 = vld [vmem:[%s6 + $0x18] sm:$0xff]
      %v1903 = vld [vmem:[%s7] sm:$0xf]
      %v1905 = vperm.slane %v1903, 0
      %v1906 = vperm.slane %v1903, 1
      %v1907 = vperm.slane %v1903, 2
      %v1908 = vperm.slane %v1903, 3
      %v1917 = vunpack.c.l.b16 %v1899
      %v1918 = vunpack.c.h.b16 %v1899
      %v1919 = vunpack.c.l.b16 %v1900
      %v1920 = vunpack.c.h.b16 %v1900
      %v1921 = vunpack.c.l.b16 %v1901
      %v1922 = vunpack.c.h.b16 %v1901
      %v1923 = vunpack.c.l.b16 %v1902
      %v1924 = vunpack.c.h.b16 %v1902
      %v1925 = vpack.c.b16 %v1921, %v1917
      %v1926 = vpack.c.b16 %v1922, %v1918
      %v1927 = vpack.c.b16 %v1923, %v1919
      %v1928 = vpack.c.b16 %v1924, %v1920
      %vm1933 = vcmask 130048
      %v1935 = vsel %vm1933, %v1892, 0
      %v1938 = vsel %vm1933, %v1893, 0
      %v1941 = vsel %vm1933, %v1894, 0
      %v1944 = vsel %vm1933, %v1895, 0
      %v1947 = vsel %vm1933, %v1896, 0
      %v1950 = vsel %vm1933, %v1897, 0
      %v1953 = vsel %vm1933, %v1898, 0
      %1955 = vmatpush.bf16.msra.mxu0 0
      %1956 = vmatpush.bf16.msra.mxu0 0
      %1957 = vmatpush.bf16.msra.mxu0 0
      %1958 = vmatpush.bf16.msra.mxu0 0
      %1959 = vmatpush.bf16.msra.mxu0 0
      %1960 = vmatpush.bf16.msra.mxu0 0
      %1961 = vmatpush.bf16.msra.mxu0 0
      %1962 = vmatpush.bf16.msra.mxu0 %v1925
      %1963 = vmatmul.bf16.gmra.mxu0 %v1935
      %v1964 = vpop.f32.mrf.mxu0
      %v1965 = vadd.f32 %v1905, %v1964
      %v1966 = vpop.f32.mrf.mxu0
      %v1967 = vadd.f32 %v1905, %v1966
      %1968 = vmatmul.bf16.gmra.mxu0 %v1938
      %v1969 = vpop.f32.mrf.mxu0
      %v1970 = vadd.f32 %v1905, %v1969
      %v1971 = vpop.f32.mrf.mxu0
      %v1972 = vadd.f32 %v1905, %v1971
      %1973 = vmatmul.bf16.gmra.mxu0 %v1941
      %v1974 = vpop.f32.mrf.mxu0
      %v1975 = vadd.f32 %v1905, %v1974
      %v1976 = vpop.f32.mrf.mxu0
      %v1977 = vadd.f32 %v1905, %v1976
      %1978 = vmatmul.bf16.gmra.mxu0 %v1944
      %v1979 = vpop.f32.mrf.mxu0
      %v1980 = vadd.f32 %v1905, %v1979
      %v1981 = vpop.f32.mrf.mxu0
      %v1982 = vadd.f32 %v1905, %v1981
      %1983 = vmatmul.bf16.gmra.mxu0 %v1947
      %v1984 = vpop.f32.mrf.mxu0
      %v1985 = vadd.f32 %v1905, %v1984
      %v1986 = vpop.f32.mrf.mxu0
      %v1987 = vadd.f32 %v1905, %v1986
      %1988 = vmatmul.bf16.gmra.mxu0 %v1950
      %v1989 = vpop.f32.mrf.mxu0
      %v1990 = vadd.f32 %v1905, %v1989
      %v1991 = vpop.f32.mrf.mxu0
      %v1992 = vadd.f32 %v1905, %v1991
      %1993 = vmatmul.bf16.gmra.mxu0 %v1953
      %v1994 = vpop.f32.mrf.mxu0
      %v1995 = vadd.f32 %v1905, %v1994
      %v1996 = vpop.f32.mrf.mxu0
      %1997 = vdwg.mxu0
      %1998 = vmatpush.bf16.msra.mxu0 0
      %1999 = vmatpush.bf16.msra.mxu0 0
      %2000 = vmatpush.bf16.msra.mxu0 0
      %2001 = vmatpush.bf16.msra.mxu0 0
      %2002 = vmatpush.bf16.msra.mxu0 0
      %2003 = vmatpush.bf16.msra.mxu0 0
      %2004 = vmatpush.bf16.msra.mxu0 0
      %2005 = vmatpush.bf16.msra.mxu0 %v1926
      %2006 = vmatmul.bf16.gmra.mxu0 %v1935
      %v2007 = vpop.f32.mrf.mxu0
      %v2008 = vadd.f32 %v1906, %v2007
      %v2009 = vpop.f32.mrf.mxu0
      %v2010 = vadd.f32 %v1906, %v2009
      %2011 = vmatmul.bf16.gmra.mxu0 %v1938
      %v2012 = vpop.f32.mrf.mxu0
      %v2013 = vadd.f32 %v1906, %v2012
      %v2014 = vpop.f32.mrf.mxu0
      %v2015 = vadd.f32 %v1906, %v2014
      %2016 = vmatmul.bf16.gmra.mxu0 %v1941
      %v2017 = vpop.f32.mrf.mxu0
      %v2018 = vadd.f32 %v1906, %v2017
      %v2019 = vpop.f32.mrf.mxu0
      %v2020 = vadd.f32 %v1906, %v2019
      %2021 = vmatmul.bf16.gmra.mxu0 %v1944
      %v2022 = vpop.f32.mrf.mxu0
      %v2023 = vadd.f32 %v1906, %v2022
      %v2024 = vpop.f32.mrf.mxu0
      %v2025 = vadd.f32 %v1906, %v2024
      %2026 = vmatmul.bf16.gmra.mxu0 %v1947
      %v2027 = vpop.f32.mrf.mxu0
      %v2028 = vadd.f32 %v1906, %v2027
      %v2029 = vpop.f32.mrf.mxu0
      %v2030 = vadd.f32 %v1906, %v2029
      %2031 = vmatmul.bf16.gmra.mxu0 %v1950
      %v2032 = vpop.f32.mrf.mxu0
      %v2033 = vadd.f32 %v1906, %v2032
      %v2034 = vpop.f32.mrf.mxu0
      %v2035 = vadd.f32 %v1906, %v2034
      %2036 = vmatmul.bf16.gmra.mxu0 %v1953
      %v2037 = vpop.f32.mrf.mxu0
      %v2038 = vadd.f32 %v1906, %v2037
      %v2039 = vpop.f32.mrf.mxu0
      %2040 = vdwg.mxu0
      %2041 = vmatpush.bf16.msra.mxu0 0
      %2042 = vmatpush.bf16.msra.mxu0 0
      %2043 = vmatpush.bf16.msra.mxu0 0
      %2044 = vmatpush.bf16.msra.mxu0 0
      %2045 = vmatpush.bf16.msra.mxu0 0
      %2046 = vmatpush.bf16.msra.mxu0 0
      %2047 = vmatpush.bf16.msra.mxu0 0
      %2048 = vmatpush.bf16.msra.mxu0 %v1927
      %2049 = vmatmul.bf16.gmra.mxu0 %v1935
      %v2050 = vpop.f32.mrf.mxu0
      %v2051 = vadd.f32 %v1907, %v2050
      %v2052 = vpop.f32.mrf.mxu0
      %v2053 = vadd.f32 %v1907, %v2052
      %2054 = vmatmul.bf16.gmra.mxu0 %v1938
      %v2055 = vpop.f32.mrf.mxu0
      %v2056 = vadd.f32 %v1907, %v2055
      %v2057 = vpop.f32.mrf.mxu0
      %v2058 = vadd.f32 %v1907, %v2057
      %2059 = vmatmul.bf16.gmra.mxu0 %v1941
      %v2060 = vpop.f32.mrf.mxu0
      %v2061 = vadd.f32 %v1907, %v2060
      %v2062 = vpop.f32.mrf.mxu0
      %v2063 = vadd.f32 %v1907, %v2062
      %2064 = vmatmul.bf16.gmra.mxu0 %v1944
      %v2065 = vpop.f32.mrf.mxu0
      %v2066 = vadd.f32 %v1907, %v2065
      %v2067 = vpop.f32.mrf.mxu0
      %v2068 = vadd.f32 %v1907, %v2067
      %2069 = vmatmul.bf16.gmra.mxu0 %v1947
      %v2070 = vpop.f32.mrf.mxu0
      %v2071 = vadd.f32 %v1907, %v2070
      %v2072 = vpop.f32.mrf.mxu0
      %v2073 = vadd.f32 %v1907, %v2072
      %2074 = vmatmul.bf16.gmra.mxu0 %v1950
      %v2075 = vpop.f32.mrf.mxu0
      %v2076 = vadd.f32 %v1907, %v2075
      %v2077 = vpop.f32.mrf.mxu0
      %v2078 = vadd.f32 %v1907, %v2077
      %2079 = vmatmul.bf16.gmra.mxu0 %v1953
      %v2080 = vpop.f32.mrf.mxu0
      %v2081 = vadd.f32 %v1907, %v2080
      %v2082 = vpop.f32.mrf.mxu0
      %2083 = vdwg.mxu0
      %2084 = vmatpush.bf16.msra.mxu0 0
      %2085 = vmatpush.bf16.msra.mxu0 0
      %2086 = vmatpush.bf16.msra.mxu0 0
      %2087 = vmatpush.bf16.msra.mxu0 0
      %2088 = vmatpush.bf16.msra.mxu0 0
      %2089 = vmatpush.bf16.msra.mxu0 0
      %2090 = vmatpush.bf16.msra.mxu0 0
      %2091 = vmatpush.bf16.msra.mxu0 %v1928
      %2092 = vmatmul.bf16.gmra.mxu0 %v1935
      %v2093 = vpop.f32.mrf.mxu0
      %v2094 = vadd.f32 %v1908, %v2093
      %v2095 = vpop.f32.mrf.mxu0
      %v2096 = vadd.f32 %v1908, %v2095
      %2097 = vmatmul.bf16.gmra.mxu0 %v1938
      %v2098 = vpop.f32.mrf.mxu0
      %v2099 = vadd.f32 %v1908, %v2098
      %v2100 = vpop.f32.mrf.mxu0
      %v2101 = vadd.f32 %v1908, %v2100
      %2102 = vmatmul.bf16.gmra.mxu0 %v1941
      %v2103 = vpop.f32.mrf.mxu0
      %v2104 = vadd.f32 %v1908, %v2103
      %v2105 = vpop.f32.mrf.mxu0
      %v2106 = vadd.f32 %v1908, %v2105
      %2107 = vmatmul.bf16.gmra.mxu0 %v1944
      %v2108 = vpop.f32.mrf.mxu0
      %v2109 = vadd.f32 %v1908, %v2108
      %v2110 = vpop.f32.mrf.mxu0
      %v2111 = vadd.f32 %v1908, %v2110
      %2112 = vmatmul.bf16.gmra.mxu0 %v1947
      %v2113 = vpop.f32.mrf.mxu0
      %v2114 = vadd.f32 %v1908, %v2113
      %v2115 = vpop.f32.mrf.mxu0
      %v2116 = vadd.f32 %v1908, %v2115
      %2117 = vmatmul.bf16.gmra.mxu0 %v1950
      %v2118 = vpop.f32.mrf.mxu0
      %v2119 = vadd.f32 %v1908, %v2118
      %v2120 = vpop.f32.mrf.mxu0
      %v2121 = vadd.f32 %v1908, %v2120
      %2122 = vmatmul.bf16.gmra.mxu0 %v1953
      %v2123 = vpop.f32.mrf.mxu0
      %v2124 = vadd.f32 %v1908, %v2123
      %v2125 = vpop.f32.mrf.mxu0
      %2126 = vdwg.mxu0
      %v2127 = vmax.f32 %v1965, 0.0
      %v2128 = vmax.f32 %v2008, 0.0
      %v2129 = vmax.f32 %v2051, 0.0
      %v2130 = vmax.f32 %v2094, 0.0
      %v2131 = vmax.f32 %v1967, 0.0
      %v2132 = vmax.f32 %v2010, 0.0
      %v2133 = vmax.f32 %v2053, 0.0
      %v2134 = vmax.f32 %v2096, 0.0
      %v2135 = vmax.f32 %v1970, 0.0
      %v2136 = vmax.f32 %v2013, 0.0
      %v2137 = vmax.f32 %v2056, 0.0
      %v2138 = vmax.f32 %v2099, 0.0
      %v2139 = vmax.f32 %v1972, 0.0
      %v2140 = vmax.f32 %v2015, 0.0
      %v2141 = vmax.f32 %v2058, 0.0
      %v2142 = vmax.f32 %v2101, 0.0
      %v2143 = vmax.f32 %v1975, 0.0
      %v2144 = vmax.f32 %v2018, 0.0
      %v2145 = vmax.f32 %v2061, 0.0
      %v2146 = vmax.f32 %v2104, 0.0
      %v2147 = vmax.f32 %v1977, 0.0
      %v2148 = vmax.f32 %v2020, 0.0
      %v2149 = vmax.f32 %v2063, 0.0
      %v2150 = vmax.f32 %v2106, 0.0
      %v2151 = vmax.f32 %v1980, 0.0
      %v2152 = vmax.f32 %v2023, 0.0
      %v2153 = vmax.f32 %v2066, 0.0
      %v2154 = vmax.f32 %v2109, 0.0
      %v2155 = vmax.f32 %v1982, 0.0
      %v2156 = vmax.f32 %v2025, 0.0
      %v2157 = vmax.f32 %v2068, 0.0
      %v2158 = vmax.f32 %v2111, 0.0
      %v2159 = vmax.f32 %v1985, 0.0
      %v2160 = vmax.f32 %v2028, 0.0
      %v2161 = vmax.f32 %v2071, 0.0
      %v2162 = vmax.f32 %v2114, 0.0
      %v2163 = vmax.f32 %v1987, 0.0
      %v2164 = vmax.f32 %v2030, 0.0
      %v2165 = vmax.f32 %v2073, 0.0
      %v2166 = vmax.f32 %v2116, 0.0
      %v2167 = vmax.f32 %v1990, 0.0
      %v2168 = vmax.f32 %v2033, 0.0
      %v2169 = vmax.f32 %v2076, 0.0
      %v2170 = vmax.f32 %v2119, 0.0
      %v2171 = vmax.f32 %v1992, 0.0
      %v2172 = vmax.f32 %v2035, 0.0
      %v2173 = vmax.f32 %v2078, 0.0
      %v2174 = vmax.f32 %v2121, 0.0
      %v2175 = vmax.f32 %v1995, 0.0
      %v2176 = vmax.f32 %v2038, 0.0
      %v2177 = vmax.f32 %v2081, 0.0
      %v2178 = vmax.f32 %v2124, 0.0
      %v2179 = vpack.c.bf16 %v2131, %v2127
      %v2180 = vpack.c.bf16 %v2132, %v2128
      %v2181 = vpack.c.bf16 %v2133, %v2129
      %v2182 = vpack.c.bf16 %v2134, %v2130
      %v2183 = vpack.c.bf16 %v2139, %v2135
      %v2184 = vpack.c.bf16 %v2140, %v2136
      %v2185 = vpack.c.bf16 %v2141, %v2137
      %v2186 = vpack.c.bf16 %v2142, %v2138
      %v2187 = vpack.c.bf16 %v2147, %v2143
      %v2188 = vpack.c.bf16 %v2148, %v2144
      %v2189 = vpack.c.bf16 %v2149, %v2145
      %v2190 = vpack.c.bf16 %v2150, %v2146
      %v2191 = vpack.c.bf16 %v2155, %v2151
      %v2192 = vpack.c.bf16 %v2156, %v2152
      %v2193 = vpack.c.bf16 %v2157, %v2153
      %v2194 = vpack.c.bf16 %v2158, %v2154
      %v2195 = vpack.c.bf16 %v2163, %v2159
      %v2196 = vpack.c.bf16 %v2164, %v2160
      %v2197 = vpack.c.bf16 %v2165, %v2161
      %v2198 = vpack.c.bf16 %v2166, %v2162
      %v2199 = vpack.c.bf16 %v2171, %v2167
      %v2200 = vpack.c.bf16 %v2172, %v2168
      %v2201 = vpack.c.bf16 %v2173, %v2169
      %v2202 = vpack.c.bf16 %v2174, %v2170
      %v2203 = vpack.c.bf16 %v2175, %v2175
      %v2204 = vpack.c.bf16 %v2176, %v2176
      %v2205 = vpack.c.bf16 %v2177, %v2177
      %v2206 = vpack.c.bf16 %v2178, %v2178
      %v2207 = vld [vmem:[%s8] sm:$0xff]
      %v2208 = vld [vmem:[%s8 + $0x8] sm:$0xff]
      %v2209 = vld [vmem:[%s8 + $0x10] sm:$0xff]
      %v2210 = vld [vmem:[%s8 + $0x18] sm:$0xff]
      %v2211 = vld [vmem:[%s8 + $0x20] sm:$0xff]
      %v2212 = vld [vmem:[%s8 + $0x28] sm:$0xff]
      %v2213 = vld [vmem:[%s8 + $0x30] sm:$0xff]
      %v2214 = vld [vmem:[%s8 + $0x38] sm:$0xff]
      %v2215 = vld [vmem:[%s8 + $0x40] sm:$0xff]
      %v2216 = vld [vmem:[%s8 + $0x48] sm:$0xff]
      %v2217 = vld [vmem:[%s8 + $0x50] sm:$0xff]
      %v2218 = vld [vmem:[%s8 + $0x58] sm:$0xff]
      %v2219 = vld [vmem:[%s8 + $0x60] sm:$0xff]
      %v2220 = vld [vmem:[%s8 + $0x68] sm:$0xff]
      %v2221 = vld [vmem:[%s8 + $0x70] sm:$0xff]
      %v2222 = vld [vmem:[%s8 + $0x78] sm:$0xff]
      %v2223 = vld [vmem:[%s8 + $0x80] sm:$0xff]
      %v2224 = vld [vmem:[%s8 + $0x88] sm:$0xff]
      %v2225 = vld [vmem:[%s8 + $0x90] sm:$0xff]
      %v2226 = vld [vmem:[%s8 + $0x98] sm:$0xff]
      %v2227 = vld [vmem:[%s8 + $0xa0] sm:$0xff]
      %v2228 = vld [vmem:[%s8 + $0xa8] sm:$0xff]
      %v2229 = vld [vmem:[%s8 + $0xb0] sm:$0xff]
      %v2230 = vld [vmem:[%s8 + $0xb8] sm:$0xff]
      %v2231 = vld [vmem:[%s8 + $0xc0] sm:$0xff]
      %v2232 = vld [vmem:[%s8 + $0xc8] sm:$0xff]
      %v2233 = vld [vmem:[%s8 + $0xd0] sm:$0xff]
      %v2234 = vld [vmem:[%s8 + $0xd8] sm:$0xff]
      %v2235 = vld [vmem:[%s8 + $0xe0] sm:$0xff]
      %v2236 = vld [vmem:[%s8 + $0xe8] sm:$0xff]
      %v2237 = vld [vmem:[%s8 + $0xf0] sm:$0xff]
      %v2238 = vld [vmem:[%s8 + $0xf8] sm:$0xff]
      %v2239 = vld [vmem:[%s8 + $0x100] sm:$0xff]
      %v2240 = vld [vmem:[%s8 + $0x108] sm:$0xff]
      %v2241 = vld [vmem:[%s8 + $0x110] sm:$0xff]
      %v2242 = vld [vmem:[%s8 + $0x118] sm:$0xff]
      %v2243 = vld [vmem:[%s8 + $0x120] sm:$0xff]
      %v2244 = vld [vmem:[%s8 + $0x128] sm:$0xff]
      %v2245 = vld [vmem:[%s8 + $0x130] sm:$0xff]
      %v2246 = vld [vmem:[%s8 + $0x138] sm:$0xff]
      %v2247 = vld [vmem:[%s8 + $0x140] sm:$0xff]
      %v2248 = vld [vmem:[%s8 + $0x148] sm:$0xff]
      %v2249 = vld [vmem:[%s8 + $0x150] sm:$0xff]
      %v2250 = vld [vmem:[%s8 + $0x158] sm:$0xff]
      %v2251 = vld [vmem:[%s8 + $0x160] sm:$0xff]
      %v2252 = vld [vmem:[%s8 + $0x168] sm:$0xff]
      %v2253 = vld [vmem:[%s8 + $0x170] sm:$0xff]
      %v2254 = vld [vmem:[%s8 + $0x178] sm:$0xff]
      %v2255 = vld [vmem:[%s8 + $0x180] sm:$0xff]
      %v2256 = vld [vmem:[%s8 + $0x188] sm:$0xff]
      %v2257 = vld [vmem:[%s8 + $0x190] sm:$0xff]
      %v2258 = vld [vmem:[%s8 + $0x198] sm:$0xff]
      %v2259 = vld [vmem:[%s8 + $0x1a0] sm:$0xff]
      %v2260 = vld [vmem:[%s8 + $0x1a8] sm:$0xff]
      %v2261 = vld [vmem:[%s8 + $0x1b0] sm:$0xff]
      %v2262 = vld [vmem:[%s8 + $0x1b8] sm:$0xff]
      %v2263 = vld [vmem:[%s8 + $0x1c0] sm:$0xff]
      %v2264 = vld [vmem:[%s8 + $0x1c8] sm:$0xff]
      %v2265 = vld [vmem:[%s8 + $0x1d0] sm:$0xff]
      %v2266 = vld [vmem:[%s8 + $0x1d8] sm:$0xff]
      %v2267 = vld [vmem:[%s8 + $0x1e0] sm:$0xff]
      %v2268 = vld [vmem:[%s8 + $0x1e8] sm:$0xff]
      %v2269 = vld [vmem:[%s8 + $0x1f0] sm:$0xff]
      %v2270 = vld [vmem:[%s8 + $0x1f8] sm:$0xff]
      %v2271 = vld [vmem:[%s9] sm:$0x3]
      %v2273 = vperm.slane %v2271, 0
      %v2274 = vperm.slane %v2271, 1
      %v2341 = vunpack.c.l.b16 %v2207
      %v2342 = vunpack.c.h.b16 %v2207
      %v2343 = vunpack.c.l.b16 %v2208
      %v2344 = vunpack.c.h.b16 %v2208
      %v2345 = vunpack.c.l.b16 %v2209
      %v2346 = vunpack.c.h.b16 %v2209
      %v2347 = vunpack.c.l.b16 %v2210
      %v2348 = vunpack.c.h.b16 %v2210
      %v2349 = vunpack.c.l.b16 %v2211
      %v2350 = vunpack.c.h.b16 %v2211
      %v2351 = vunpack.c.l.b16 %v2212
      %v2352 = vunpack.c.h.b16 %v2212
      %v2353 = vunpack.c.l.b16 %v2213
      %v2354 = vunpack.c.h.b16 %v2213
      %v2355 = vunpack.c.l.b16 %v2214
      %v2356 = vunpack.c.h.b16 %v2214
      %v2357 = vunpack.c.l.b16 %v2215
      %v2358 = vunpack.c.h.b16 %v2215
      %v2359 = vunpack.c.l.b16 %v2216
      %v2360 = vunpack.c.h.b16 %v2216
      %v2361 = vunpack.c.l.b16 %v2217
      %v2362 = vunpack.c.h.b16 %v2217
      %v2363 = vunpack.c.l.b16 %v2218
      %v2364 = vunpack.c.h.b16 %v2218
      %v2365 = vunpack.c.l.b16 %v2219
      %v2366 = vunpack.c.h.b16 %v2219
      %v2367 = vunpack.c.l.b16 %v2220
      %v2368 = vunpack.c.h.b16 %v2220
      %v2369 = vunpack.c.l.b16 %v2221
      %v2370 = vunpack.c.h.b16 %v2221
      %v2371 = vunpack.c.l.b16 %v2222
      %v2372 = vunpack.c.h.b16 %v2222
      %v2373 = vunpack.c.l.b16 %v2223
      %v2374 = vunpack.c.h.b16 %v2223
      %v2375 = vunpack.c.l.b16 %v2224
      %v2376 = vunpack.c.h.b16 %v2224
      %v2377 = vunpack.c.l.b16 %v2225
      %v2378 = vunpack.c.h.b16 %v2225
      %v2379 = vunpack.c.l.b16 %v2226
      %v2380 = vunpack.c.h.b16 %v2226
      %v2381 = vunpack.c.l.b16 %v2227
      %v2382 = vunpack.c.h.b16 %v2227
      %v2383 = vunpack.c.l.b16 %v2228
      %v2384 = vunpack.c.h.b16 %v2228
      %v2385 = vunpack.c.l.b16 %v2229
      %v2386 = vunpack.c.h.b16 %v2229
      %v2387 = vunpack.c.l.b16 %v2230
      %v2388 = vunpack.c.h.b16 %v2230
      %v2389 = vunpack.c.l.b16 %v2231
      %v2390 = vunpack.c.h.b16 %v2231
      %v2391 = vunpack.c.l.b16 %v2232
      %v2392 = vunpack.c.h.b16 %v2232
      %v2393 = vunpack.c.l.b16 %v2233
      %v2394 = vunpack.c.h.b16 %v2233
      %v2395 = vunpack.c.l.b16 %v2234
      %v2396 = vunpack.c.h.b16 %v2234
      %v2397 = vunpack.c.l.b16 %v2235
      %v2398 = vunpack.c.h.b16 %v2235
      %v2399 = vunpack.c.l.b16 %v2236
      %v2400 = vunpack.c.h.b16 %v2236
      %v2401 = vunpack.c.l.b16 %v2237
      %v2402 = vunpack.c.h.b16 %v2237
      %v2403 = vunpack.c.l.b16 %v2238
      %v2404 = vunpack.c.h.b16 %v2238
      %v2405 = vunpack.c.l.b16 %v2239
      %v2406 = vunpack.c.h.b16 %v2239
      %v2407 = vunpack.c.l.b16 %v2240
      %v2408 = vunpack.c.h.b16 %v2240
      %v2409 = vunpack.c.l.b16 %v2241
      %v2410 = vunpack.c.h.b16 %v2241
      %v2411 = vunpack.c.l.b16 %v2242
      %v2412 = vunpack.c.h.b16 %v2242
      %v2413 = vunpack.c.l.b16 %v2243
      %v2414 = vunpack.c.h.b16 %v2243
      %v2415 = vunpack.c.l.b16 %v2244
      %v2416 = vunpack.c.h.b16 %v2244
      %v2417 = vunpack.c.l.b16 %v2245
      %v2418 = vunpack.c.h.b16 %v2245
      %v2419 = vunpack.c.l.b16 %v2246
      %v2420 = vunpack.c.h.b16 %v2246
      %v2421 = vunpack.c.l.b16 %v2247
      %v2422 = vunpack.c.h.b16 %v2247
      %v2423 = vunpack.c.l.b16 %v2248
      %v2424 = vunpack.c.h.b16 %v2248
      %v2425 = vunpack.c.l.b16 %v2249
      %v2426 = vunpack.c.h.b16 %v2249
      %v2427 = vunpack.c.l.b16 %v2250
      %v2428 = vunpack.c.h.b16 %v2250
      %v2429 = vunpack.c.l.b16 %v2251
      %v2430 = vunpack.c.h.b16 %v2251
      %v2431 = vunpack.c.l.b16 %v2252
      %v2432 = vunpack.c.h.b16 %v2252
      %v2433 = vunpack.c.l.b16 %v2253
      %v2434 = vunpack.c.h.b16 %v2253
      %v2435 = vunpack.c.l.b16 %v2254
      %v2436 = vunpack.c.h.b16 %v2254
      %v2437 = vunpack.c.l.b16 %v2255
      %v2438 = vunpack.c.h.b16 %v2255
      %v2439 = vunpack.c.l.b16 %v2256
      %v2440 = vunpack.c.h.b16 %v2256
      %v2441 = vunpack.c.l.b16 %v2257
      %v2442 = vunpack.c.h.b16 %v2257
      %v2443 = vunpack.c.l.b16 %v2258
      %v2444 = vunpack.c.h.b16 %v2258
      %v2445 = vunpack.c.l.b16 %v2259
      %v2446 = vunpack.c.h.b16 %v2259
      %v2447 = vunpack.c.l.b16 %v2260
      %v2448 = vunpack.c.h.b16 %v2260
      %v2449 = vunpack.c.l.b16 %v2261
      %v2450 = vunpack.c.h.b16 %v2261
      %v2451 = vunpack.c.l.b16 %v2262
      %v2452 = vunpack.c.h.b16 %v2262
      %v2453 = vunpack.c.l.b16 %v2263
      %v2454 = vunpack.c.h.b16 %v2263
      %v2455 = vunpack.c.l.b16 %v2264
      %v2456 = vunpack.c.h.b16 %v2264
      %v2457 = vunpack.c.l.b16 %v2265
      %v2458 = vunpack.c.h.b16 %v2265
      %v2459 = vunpack.c.l.b16 %v2266
      %v2460 = vunpack.c.h.b16 %v2266
      %v2461 = vunpack.c.l.b16 %v2267
      %v2462 = vunpack.c.h.b16 %v2267
      %v2463 = vunpack.c.l.b16 %v2268
      %v2464 = vunpack.c.h.b16 %v2268
      %v2465 = vunpack.c.l.b16 %v2269
      %v2466 = vunpack.c.h.b16 %v2269
      %v2467 = vunpack.c.l.b16 %v2270
      %v2468 = vunpack.c.h.b16 %v2270
      %v2469 = vpack.c.b16 %v2343, %v2341
      %v2470 = vpack.c.b16 %v2344, %v2342
      %v2471 = vpack.c.b16 %v2347, %v2345
      %v2472 = vpack.c.b16 %v2348, %v2346
      %v2473 = vpack.c.b16 %v2351, %v2349
      %v2474 = vpack.c.b16 %v2352, %v2350
      %v2475 = vpack.c.b16 %v2355, %v2353
      %v2476 = vpack.c.b16 %v2356, %v2354
      %v2477 = vpack.c.b16 %v2359, %v2357
      %v2478 = vpack.c.b16 %v2360, %v2358
      %v2479 = vpack.c.b16 %v2363, %v2361
      %v2480 = vpack.c.b16 %v2364, %v2362
      %v2481 = vpack.c.b16 %v2367, %v2365
      %v2482 = vpack.c.b16 %v2368, %v2366
      %v2483 = vpack.c.b16 %v2371, %v2369
      %v2484 = vpack.c.b16 %v2372, %v2370
      %v2485 = vpack.c.b16 %v2375, %v2373
      %v2486 = vpack.c.b16 %v2376, %v2374
      %v2487 = vpack.c.b16 %v2379, %v2377
      %v2488 = vpack.c.b16 %v2380, %v2378
      %v2489 = vpack.c.b16 %v2383, %v2381
      %v2490 = vpack.c.b16 %v2384, %v2382
      %v2491 = vpack.c.b16 %v2387, %v2385
      %v2492 = vpack.c.b16 %v2388, %v2386
      %v2493 = vpack.c.b16 %v2391, %v2389
      %v2494 = vpack.c.b16 %v2392, %v2390
      %v2495 = vpack.c.b16 %v2395, %v2393
      %v2496 = vpack.c.b16 %v2396, %v2394
      %v2497 = vpack.c.b16 %v2399, %v2397
      %v2498 = vpack.c.b16 %v2400, %v2398
      %v2499 = vpack.c.b16 %v2403, %v2401
      %v2500 = vpack.c.b16 %v2404, %v2402
      %v2501 = vpack.c.b16 %v2407, %v2405
      %v2502 = vpack.c.b16 %v2408, %v2406
      %v2503 = vpack.c.b16 %v2411, %v2409
      %v2504 = vpack.c.b16 %v2412, %v2410
      %v2505 = vpack.c.b16 %v2415, %v2413
      %v2506 = vpack.c.b16 %v2416, %v2414
      %v2507 = vpack.c.b16 %v2419, %v2417
      %v2508 = vpack.c.b16 %v2420, %v2418
      %v2509 = vpack.c.b16 %v2423, %v2421
      %v2510 = vpack.c.b16 %v2424, %v2422
      %v2511 = vpack.c.b16 %v2427, %v2425
      %v2512 = vpack.c.b16 %v2428, %v2426
      %v2513 = vpack.c.b16 %v2431, %v2429
      %v2514 = vpack.c.b16 %v2432, %v2430
      %v2515 = vpack.c.b16 %v2435, %v2433
      %v2516 = vpack.c.b16 %v2436, %v2434
      %v2517 = vpack.c.b16 %v2439, %v2437
      %v2518 = vpack.c.b16 %v2440, %v2438
      %v2519 = vpack.c.b16 %v2443, %v2441
      %v2520 = vpack.c.b16 %v2444, %v2442
      %v2521 = vpack.c.b16 %v2447, %v2445
      %v2522 = vpack.c.b16 %v2448, %v2446
      %v2523 = vpack.c.b16 %v2451, %v2449
      %v2524 = vpack.c.b16 %v2452, %v2450
      %v2525 = vpack.c.b16 %v2455, %v2453
      %v2526 = vpack.c.b16 %v2456, %v2454
      %v2527 = vpack.c.b16 %v2459, %v2457
      %v2528 = vpack.c.b16 %v2460, %v2458
      %v2529 = vpack.c.b16 %v2463, %v2461
      %v2530 = vpack.c.b16 %v2464, %v2462
      %v2531 = vpack.c.b16 %v2467, %v2465
      %v2532 = vpack.c.b16 %v2468, %v2466
      %2597 = vmatpush.bf16.msra.mxu0 %v2483
      %2598 = vmatpush.bf16.msra.mxu0 %v2481
      %2599 = vmatpush.bf16.msra.mxu0 %v2479
      %2600 = vmatpush.bf16.msra.mxu0 %v2477
      %2601 = vmatpush.bf16.msra.mxu0 %v2475
      %2602 = vmatpush.bf16.msra.mxu0 %v2473
      %2603 = vmatpush.bf16.msra.mxu0 %v2471
      %2604 = vmatpush.bf16.msra.mxu0 %v2469
      %2605 = vmatmul.bf16.gmra.mxu0 %v2179
      %v2606 = vpop.f32.mrf.mxu0
      %v2607 = vadd.f32 %v2273, %v2606
      %v2608 = vpop.f32.mrf.mxu0
      %v2609 = vadd.f32 %v2273, %v2608
      %2610 = vmatmul.bf16.gmra.mxu0 %v2183
      %v2611 = vpop.f32.mrf.mxu0
      %v2612 = vadd.f32 %v2273, %v2611
      %v2613 = vpop.f32.mrf.mxu0
      %v2614 = vadd.f32 %v2273, %v2613
      %2615 = vmatmul.bf16.gmra.mxu0 %v2187
      %v2616 = vpop.f32.mrf.mxu0
      %v2617 = vadd.f32 %v2273, %v2616
      %v2618 = vpop.f32.mrf.mxu0
      %v2619 = vadd.f32 %v2273, %v2618
      %2620 = vmatmul.bf16.gmra.mxu0 %v2191
      %v2621 = vpop.f32.mrf.mxu0
      %v2622 = vadd.f32 %v2273, %v2621
      %v2623 = vpop.f32.mrf.mxu0
      %v2624 = vadd.f32 %v2273, %v2623
      %2625 = vmatmul.bf16.gmra.mxu0 %v2195
      %v2626 = vpop.f32.mrf.mxu0
      %v2627 = vadd.f32 %v2273, %v2626
      %v2628 = vpop.f32.mrf.mxu0
      %v2629 = vadd.f32 %v2273, %v2628
      %2630 = vmatmul.bf16.gmra.mxu0 %v2199
      %v2631 = vpop.f32.mrf.mxu0
      %v2632 = vadd.f32 %v2273, %v2631
      %v2633 = vpop.f32.mrf.mxu0
      %v2634 = vadd.f32 %v2273, %v2633
      %2635 = vmatmul.bf16.gmra.mxu0 %v2203
      %v2636 = vpop.f32.mrf.mxu0
      %v2637 = vadd.f32 %v2273, %v2636
      %v2638 = vpop.f32.mrf.mxu0
      %2639 = vdwg.mxu0
      %2640 = vmatpush.bf16.msra.mxu0 %v2499
      %2641 = vmatpush.bf16.msra.mxu0 %v2497
      %2642 = vmatpush.bf16.msra.mxu0 %v2495
      %2643 = vmatpush.bf16.msra.mxu0 %v2493
      %2644 = vmatpush.bf16.msra.mxu0 %v2491
      %2645 = vmatpush.bf16.msra.mxu0 %v2489
      %2646 = vmatpush.bf16.msra.mxu0 %v2487
      %2647 = vmatpush.bf16.msra.mxu0 %v2485
      %2648 = vmatmul.bf16.gmra.mxu0 %v2180
      %v2649 = vpop.f32.mrf.mxu0
      %v2650 = vadd.f32 %v2607, %v2649
      %v2651 = vpop.f32.mrf.mxu0
      %v2652 = vadd.f32 %v2609, %v2651
      %2653 = vmatmul.bf16.gmra.mxu0 %v2184
      %v2654 = vpop.f32.mrf.mxu0
      %v2655 = vadd.f32 %v2612, %v2654
      %v2656 = vpop.f32.mrf.mxu0
      %v2657 = vadd.f32 %v2614, %v2656
      %2658 = vmatmul.bf16.gmra.mxu0 %v2188
      %v2659 = vpop.f32.mrf.mxu0
      %v2660 = vadd.f32 %v2617, %v2659
      %v2661 = vpop.f32.mrf.mxu0
      %v2662 = vadd.f32 %v2619, %v2661
      %2663 = vmatmul.bf16.gmra.mxu0 %v2192
      %v2664 = vpop.f32.mrf.mxu0
      %v2665 = vadd.f32 %v2622, %v2664
      %v2666 = vpop.f32.mrf.mxu0
      %v2667 = vadd.f32 %v2624, %v2666
      %2668 = vmatmul.bf16.gmra.mxu0 %v2196
      %v2669 = vpop.f32.mrf.mxu0
      %v2670 = vadd.f32 %v2627, %v2669
      %v2671 = vpop.f32.mrf.mxu0
      %v2672 = vadd.f32 %v2629, %v2671
      %2673 = vmatmul.bf16.gmra.mxu0 %v2200
      %v2674 = vpop.f32.mrf.mxu0
      %v2675 = vadd.f32 %v2632, %v2674
      %v2676 = vpop.f32.mrf.mxu0
      %v2677 = vadd.f32 %v2634, %v2676
      %2678 = vmatmul.bf16.gmra.mxu0 %v2204
      %v2679 = vpop.f32.mrf.mxu0
      %v2680 = vadd.f32 %v2637, %v2679
      %v2681 = vpop.f32.mrf.mxu0
      %2682 = vdwg.mxu0
      %2683 = vmatpush.bf16.msra.mxu0 %v2515
      %2684 = vmatpush.bf16.msra.mxu0 %v2513
      %2685 = vmatpush.bf16.msra.mxu0 %v2511
      %2686 = vmatpush.bf16.msra.mxu0 %v2509
      %2687 = vmatpush.bf16.msra.mxu0 %v2507
      %2688 = vmatpush.bf16.msra.mxu0 %v2505
      %2689 = vmatpush.bf16.msra.mxu0 %v2503
      %2690 = vmatpush.bf16.msra.mxu0 %v2501
      %2691 = vmatmul.bf16.gmra.mxu0 %v2181
      %v2692 = vpop.f32.mrf.mxu0
      %v2693 = vadd.f32 %v2650, %v2692
      %v2694 = vpop.f32.mrf.mxu0
      %v2695 = vadd.f32 %v2652, %v2694
      %2696 = vmatmul.bf16.gmra.mxu0 %v2185
      %v2697 = vpop.f32.mrf.mxu0
      %v2698 = vadd.f32 %v2655, %v2697
      %v2699 = vpop.f32.mrf.mxu0
      %v2700 = vadd.f32 %v2657, %v2699
      %2701 = vmatmul.bf16.gmra.mxu0 %v2189
      %v2702 = vpop.f32.mrf.mxu0
      %v2703 = vadd.f32 %v2660, %v2702
      %v2704 = vpop.f32.mrf.mxu0
      %v2705 = vadd.f32 %v2662, %v2704
      %2706 = vmatmul.bf16.gmra.mxu0 %v2193
      %v2707 = vpop.f32.mrf.mxu0
      %v2708 = vadd.f32 %v2665, %v2707
      %v2709 = vpop.f32.mrf.mxu0
      %v2710 = vadd.f32 %v2667, %v2709
      %2711 = vmatmul.bf16.gmra.mxu0 %v2197
      %v2712 = vpop.f32.mrf.mxu0
      %v2713 = vadd.f32 %v2670, %v2712
      %v2714 = vpop.f32.mrf.mxu0
      %v2715 = vadd.f32 %v2672, %v2714
      %2716 = vmatmul.bf16.gmra.mxu0 %v2201
      %v2717 = vpop.f32.mrf.mxu0
      %v2718 = vadd.f32 %v2675, %v2717
      %v2719 = vpop.f32.mrf.mxu0
      %v2720 = vadd.f32 %v2677, %v2719
      %2721 = vmatmul.bf16.gmra.mxu0 %v2205
      %v2722 = vpop.f32.mrf.mxu0
      %v2723 = vadd.f32 %v2680, %v2722
      %v2724 = vpop.f32.mrf.mxu0
      %2725 = vdwg.mxu0
      %2726 = vmatpush.bf16.msra.mxu0 %v2531
      %2727 = vmatpush.bf16.msra.mxu0 %v2529
      %2728 = vmatpush.bf16.msra.mxu0 %v2527
      %2729 = vmatpush.bf16.msra.mxu0 %v2525
      %2730 = vmatpush.bf16.msra.mxu0 %v2523
      %2731 = vmatpush.bf16.msra.mxu0 %v2521
      %2732 = vmatpush.bf16.msra.mxu0 %v2519
      %2733 = vmatpush.bf16.msra.mxu0 %v2517
      %2734 = vmatmul.bf16.gmra.mxu0 %v2182
      %v2735 = vpop.f32.mrf.mxu0
      %v2736 = vadd.f32 %v2693, %v2735
      %v2737 = vpop.f32.mrf.mxu0
      %v2738 = vadd.f32 %v2695, %v2737
      %2739 = vmatmul.bf16.gmra.mxu0 %v2186
      %v2740 = vpop.f32.mrf.mxu0
      %v2741 = vadd.f32 %v2698, %v2740
      %v2742 = vpop.f32.mrf.mxu0
      %v2743 = vadd.f32 %v2700, %v2742
      %2744 = vmatmul.bf16.gmra.mxu0 %v2190
      %v2745 = vpop.f32.mrf.mxu0
      %v2746 = vadd.f32 %v2703, %v2745
      %v2747 = vpop.f32.mrf.mxu0
      %v2748 = vadd.f32 %v2705, %v2747
      %2749 = vmatmul.bf16.gmra.mxu0 %v2194
      %v2750 = vpop.f32.mrf.mxu0
      %v2751 = vadd.f32 %v2708, %v2750
      %v2752 = vpop.f32.mrf.mxu0
      %v2753 = vadd.f32 %v2710, %v2752
      %2754 = vmatmul.bf16.gmra.mxu0 %v2198
      %v2755 = vpop.f32.mrf.mxu0
      %v2756 = vadd.f32 %v2713, %v2755
      %v2757 = vpop.f32.mrf.mxu0
      %v2758 = vadd.f32 %v2715, %v2757
      %2759 = vmatmul.bf16.gmra.mxu0 %v2202
      %v2760 = vpop.f32.mrf.mxu0
      %v2761 = vadd.f32 %v2718, %v2760
      %v2762 = vpop.f32.mrf.mxu0
      %v2763 = vadd.f32 %v2720, %v2762
      %2764 = vmatmul.bf16.gmra.mxu0 %v2206
      %v2765 = vpop.f32.mrf.mxu0
      %v2766 = vadd.f32 %v2723, %v2765
      %v2767 = vpop.f32.mrf.mxu0
      %2768 = vdwg.mxu0
      %2769 = vmatpush.bf16.msra.mxu0 %v2484
      %2770 = vmatpush.bf16.msra.mxu0 %v2482
      %2771 = vmatpush.bf16.msra.mxu0 %v2480
      %2772 = vmatpush.bf16.msra.mxu0 %v2478
      %2773 = vmatpush.bf16.msra.mxu0 %v2476
      %2774 = vmatpush.bf16.msra.mxu0 %v2474
      %2775 = vmatpush.bf16.msra.mxu0 %v2472
      %2776 = vmatpush.bf16.msra.mxu0 %v2470
      %2777 = vmatmul.bf16.gmra.mxu0 %v2179
      %v2778 = vpop.f32.mrf.mxu0
      %v2779 = vadd.f32 %v2274, %v2778
      %v2780 = vpop.f32.mrf.mxu0
      %v2781 = vadd.f32 %v2274, %v2780
      %2782 = vmatmul.bf16.gmra.mxu0 %v2183
      %v2783 = vpop.f32.mrf.mxu0
      %v2784 = vadd.f32 %v2274, %v2783
      %v2785 = vpop.f32.mrf.mxu0
      %v2786 = vadd.f32 %v2274, %v2785
      %2787 = vmatmul.bf16.gmra.mxu0 %v2187
      %v2788 = vpop.f32.mrf.mxu0
      %v2789 = vadd.f32 %v2274, %v2788
      %v2790 = vpop.f32.mrf.mxu0
      %v2791 = vadd.f32 %v2274, %v2790
      %2792 = vmatmul.bf16.gmra.mxu0 %v2191
      %v2793 = vpop.f32.mrf.mxu0
      %v2794 = vadd.f32 %v2274, %v2793
      %v2795 = vpop.f32.mrf.mxu0
      %v2796 = vadd.f32 %v2274, %v2795
      %2797 = vmatmul.bf16.gmra.mxu0 %v2195
      %v2798 = vpop.f32.mrf.mxu0
      %v2799 = vadd.f32 %v2274, %v2798
      %v2800 = vpop.f32.mrf.mxu0
      %v2801 = vadd.f32 %v2274, %v2800
      %2802 = vmatmul.bf16.gmra.mxu0 %v2199
      %v2803 = vpop.f32.mrf.mxu0
      %v2804 = vadd.f32 %v2274, %v2803
      %v2805 = vpop.f32.mrf.mxu0
      %v2806 = vadd.f32 %v2274, %v2805
      %2807 = vmatmul.bf16.gmra.mxu0 %v2203
      %v2808 = vpop.f32.mrf.mxu0
      %v2809 = vadd.f32 %v2274, %v2808
      %v2810 = vpop.f32.mrf.mxu0
      %2811 = vdwg.mxu0
      %2812 = vmatpush.bf16.msra.mxu0 %v2500
      %2813 = vmatpush.bf16.msra.mxu0 %v2498
      %2814 = vmatpush.bf16.msra.mxu0 %v2496
      %2815 = vmatpush.bf16.msra.mxu0 %v2494
      %2816 = vmatpush.bf16.msra.mxu0 %v2492
      %2817 = vmatpush.bf16.msra.mxu0 %v2490
      %2818 = vmatpush.bf16.msra.mxu0 %v2488
      %2819 = vmatpush.bf16.msra.mxu0 %v2486
      %2820 = vmatmul.bf16.gmra.mxu0 %v2180
      %v2821 = vpop.f32.mrf.mxu0
      %v2822 = vadd.f32 %v2779, %v2821
      %v2823 = vpop.f32.mrf.mxu0
      %v2824 = vadd.f32 %v2781, %v2823
      %2825 = vmatmul.bf16.gmra.mxu0 %v2184
      %v2826 = vpop.f32.mrf.mxu0
      %v2827 = vadd.f32 %v2784, %v2826
      %v2828 = vpop.f32.mrf.mxu0
      %v2829 = vadd.f32 %v2786, %v2828
      %2830 = vmatmul.bf16.gmra.mxu0 %v2188
      %v2831 = vpop.f32.mrf.mxu0
      %v2832 = vadd.f32 %v2789, %v2831
      %v2833 = vpop.f32.mrf.mxu0
      %v2834 = vadd.f32 %v2791, %v2833
      %2835 = vmatmul.bf16.gmra.mxu0 %v2192
      %v2836 = vpop.f32.mrf.mxu0
      %v2837 = vadd.f32 %v2794, %v2836
      %v2838 = vpop.f32.mrf.mxu0
      %v2839 = vadd.f32 %v2796, %v2838
      %2840 = vmatmul.bf16.gmra.mxu0 %v2196
      %v2841 = vpop.f32.mrf.mxu0
      %v2842 = vadd.f32 %v2799, %v2841
      %v2843 = vpop.f32.mrf.mxu0
      %v2844 = vadd.f32 %v2801, %v2843
      %2845 = vmatmul.bf16.gmra.mxu0 %v2200
      %v2846 = vpop.f32.mrf.mxu0
      %v2847 = vadd.f32 %v2804, %v2846
      %v2848 = vpop.f32.mrf.mxu0
      %v2849 = vadd.f32 %v2806, %v2848
      %2850 = vmatmul.bf16.gmra.mxu0 %v2204
      %v2851 = vpop.f32.mrf.mxu0
      %v2852 = vadd.f32 %v2809, %v2851
      %v2853 = vpop.f32.mrf.mxu0
      %2854 = vdwg.mxu0
      %2855 = vmatpush.bf16.msra.mxu0 %v2516
      %2856 = vmatpush.bf16.msra.mxu0 %v2514
      %2857 = vmatpush.bf16.msra.mxu0 %v2512
      %2858 = vmatpush.bf16.msra.mxu0 %v2510
      %2859 = vmatpush.bf16.msra.mxu0 %v2508
      %2860 = vmatpush.bf16.msra.mxu0 %v2506
      %2861 = vmatpush.bf16.msra.mxu0 %v2504
      %2862 = vmatpush.bf16.msra.mxu0 %v2502
      %2863 = vmatmul.bf16.gmra.mxu0 %v2181
      %v2864 = vpop.f32.mrf.mxu0
      %v2865 = vadd.f32 %v2822, %v2864
      %v2866 = vpop.f32.mrf.mxu0
      %v2867 = vadd.f32 %v2824, %v2866
      %2868 = vmatmul.bf16.gmra.mxu0 %v2185
      %v2869 = vpop.f32.mrf.mxu0
      %v2870 = vadd.f32 %v2827, %v2869
      %v2871 = vpop.f32.mrf.mxu0
      %v2872 = vadd.f32 %v2829, %v2871
      %2873 = vmatmul.bf16.gmra.mxu0 %v2189
      %v2874 = vpop.f32.mrf.mxu0
      %v2875 = vadd.f32 %v2832, %v2874
      %v2876 = vpop.f32.mrf.mxu0
      %v2877 = vadd.f32 %v2834, %v2876
      %2878 = vmatmul.bf16.gmra.mxu0 %v2193
      %v2879 = vpop.f32.mrf.mxu0
      %v2880 = vadd.f32 %v2837, %v2879
      %v2881 = vpop.f32.mrf.mxu0
      %v2882 = vadd.f32 %v2839, %v2881
      %2883 = vmatmul.bf16.gmra.mxu0 %v2197
      %v2884 = vpop.f32.mrf.mxu0
      %v2885 = vadd.f32 %v2842, %v2884
      %v2886 = vpop.f32.mrf.mxu0
      %v2887 = vadd.f32 %v2844, %v2886
      %2888 = vmatmul.bf16.gmra.mxu0 %v2201
      %v2889 = vpop.f32.mrf.mxu0
      %v2890 = vadd.f32 %v2847, %v2889
      %v2891 = vpop.f32.mrf.mxu0
      %v2892 = vadd.f32 %v2849, %v2891
      %2893 = vmatmul.bf16.gmra.mxu0 %v2205
      %v2894 = vpop.f32.mrf.mxu0
      %v2895 = vadd.f32 %v2852, %v2894
      %v2896 = vpop.f32.mrf.mxu0
      %2897 = vdwg.mxu0
      %2898 = vmatpush.bf16.msra.mxu0 %v2532
      %2899 = vmatpush.bf16.msra.mxu0 %v2530
      %2900 = vmatpush.bf16.msra.mxu0 %v2528
      %2901 = vmatpush.bf16.msra.mxu0 %v2526
      %2902 = vmatpush.bf16.msra.mxu0 %v2524
      %2903 = vmatpush.bf16.msra.mxu0 %v2522
      %2904 = vmatpush.bf16.msra.mxu0 %v2520
      %2905 = vmatpush.bf16.msra.mxu0 %v2518
      %2906 = vmatmul.bf16.gmra.mxu0 %v2182
      %v2907 = vpop.f32.mrf.mxu0
      %v2908 = vadd.f32 %v2865, %v2907
      %v2909 = vpop.f32.mrf.mxu0
      %v2910 = vadd.f32 %v2867, %v2909
      %2911 = vmatmul.bf16.gmra.mxu0 %v2186
      %v2912 = vpop.f32.mrf.mxu0
      %v2913 = vadd.f32 %v2870, %v2912
      %v2914 = vpop.f32.mrf.mxu0
      %v2915 = vadd.f32 %v2872, %v2914
      %2916 = vmatmul.bf16.gmra.mxu0 %v2190
      %v2917 = vpop.f32.mrf.mxu0
      %v2918 = vadd.f32 %v2875, %v2917
      %v2919 = vpop.f32.mrf.mxu0
      %v2920 = vadd.f32 %v2877, %v2919
      %2921 = vmatmul.bf16.gmra.mxu0 %v2194
      %v2922 = vpop.f32.mrf.mxu0
      %v2923 = vadd.f32 %v2880, %v2922
      %v2924 = vpop.f32.mrf.mxu0
      %v2925 = vadd.f32 %v2882, %v2924
      %2926 = vmatmul.bf16.gmra.mxu0 %v2198
      %v2927 = vpop.f32.mrf.mxu0
      %v2928 = vadd.f32 %v2885, %v2927
      %v2929 = vpop.f32.mrf.mxu0
      %v2930 = vadd.f32 %v2887, %v2929
      %2931 = vmatmul.bf16.gmra.mxu0 %v2202
      %v2932 = vpop.f32.mrf.mxu0
      %v2933 = vadd.f32 %v2890, %v2932
      %v2934 = vpop.f32.mrf.mxu0
      %v2935 = vadd.f32 %v2892, %v2934
      %2936 = vmatmul.bf16.gmra.mxu0 %v2206
      %v2937 = vpop.f32.mrf.mxu0
      %v2938 = vadd.f32 %v2895, %v2937
      %v2939 = vpop.f32.mrf.mxu0
      %2940 = vdwg.mxu0
      %v2941 = vxor.u32 %v2736, 2147483648
      %v2942 = vxor.u32 %v2908, 2147483648
      %v2943 = vxor.u32 %v2738, 2147483648
      %v2944 = vxor.u32 %v2910, 2147483648
      %v2945 = vxor.u32 %v2741, 2147483648
      %v2946 = vxor.u32 %v2913, 2147483648
      %v2947 = vxor.u32 %v2743, 2147483648
      %v2948 = vxor.u32 %v2915, 2147483648
      %v2949 = vxor.u32 %v2746, 2147483648
      %v2950 = vxor.u32 %v2918, 2147483648
      %v2951 = vxor.u32 %v2748, 2147483648
      %v2952 = vxor.u32 %v2920, 2147483648
      %v2953 = vxor.u32 %v2751, 2147483648
      %v2954 = vxor.u32 %v2923, 2147483648
      %v2955 = vxor.u32 %v2753, 2147483648
      %v2956 = vxor.u32 %v2925, 2147483648
      %v2957 = vxor.u32 %v2756, 2147483648
      %v2958 = vxor.u32 %v2928, 2147483648
      %v2959 = vxor.u32 %v2758, 2147483648
      %v2960 = vxor.u32 %v2930, 2147483648
      %v2961 = vxor.u32 %v2761, 2147483648
      %v2962 = vxor.u32 %v2933, 2147483648
      %v2963 = vxor.u32 %v2763, 2147483648
      %v2964 = vxor.u32 %v2935, 2147483648
      %v2965 = vxor.u32 %v2766, 2147483648
      %v2966 = vxor.u32 %v2938, 2147483648
      %v2967 = vmul.f32 %v2941, 1.442695
      %v2968 = vpow.pop %v2967
      %v2969 = vmul.f32 %v2942, 1.442695
      %v2970 = vpow.pop %v2969
      %v2971 = vmul.f32 %v2943, 1.442695
      %v2972 = vpow.pop %v2971
      %v2973 = vmul.f32 %v2944, 1.442695
      %v2974 = vpow.pop %v2973
      %v2975 = vmul.f32 %v2945, 1.442695
      %v2976 = vpow.pop %v2975
      %v2977 = vmul.f32 %v2946, 1.442695
      %v2978 = vpow.pop %v2977
      %v2979 = vmul.f32 %v2947, 1.442695
      %v2980 = vpow.pop %v2979
      %v2981 = vmul.f32 %v2948, 1.442695
      %v2982 = vpow.pop %v2981
      %v2983 = vmul.f32 %v2949, 1.442695
      %v2984 = vpow.pop %v2983
      %v2985 = vmul.f32 %v2950, 1.442695
      %v2986 = vpow.pop %v2985
      %v2987 = vmul.f32 %v2951, 1.442695
      %v2988 = vpow.pop %v2987
      %v2989 = vmul.f32 %v2952, 1.442695
      %v2990 = vpow.pop %v2989
      %v2991 = vmul.f32 %v2953, 1.442695
      %v2992 = vpow.pop %v2991
      %v2993 = vmul.f32 %v2954, 1.442695
      %v2994 = vpow.pop %v2993
      %v2995 = vmul.f32 %v2955, 1.442695
      %v2996 = vpow.pop %v2995
      %v2997 = vmul.f32 %v2956, 1.442695
      %v2998 = vpow.pop %v2997
      %v2999 = vmul.f32 %v2957, 1.442695
      %v3000 = vpow.pop %v2999
      %v3001 = vmul.f32 %v2958, 1.442695
      %v3002 = vpow.pop %v3001
      %v3003 = vmul.f32 %v2959, 1.442695
      %v3004 = vpow.pop %v3003
      %v3005 = vmul.f32 %v2960, 1.442695
      %v3006 = vpow.pop %v3005
      %v3007 = vmul.f32 %v2961, 1.442695
      %v3008 = vpow.pop %v3007
      %v3009 = vmul.f32 %v2962, 1.442695
      %v3010 = vpow.pop %v3009
      %v3011 = vmul.f32 %v2963, 1.442695
      %v3012 = vpow.pop %v3011
      %v3013 = vmul.f32 %v2964, 1.442695
      %v3014 = vpow.pop %v3013
      %v3015 = vmul.f32 %v2965, 1.442695
      %v3016 = vpow.pop %v3015
      %v3017 = vmul.f32 %v2966, 1.442695
      %v3018 = vpow.pop %v3017
      %v3019 = vadd.f32 %v2968, 1.0
      %v3020 = vadd.f32 %v2970, 1.0
      %v3021 = vadd.f32 %v2972, 1.0
      %v3022 = vadd.f32 %v2974, 1.0
      %v3023 = vadd.f32 %v2976, 1.0
      %v3024 = vadd.f32 %v2978, 1.0
      %v3025 = vadd.f32 %v2980, 1.0
      %v3026 = vadd.f32 %v2982, 1.0
      %v3027 = vadd.f32 %v2984, 1.0
      %v3028 = vadd.f32 %v2986, 1.0
      %v3029 = vadd.f32 %v2988, 1.0
      %v3030 = vadd.f32 %v2990, 1.0
      %v3031 = vadd.f32 %v2992, 1.0
      %v3032 = vadd.f32 %v2994, 1.0
      %v3033 = vadd.f32 %v2996, 1.0
      %v3034 = vadd.f32 %v2998, 1.0
      %v3035 = vadd.f32 %v3000, 1.0
      %v3036 = vadd.f32 %v3002, 1.0
      %v3037 = vadd.f32 %v3004, 1.0
      %v3038 = vadd.f32 %v3006, 1.0
      %v3039 = vadd.f32 %v3008, 1.0
      %v3040 = vadd.f32 %v3010, 1.0
      %v3041 = vadd.f32 %v3012, 1.0
      %v3042 = vadd.f32 %v3014, 1.0
      %v3043 = vadd.f32 %v3016, 1.0
      %v3044 = vadd.f32 %v3018, 1.0
      %v3045 = vrcp.pop %v3019
      %v3046 = vmul.f32 %v3019, %v3045
      %v3047 = vsub.f32 1.0, %v3046
      %v3048 = vmul.f32 %v3045, %v3047
      %v3049 = vadd.f32 %v3045, %v3048
      %vm3050 = vweird.f32 %v3019
      %vm3051 = vweird.f32 %v3045
      %vm3052 = vmor %vm3050, %vm3051
      %v3053 = vsel %vm3052, %v3045, %v3049
      %v3054 = vand.u32 2147483647, %v3019
      %vm3055 = vcmp.eq.f32.partialorder %v3054, 8.507059e+37
      %v3056 = vand.u32 %v3019, 2147483648
      %v3057 = vor.u32 1.1754944e-38, %v3056
      %v3058 = vsel %vm3055, %v3057, %v3053
      %v3059 = vmul.f32 1.0, %v3058
      %v3060 = vrcp.pop %v3020
      %v3061 = vmul.f32 %v3020, %v3060
      %v3062 = vsub.f32 1.0, %v3061
      %v3063 = vmul.f32 %v3060, %v3062
      %v3064 = vadd.f32 %v3060, %v3063
      %vm3065 = vweird.f32 %v3020
      %vm3066 = vweird.f32 %v3060
      %vm3067 = vmor %vm3065, %vm3066
      %v3068 = vsel %vm3067, %v3060, %v3064
      %v3069 = vand.u32 2147483647, %v3020
      %vm3070 = vcmp.eq.f32.partialorder %v3069, 8.507059e+37
      %v3071 = vand.u32 %v3020, 2147483648
      %v3072 = vor.u32 1.1754944e-38, %v3071
      %v3073 = vsel %vm3070, %v3072, %v3068
      %v3074 = vmul.f32 1.0, %v3073
      %v3075 = vrcp.pop %v3021
      %v3076 = vmul.f32 %v3021, %v3075
      %v3077 = vsub.f32 1.0, %v3076
      %v3078 = vmul.f32 %v3075, %v3077
      %v3079 = vadd.f32 %v3075, %v3078
      %vm3080 = vweird.f32 %v3021
      %vm3081 = vweird.f32 %v3075
      %vm3082 = vmor %vm3080, %vm3081
      %v3083 = vsel %vm3082, %v3075, %v3079
      %v3084 = vand.u32 2147483647, %v3021
      %vm3085 = vcmp.eq.f32.partialorder %v3084, 8.507059e+37
      %v3086 = vand.u32 %v3021, 2147483648
      %v3087 = vor.u32 1.1754944e-38, %v3086
      %v3088 = vsel %vm3085, %v3087, %v3083
      %v3089 = vmul.f32 1.0, %v3088
      %v3090 = vrcp.pop %v3022
      %v3091 = vmul.f32 %v3022, %v3090
      %v3092 = vsub.f32 1.0, %v3091
      %v3093 = vmul.f32 %v3090, %v3092
      %v3094 = vadd.f32 %v3090, %v3093
      %vm3095 = vweird.f32 %v3022
      %vm3096 = vweird.f32 %v3090
      %vm3097 = vmor %vm3095, %vm3096
      %v3098 = vsel %vm3097, %v3090, %v3094
      %v3099 = vand.u32 2147483647, %v3022
      %vm3100 = vcmp.eq.f32.partialorder %v3099, 8.507059e+37
      %v3101 = vand.u32 %v3022, 2147483648
      %v3102 = vor.u32 1.1754944e-38, %v3101
      %v3103 = vsel %vm3100, %v3102, %v3098
      %v3104 = vmul.f32 1.0, %v3103
      %v3105 = vrcp.pop %v3023
      %v3106 = vmul.f32 %v3023, %v3105
      %v3107 = vsub.f32 1.0, %v3106
      %v3108 = vmul.f32 %v3105, %v3107
      %v3109 = vadd.f32 %v3105, %v3108
      %vm3110 = vweird.f32 %v3023
      %vm3111 = vweird.f32 %v3105
      %vm3112 = vmor %vm3110, %vm3111
      %v3113 = vsel %vm3112, %v3105, %v3109
      %v3114 = vand.u32 2147483647, %v3023
      %vm3115 = vcmp.eq.f32.partialorder %v3114, 8.507059e+37
      %v3116 = vand.u32 %v3023, 2147483648
      %v3117 = vor.u32 1.1754944e-38, %v3116
      %v3118 = vsel %vm3115, %v3117, %v3113
      %v3119 = vmul.f32 1.0, %v3118
      %v3120 = vrcp.pop %v3024
      %v3121 = vmul.f32 %v3024, %v3120
      %v3122 = vsub.f32 1.0, %v3121
      %v3123 = vmul.f32 %v3120, %v3122
      %v3124 = vadd.f32 %v3120, %v3123
      %vm3125 = vweird.f32 %v3024
      %vm3126 = vweird.f32 %v3120
      %vm3127 = vmor %vm3125, %vm3126
      %v3128 = vsel %vm3127, %v3120, %v3124
      %v3129 = vand.u32 2147483647, %v3024
      %vm3130 = vcmp.eq.f32.partialorder %v3129, 8.507059e+37
      %v3131 = vand.u32 %v3024, 2147483648
      %v3132 = vor.u32 1.1754944e-38, %v3131
      %v3133 = vsel %vm3130, %v3132, %v3128
      %v3134 = vmul.f32 1.0, %v3133
      %v3135 = vrcp.pop %v3025
      %v3136 = vmul.f32 %v3025, %v3135
      %v3137 = vsub.f32 1.0, %v3136
      %v3138 = vmul.f32 %v3135, %v3137
      %v3139 = vadd.f32 %v3135, %v3138
      %vm3140 = vweird.f32 %v3025
      %vm3141 = vweird.f32 %v3135
      %vm3142 = vmor %vm3140, %vm3141
      %v3143 = vsel %vm3142, %v3135, %v3139
      %v3144 = vand.u32 2147483647, %v3025
      %vm3145 = vcmp.eq.f32.partialorder %v3144, 8.507059e+37
      %v3146 = vand.u32 %v3025, 2147483648
      %v3147 = vor.u32 1.1754944e-38, %v3146
      %v3148 = vsel %vm3145, %v3147, %v3143
      %v3149 = vmul.f32 1.0, %v3148
      %v3150 = vrcp.pop %v3026
      %v3151 = vmul.f32 %v3026, %v3150
      %v3152 = vsub.f32 1.0, %v3151
      %v3153 = vmul.f32 %v3150, %v3152
      %v3154 = vadd.f32 %v3150, %v3153
      %vm3155 = vweird.f32 %v3026
      %vm3156 = vweird.f32 %v3150
      %vm3157 = vmor %vm3155, %vm3156
      %v3158 = vsel %vm3157, %v3150, %v3154
      %v3159 = vand.u32 2147483647, %v3026
      %vm3160 = vcmp.eq.f32.partialorder %v3159, 8.507059e+37
      %v3161 = vand.u32 %v3026, 2147483648
      %v3162 = vor.u32 1.1754944e-38, %v3161
      %v3163 = vsel %vm3160, %v3162, %v3158
      %v3164 = vmul.f32 1.0, %v3163
      %v3165 = vrcp.pop %v3027
      %v3166 = vmul.f32 %v3027, %v3165
      %v3167 = vsub.f32 1.0, %v3166
      %v3168 = vmul.f32 %v3165, %v3167
      %v3169 = vadd.f32 %v3165, %v3168
      %vm3170 = vweird.f32 %v3027
      %vm3171 = vweird.f32 %v3165
      %vm3172 = vmor %vm3170, %vm3171
      %v3173 = vsel %vm3172, %v3165, %v3169
      %v3174 = vand.u32 2147483647, %v3027
      %vm3175 = vcmp.eq.f32.partialorder %v3174, 8.507059e+37
      %v3176 = vand.u32 %v3027, 2147483648
      %v3177 = vor.u32 1.1754944e-38, %v3176
      %v3178 = vsel %vm3175, %v3177, %v3173
      %v3179 = vmul.f32 1.0, %v3178
      %v3180 = vrcp.pop %v3028
      %v3181 = vmul.f32 %v3028, %v3180
      %v3182 = vsub.f32 1.0, %v3181
      %v3183 = vmul.f32 %v3180, %v3182
      %v3184 = vadd.f32 %v3180, %v3183
      %vm3185 = vweird.f32 %v3028
      %vm3186 = vweird.f32 %v3180
      %vm3187 = vmor %vm3185, %vm3186
      %v3188 = vsel %vm3187, %v3180, %v3184
      %v3189 = vand.u32 2147483647, %v3028
      %vm3190 = vcmp.eq.f32.partialorder %v3189, 8.507059e+37
      %v3191 = vand.u32 %v3028, 2147483648
      %v3192 = vor.u32 1.1754944e-38, %v3191
      %v3193 = vsel %vm3190, %v3192, %v3188
      %v3194 = vmul.f32 1.0, %v3193
      %v3195 = vrcp.pop %v3029
      %v3196 = vmul.f32 %v3029, %v3195
      %v3197 = vsub.f32 1.0, %v3196
      %v3198 = vmul.f32 %v3195, %v3197
      %v3199 = vadd.f32 %v3195, %v3198
      %vm3200 = vweird.f32 %v3029
      %vm3201 = vweird.f32 %v3195
      %vm3202 = vmor %vm3200, %vm3201
      %v3203 = vsel %vm3202, %v3195, %v3199
      %v3204 = vand.u32 2147483647, %v3029
      %vm3205 = vcmp.eq.f32.partialorder %v3204, 8.507059e+37
      %v3206 = vand.u32 %v3029, 2147483648
      %v3207 = vor.u32 1.1754944e-38, %v3206
      %v3208 = vsel %vm3205, %v3207, %v3203
      %v3209 = vmul.f32 1.0, %v3208
      %v3210 = vrcp.pop %v3030
      %v3211 = vmul.f32 %v3030, %v3210
      %v3212 = vsub.f32 1.0, %v3211
      %v3213 = vmul.f32 %v3210, %v3212
      %v3214 = vadd.f32 %v3210, %v3213
      %vm3215 = vweird.f32 %v3030
      %vm3216 = vweird.f32 %v3210
      %vm3217 = vmor %vm3215, %vm3216
      %v3218 = vsel %vm3217, %v3210, %v3214
      %v3219 = vand.u32 2147483647, %v3030
      %vm3220 = vcmp.eq.f32.partialorder %v3219, 8.507059e+37
      %v3221 = vand.u32 %v3030, 2147483648
      %v3222 = vor.u32 1.1754944e-38, %v3221
      %v3223 = vsel %vm3220, %v3222, %v3218
      %v3224 = vmul.f32 1.0, %v3223
      %v3225 = vrcp.pop %v3031
      %v3226 = vmul.f32 %v3031, %v3225
      %v3227 = vsub.f32 1.0, %v3226
      %v3228 = vmul.f32 %v3225, %v3227
      %v3229 = vadd.f32 %v3225, %v3228
      %vm3230 = vweird.f32 %v3031
      %vm3231 = vweird.f32 %v3225
      %vm3232 = vmor %vm3230, %vm3231
      %v3233 = vsel %vm3232, %v3225, %v3229
      %v3234 = vand.u32 2147483647, %v3031
      %vm3235 = vcmp.eq.f32.partialorder %v3234, 8.507059e+37
      %v3236 = vand.u32 %v3031, 2147483648
      %v3237 = vor.u32 1.1754944e-38, %v3236
      %v3238 = vsel %vm3235, %v3237, %v3233
      %v3239 = vmul.f32 1.0, %v3238
      %v3240 = vrcp.pop %v3032
      %v3241 = vmul.f32 %v3032, %v3240
      %v3242 = vsub.f32 1.0, %v3241
      %v3243 = vmul.f32 %v3240, %v3242
      %v3244 = vadd.f32 %v3240, %v3243
      %vm3245 = vweird.f32 %v3032
      %vm3246 = vweird.f32 %v3240
      %vm3247 = vmor %vm3245, %vm3246
      %v3248 = vsel %vm3247, %v3240, %v3244
      %v3249 = vand.u32 2147483647, %v3032
      %vm3250 = vcmp.eq.f32.partialorder %v3249, 8.507059e+37
      %v3251 = vand.u32 %v3032, 2147483648
      %v3252 = vor.u32 1.1754944e-38, %v3251
      %v3253 = vsel %vm3250, %v3252, %v3248
      %v3254 = vmul.f32 1.0, %v3253
      %v3255 = vrcp.pop %v3033
      %v3256 = vmul.f32 %v3033, %v3255
      %v3257 = vsub.f32 1.0, %v3256
      %v3258 = vmul.f32 %v3255, %v3257
      %v3259 = vadd.f32 %v3255, %v3258
      %vm3260 = vweird.f32 %v3033
      %vm3261 = vweird.f32 %v3255
      %vm3262 = vmor %vm3260, %vm3261
      %v3263 = vsel %vm3262, %v3255, %v3259
      %v3264 = vand.u32 2147483647, %v3033
      %vm3265 = vcmp.eq.f32.partialorder %v3264, 8.507059e+37
      %v3266 = vand.u32 %v3033, 2147483648
      %v3267 = vor.u32 1.1754944e-38, %v3266
      %v3268 = vsel %vm3265, %v3267, %v3263
      %v3269 = vmul.f32 1.0, %v3268
      %v3270 = vrcp.pop %v3034
      %v3271 = vmul.f32 %v3034, %v3270
      %v3272 = vsub.f32 1.0, %v3271
      %v3273 = vmul.f32 %v3270, %v3272
      %v3274 = vadd.f32 %v3270, %v3273
      %vm3275 = vweird.f32 %v3034
      %vm3276 = vweird.f32 %v3270
      %vm3277 = vmor %vm3275, %vm3276
      %v3278 = vsel %vm3277, %v3270, %v3274
      %v3279 = vand.u32 2147483647, %v3034
      %vm3280 = vcmp.eq.f32.partialorder %v3279, 8.507059e+37
      %v3281 = vand.u32 %v3034, 2147483648
      %v3282 = vor.u32 1.1754944e-38, %v3281
      %v3283 = vsel %vm3280, %v3282, %v3278
      %v3284 = vmul.f32 1.0, %v3283
      %v3285 = vrcp.pop %v3035
      %v3286 = vmul.f32 %v3035, %v3285
      %v3287 = vsub.f32 1.0, %v3286
      %v3288 = vmul.f32 %v3285, %v3287
      %v3289 = vadd.f32 %v3285, %v3288
      %vm3290 = vweird.f32 %v3035
      %vm3291 = vweird.f32 %v3285
      %vm3292 = vmor %vm3290, %vm3291
      %v3293 = vsel %vm3292, %v3285, %v3289
      %v3294 = vand.u32 2147483647, %v3035
      %vm3295 = vcmp.eq.f32.partialorder %v3294, 8.507059e+37
      %v3296 = vand.u32 %v3035, 2147483648
      %v3297 = vor.u32 1.1754944e-38, %v3296
      %v3298 = vsel %vm3295, %v3297, %v3293
      %v3299 = vmul.f32 1.0, %v3298
      %v3300 = vrcp.pop %v3036
      %v3301 = vmul.f32 %v3036, %v3300
      %v3302 = vsub.f32 1.0, %v3301
      %v3303 = vmul.f32 %v3300, %v3302
      %v3304 = vadd.f32 %v3300, %v3303
      %vm3305 = vweird.f32 %v3036
      %vm3306 = vweird.f32 %v3300
      %vm3307 = vmor %vm3305, %vm3306
      %v3308 = vsel %vm3307, %v3300, %v3304
      %v3309 = vand.u32 2147483647, %v3036
      %vm3310 = vcmp.eq.f32.partialorder %v3309, 8.507059e+37
      %v3311 = vand.u32 %v3036, 2147483648
      %v3312 = vor.u32 1.1754944e-38, %v3311
      %v3313 = vsel %vm3310, %v3312, %v3308
      %v3314 = vmul.f32 1.0, %v3313
      %v3315 = vrcp.pop %v3037
      %v3316 = vmul.f32 %v3037, %v3315
      %v3317 = vsub.f32 1.0, %v3316
      %v3318 = vmul.f32 %v3315, %v3317
      %v3319 = vadd.f32 %v3315, %v3318
      %vm3320 = vweird.f32 %v3037
      %vm3321 = vweird.f32 %v3315
      %vm3322 = vmor %vm3320, %vm3321
      %v3323 = vsel %vm3322, %v3315, %v3319
      %v3324 = vand.u32 2147483647, %v3037
      %vm3325 = vcmp.eq.f32.partialorder %v3324, 8.507059e+37
      %v3326 = vand.u32 %v3037, 2147483648
      %v3327 = vor.u32 1.1754944e-38, %v3326
      %v3328 = vsel %vm3325, %v3327, %v3323
      %v3329 = vmul.f32 1.0, %v3328
      %v3330 = vrcp.pop %v3038
      %v3331 = vmul.f32 %v3038, %v3330
      %v3332 = vsub.f32 1.0, %v3331
      %v3333 = vmul.f32 %v3330, %v3332
      %v3334 = vadd.f32 %v3330, %v3333
      %vm3335 = vweird.f32 %v3038
      %vm3336 = vweird.f32 %v3330
      %vm3337 = vmor %vm3335, %vm3336
      %v3338 = vsel %vm3337, %v3330, %v3334
      %v3339 = vand.u32 2147483647, %v3038
      %vm3340 = vcmp.eq.f32.partialorder %v3339, 8.507059e+37
      %v3341 = vand.u32 %v3038, 2147483648
      %v3342 = vor.u32 1.1754944e-38, %v3341
      %v3343 = vsel %vm3340, %v3342, %v3338
      %v3344 = vmul.f32 1.0, %v3343
      %v3345 = vrcp.pop %v3039
      %v3346 = vmul.f32 %v3039, %v3345
      %v3347 = vsub.f32 1.0, %v3346
      %v3348 = vmul.f32 %v3345, %v3347
      %v3349 = vadd.f32 %v3345, %v3348
      %vm3350 = vweird.f32 %v3039
      %vm3351 = vweird.f32 %v3345
      %vm3352 = vmor %vm3350, %vm3351
      %v3353 = vsel %vm3352, %v3345, %v3349
      %v3354 = vand.u32 2147483647, %v3039
      %vm3355 = vcmp.eq.f32.partialorder %v3354, 8.507059e+37
      %v3356 = vand.u32 %v3039, 2147483648
      %v3357 = vor.u32 1.1754944e-38, %v3356
      %v3358 = vsel %vm3355, %v3357, %v3353
      %v3359 = vmul.f32 1.0, %v3358
      %v3360 = vrcp.pop %v3040
      %v3361 = vmul.f32 %v3040, %v3360
      %v3362 = vsub.f32 1.0, %v3361
      %v3363 = vmul.f32 %v3360, %v3362
      %v3364 = vadd.f32 %v3360, %v3363
      %vm3365 = vweird.f32 %v3040
      %vm3366 = vweird.f32 %v3360
      %vm3367 = vmor %vm3365, %vm3366
      %v3368 = vsel %vm3367, %v3360, %v3364
      %v3369 = vand.u32 2147483647, %v3040
      %vm3370 = vcmp.eq.f32.partialorder %v3369, 8.507059e+37
      %v3371 = vand.u32 %v3040, 2147483648
      %v3372 = vor.u32 1.1754944e-38, %v3371
      %v3373 = vsel %vm3370, %v3372, %v3368
      %v3374 = vmul.f32 1.0, %v3373
      %v3375 = vrcp.pop %v3041
      %v3376 = vmul.f32 %v3041, %v3375
      %v3377 = vsub.f32 1.0, %v3376
      %v3378 = vmul.f32 %v3375, %v3377
      %v3379 = vadd.f32 %v3375, %v3378
      %vm3380 = vweird.f32 %v3041
      %vm3381 = vweird.f32 %v3375
      %vm3382 = vmor %vm3380, %vm3381
      %v3383 = vsel %vm3382, %v3375, %v3379
      %v3384 = vand.u32 2147483647, %v3041
      %vm3385 = vcmp.eq.f32.partialorder %v3384, 8.507059e+37
      %v3386 = vand.u32 %v3041, 2147483648
      %v3387 = vor.u32 1.1754944e-38, %v3386
      %v3388 = vsel %vm3385, %v3387, %v3383
      %v3389 = vmul.f32 1.0, %v3388
      %v3390 = vrcp.pop %v3042
      %v3391 = vmul.f32 %v3042, %v3390
      %v3392 = vsub.f32 1.0, %v3391
      %v3393 = vmul.f32 %v3390, %v3392
      %v3394 = vadd.f32 %v3390, %v3393
      %vm3395 = vweird.f32 %v3042
      %vm3396 = vweird.f32 %v3390
      %vm3397 = vmor %vm3395, %vm3396
      %v3398 = vsel %vm3397, %v3390, %v3394
      %v3399 = vand.u32 2147483647, %v3042
      %vm3400 = vcmp.eq.f32.partialorder %v3399, 8.507059e+37
      %v3401 = vand.u32 %v3042, 2147483648
      %v3402 = vor.u32 1.1754944e-38, %v3401
      %v3403 = vsel %vm3400, %v3402, %v3398
      %v3404 = vmul.f32 1.0, %v3403
      %v3405 = vrcp.pop %v3043
      %v3406 = vmul.f32 %v3043, %v3405
      %v3407 = vsub.f32 1.0, %v3406
      %v3408 = vmul.f32 %v3405, %v3407
      %v3409 = vadd.f32 %v3405, %v3408
      %vm3410 = vweird.f32 %v3043
      %vm3411 = vweird.f32 %v3405
      %vm3412 = vmor %vm3410, %vm3411
      %v3413 = vsel %vm3412, %v3405, %v3409
      %v3414 = vand.u32 2147483647, %v3043
      %vm3415 = vcmp.eq.f32.partialorder %v3414, 8.507059e+37
      %v3416 = vand.u32 %v3043, 2147483648
      %v3417 = vor.u32 1.1754944e-38, %v3416
      %v3418 = vsel %vm3415, %v3417, %v3413
      %v3419 = vmul.f32 1.0, %v3418
      %v3420 = vrcp.pop %v3044
      %v3421 = vmul.f32 %v3044, %v3420
      %v3422 = vsub.f32 1.0, %v3421
      %v3423 = vmul.f32 %v3420, %v3422
      %v3424 = vadd.f32 %v3420, %v3423
      %vm3425 = vweird.f32 %v3044
      %vm3426 = vweird.f32 %v3420
      %vm3427 = vmor %vm3425, %vm3426
      %v3428 = vsel %vm3427, %v3420, %v3424
      %v3429 = vand.u32 2147483647, %v3044
      %vm3430 = vcmp.eq.f32.partialorder %v3429, 8.507059e+37
      %v3431 = vand.u32 %v3044, 2147483648
      %v3432 = vor.u32 1.1754944e-38, %v3431
      %v3433 = vsel %vm3430, %v3432, %v3428
      %v3434 = vmul.f32 1.0, %v3433
      %3435 = vst [vmem:[%s423] sm:$0xff] %v3059
      %3436 = vst [vmem:[%s423 + $0x8] sm:$0xff] %v3074
      %3437 = vst [vmem:[%s423 + $0x10] sm:$0xff] %v3089
      %3438 = vst [vmem:[%s423 + $0x18] sm:$0xff] %v3104
      %3439 = vst [vmem:[%s423 + $0x20] sm:$0xff] %v3119
      %3440 = vst [vmem:[%s423 + $0x28] sm:$0xff] %v3134
      %3441 = vst [vmem:[%s423 + $0x30] sm:$0xff] %v3149
      %3442 = vst [vmem:[%s423 + $0x38] sm:$0xff] %v3164
      %3443 = vst [vmem:[%s423 + $0x40] sm:$0xff] %v3179
      %3444 = vst [vmem:[%s423 + $0x48] sm:$0xff] %v3194
      %3445 = vst [vmem:[%s423 + $0x50] sm:$0xff] %v3209
      %3446 = vst [vmem:[%s423 + $0x58] sm:$0xff] %v3224
      %3447 = vst [vmem:[%s423 + $0x60] sm:$0xff] %v3239
      %3448 = vst [vmem:[%s423 + $0x68] sm:$0xff] %v3254
      %3449 = vst [vmem:[%s423 + $0x70] sm:$0xff] %v3269
      %3450 = vst [vmem:[%s423 + $0x78] sm:$0xff] %v3284
      %3451 = vst [vmem:[%s423 + $0x80] sm:$0xff] %v3299
      %3452 = vst [vmem:[%s423 + $0x88] sm:$0xff] %v3314
      %3453 = vst [vmem:[%s423 + $0x90] sm:$0xff] %v3329
      %3454 = vst [vmem:[%s423 + $0x98] sm:$0xff] %v3344
      %3455 = vst [vmem:[%s423 + $0xa0] sm:$0xff] %v3359
      %3456 = vst [vmem:[%s423 + $0xa8] sm:$0xff] %v3374
      %3457 = vst [vmem:[%s423 + $0xb0] sm:$0xff] %v3389
      %3458 = vst [vmem:[%s423 + $0xb8] sm:$0xff] %v3404
      %3459 = vst [vmem:[%s423 + $0xc0] sm:$0xff] %v3419
      %3460 = vst [vmem:[%s423 + $0xc8] sm:$0xff] %v3434
      %vm3461 = vcmask 261120
      %3462 = vst.msk [vmem:[%s429] sm:$0xff] %vm3461, %v1729
      %3463 = vst.msk [vmem:[%s429 + $0x8] sm:$0xff] %vm3461, %v1731
      %3464 = vst.msk [vmem:[%s429 + $0x10] sm:$0xff] %vm3461, %v1734
      %3465 = vst.msk [vmem:[%s429 + $0x18] sm:$0xff] %vm3461, %v1736
      %3466 = vst.msk [vmem:[%s429 + $0x20] sm:$0xff] %vm3461, %v1739
      %3467 = vst.msk [vmem:[%s429 + $0x28] sm:$0xff] %vm3461, %v1741
      %3468 = vst.msk [vmem:[%s429 + $0x30] sm:$0xff] %vm3461, %v1744
      %3469 = vst.msk [vmem:[%s429 + $0x38] sm:$0xff] %vm3461, %v1746
      %3470 = vst.msk [vmem:[%s429 + $0x40] sm:$0xff] %vm3461, %v1749
      %3471 = vst.msk [vmem:[%s429 + $0x48] sm:$0xff] %vm3461, %v1751
      %3472 = vst.msk [vmem:[%s429 + $0x50] sm:$0xff] %vm3461, %v1754
      %3473 = vst.msk [vmem:[%s429 + $0x58] sm:$0xff] %vm3461, %v1756
      %3474 = vst.msk [vmem:[%s429 + $0x60] sm:$0xff] %vm3461, %v1759
      %s3475 = smul.u32 13, %s23
      %p3476 = scmp.lt.s32.totalorder %s3475, 25
      %s3477 = scalar_select %p3476, %s3475, 25
      %s3478 = smul.addr %s3477, 2
      %s3479 = smul.addr %s3478, 8
      %s3480 = scalar_lea.vmem %s10, %s3479
      %s3481 = smul.u32 13, %s23
      %p3482 = scmp.lt.s32.totalorder %s3481, 25
      %s3483 = scalar_select %p3482, %s3481, 25
      %s3484 = smul.addr %s3483, 8
      %s3485 = scalar_lea.vmem %s11, %s3484
      // Predicated region
      $region61: #{vae_forward.1} parent=59 // pred_check
        %p3486 = pneg %p261
      $region62: #{vae_forward.1} parent=59 // pred_check_branch
        %3488 = sbr.rel (%p3486) target = $region64
      $region63: #{vae_forward.1} parent=59 // pred_region
        %s3489 = smul.u32 13, %s23
      $region64: #{vae_forward.1} parent=59 // pred_fallthru
        _
      // Predicated region
      $region65: #{vae_forward.1} parent=59 // pred_check
        %p3490 = pneg %p287
      $region66: #{vae_forward.1} parent=59 // pred_check_branch
        %3492 = sbr.rel (%p3490) target = $region68
      $region67: #{vae_forward.1} parent=59 // pred_region
        %s3493 = smul.u32 13, %s23
      $region68: #{vae_forward.1} parent=59 // pred_fallthru
        _
    $region60: #{vae_forward.1} parent=5 // pred_fallthru
      _
    %p3494 = scmp.le.s32.totalorder 2, %s18
    // Predicated region
    $region69: #{vae_forward.1} parent=5 // pred_check
      %p3495 = pneg %p3494
    $region70: #{vae_forward.1} parent=5 // pred_check_branch
      %3497 = sbr.rel (%p3495) target = $region72
    $region71: #{vae_forward.1} parent=5 // pred_region
      %s3498 = ssub.s32 %s18, 2
      // Predicated region
      $region73: #{vae_forward.1} parent=71 // pred_check
        %p3499 = pneg %p267
      $region74: #{vae_forward.1} parent=71 // pred_check_branch
        %3501 = sbr.rel (%p3499) target = $region76
      $region75: #{vae_forward.1} parent=71 // pred_region
        %s3502 = smul.u32 13, %s24
        %p3503 = scmp.lt.s32.totalorder %s3502, 25
        %s3504 = scalar_select %p3503, %s3502, 25
        %s3505 = smul.addr %s3504, 2
        %s3506 = smul.addr %s3505, 8
        %s3507 = scalar_lea.vmem %s10, %s3506
      $region76: #{vae_forward.1} parent=71 // pred_fallthru
        _
      // Predicated region
      $region77: #{vae_forward.1} parent=71 // pred_check
        %p3508 = pneg %p293
      $region78: #{vae_forward.1} parent=71 // pred_check_branch
        %3510 = sbr.rel (%p3508) target = $region80
      $region79: #{vae_forward.1} parent=71 // pred_region
        %s3511 = smul.u32 13, %s24
        %p3512 = scmp.lt.s32.totalorder %s3511, 25
        %s3513 = scalar_select %p3512, %s3511, 25
        %s3514 = smul.addr %s3513, 8
        %s3515 = scalar_lea.vmem %s11, %s3514
      $region80: #{vae_forward.1} parent=71 // pred_fallthru
        _
    $region72: #{vae_forward.1} parent=5 // pred_fallthru
      _
  $region6: #{vae_forward.1} parent=0 // loop_footer
    %s22 = sadd.s32 1, %s18
  $region7: #{vae_forward.1} parent=0 // loop_footer_branch
    %17 = sbr.rel target = $region3
  $region8: #{vae_forward.1} parent=0 // loop_exit
    _

</llo_original>
